<compile_context>
chip_gen: v6e
topology: v6e:2x2x1
jax: 0.10.0
libtpu: 0.0.40
codegen_flags: <defaults>
</compile_context>

<pallas_src>
import functools

import jax
import jax.numpy as jnp
from jax.experimental import pallas as pl
from jax.experimental.pallas import tpu as pltpu

N_EMBD = 384          # matches `n_embd = 384` in the PyTorch file
HIDDEN = 4 * N_EMBD   # 1536
DROPOUT_P = 0.2       # unused at inference (identity)


# ---------------------------------------------------------------------------
# Kernel
# ---------------------------------------------------------------------------
def _ffn_kernel(x_ref, w1_ref, b1_ref, w2_ref, b2_ref, o_ref):
    # x_ref : (tm, C) f32      w1_ref: (C, H) bf16   b1_ref: (1, H) f32
    # w2_ref: (H, C) bf16      b2_ref: (1, C) f32    o_ref : (tm, C) f32
    x = x_ref[...].astype(jnp.bfloat16)        # one VPU cast, feeds the MXU

    # Fused bias + ReLU + bf16 cast: the f32 (tm, H) matmul result is consumed
    # immediately and only the bf16 hidden activation is materialized in VMEM.
    h = jnp.maximum(
        jnp.dot(x, w1_ref[...], preferred_element_type=jnp.float32)
        + b1_ref[...],
        0.0,
    ).astype(jnp.bfloat16)

    # Second matmul accumulates over the full K=H inside the MXU (f32 acc);
    # bias add stays in f32.
    o_ref[...] = (
        jnp.dot(h, w2_ref[...], preferred_element_type=jnp.float32)
        + b2_ref[...]
    ).astype(o_ref.dtype)
    # TODO(synk): training-mode dropout (p=0.2) via pltpu.prng_seed /
    #             pltpu.prng_random_bits; eval-mode dropout is identity.


# ---------------------------------------------------------------------------
# Tiling / hardware heuristics (host-side, outside jit)
# ---------------------------------------------------------------------------
def _round_up(x, m):
    return ((x + m - 1) // m) * m


def _tpu_hw():
    """Best-effort (vmem_capacity_bytes, assumed_tensorcores_per_chip)."""
    vmem_bytes = 64 << 20  # conservative default (v7x)
    try:
        info = pltpu.get_tpu_info()
        vmem_bytes = int(getattr(info, "vmem_capacity_bytes", vmem_bytes))
    except Exception:
        pass
    # 64 MiB VMEM per core => v7x (2 TCs/chip); 128 MiB => v5e/v6e (1 TC).
    n_tc = 2 if vmem_bytes < (100 << 20) else 1
    return vmem_bytes, n_tc


def _pick_tm(M, n_tc, tile_cap):
    """Row-tile size (multiple of 8 sublanes)."""
    if n_tc > 1:
        # 2 TensorCores: keep >= 2 grid steps whenever M allows it so both
        # cores get work on the "parallel" axis.
        target = _round_up(max(1, pl.cdiv(M, 2)), 8)
        return min(tile_cap, max(8, target))
    # Single TensorCore: the grid is a serial loop -> one tile if it fits
    # (avoids paying a second ~0.35 us grid-step overhead for tiny M).
    return min(tile_cap, max(8, _round_up(M, 8)))


# ---------------------------------------------------------------------------
# Wrapper
# ---------------------------------------------------------------------------
def prepare_params(w1, b1, w2, b2):
    """One-time parameter prep (do this OUTSIDE the per-call path):
    bf16 weights for the native MXU path, f32 biases."""
    return (jnp.asarray(w1, jnp.bfloat16),
            jnp.asarray(b1, jnp.float32),
            jnp.asarray(w2, jnp.bfloat16),
            jnp.asarray(b2, jnp.float32))


@functools.partial(jax.jit, static_argnames=("tm", "vmem_limit_bytes"))
def _feed_forward_impl(x, w1, b1, w2, b2, *, tm, vmem_limit_bytes):
    B, T, C = x.shape
    H = w1.shape[1]
    M = B * T
    x2 = x.reshape(M, C)

    grid_m = pl.cdiv(M, tm)
    m_pad = grid_m * tm
    if m_pad != M:
        # Pad rows with zeros; padded rows are computed and then dropped.
        x2 = jnp.pad(x2, ((0, m_pad - M), (0, 0)))

    # Identity if params came from prepare_params (XLA elides the no-op cast);
    # kept only so raw f32 weights also work.
    w1_bf = w1.astype(jnp.bfloat16)
    w2_bf = w2.astype(jnp.bfloat16)
    b1_2d = b1.reshape(1, H).astype(jnp.float32)
    b2_2d = b2.reshape(1, C).astype(jnp.float32)

    cost = pl.CostEstimate(
        flops=4 * m_pad * C * H,                         # two (m,C)x(C,H) matmuls
        transcendentals=0,
        bytes_accessed=2 * m_pad * C * 4                 # x in + y out (f32)
        + 2 * C * H * 2                                  # W1 + W2 (bf16)
        + (H + C) * 4,                                   # biases (f32)
    )

    out2 = pl.pallas_call(
        _ffn_kernel,
        out_shape=jax.ShapeDtypeStruct((m_pad, C), x.dtype),
        grid_spec=pltpu.PrefetchScalarGridSpec(
            num_scalar_prefetch=0,
            grid=(grid_m,),
            in_specs=[
                pl.BlockSpec((tm, C), lambda i: (i, 0)),   # x row-tile (streamed)
                pl.BlockSpec((C, H), lambda i: (0, 0)),    # W1 (resident, bf16)
                pl.BlockSpec((1, H), lambda i: (0, 0)),    # b1
                pl.BlockSpec((H, C), lambda i: (0, 0)),    # W2 (resident, bf16)
                pl.BlockSpec((1, C), lambda i: (0, 0)),    # b2
            ],
            out_specs=pl.BlockSpec((tm, C), lambda i: (i, 0)),
        ),
        compiler_params=pltpu.CompilerParams(
            dimension_semantics=("parallel",),
            vmem_limit_bytes=vmem_limit_bytes,
        ),
        cost_estimate=cost,
    )(x2, w1_bf, b1_2d, w2_bf, b2_2d)

    return out2[:M].reshape(B, T, C)


def feed_forward(x, w1, b1, w2, b2, *, tm=None, vmem_limit_bytes=None):
    """x: (B, T, C) float32 -> (B, T, C) float32.

    Pass parameters from prepare_params() so the f32->bf16 weight convert is
    not re-emitted on every call.
    """
    B, T, _ = x.shape
    M = B * T
    if tm is None or vmem_limit_bytes is None:
        vmem_bytes, n_tc = _tpu_hw()
        big_vmem = vmem_bytes >= (100 << 20)          # v5e/v6e: 128 MiB VMEM
        tile_cap = 2048 if big_vmem else 1024         # v7x: 64 MiB VMEM
        if tm is None:
            tm = _pick_tm(M, n_tc, tile_cap)
        if vmem_limit_bytes is None:
            vmem_limit_bytes = (64 << 20) if big_vmem else (48 << 20)
    return _feed_forward_impl(x, w1, b1, w2, b2,
                              tm=tm, vmem_limit_bytes=vmem_limit_bytes)


# ---------------------------------------------------------------------------
# Synthetic params + self-test
# ---------------------------------------------------------------------------
def init_params(key, n_embd=N_EMBD):
    """Deterministic synthetic params with nn.Linear-like uniform init."""
    k1, k2, k3, k4 = jax.random.split(key, 4)
    hidden = 4 * n_embd
    bound1 = 1.0 / (n_embd ** 0.5)
    bound2 = 1.0 / (hidden ** 0.5)
    # Stored as (in, out) so the kernel does x @ W (PyTorch stores (out, in)).
    w1 = jax.random.uniform(k1, (n_embd, hidden), jnp.float32, -bound1, bound1)
    b1 = jax.random.uniform(k2, (hidden,), jnp.float32, -bound1, bound1)
    w2 = jax.random.uniform(k3, (hidden, n_embd), jnp.float32, -bound2, bound2)
    b2 = jax.random.uniform(k4, (n_embd,), jnp.float32, -bound2, bound2)
    return w1, b1, w2, b2


if __name__ == "__main__":
    key = jax.random.PRNGKey(0)
    k_x, k_p = jax.random.split(key)

    B, T = 2, 8
    x = jax.random.normal(k_x, (B, T, N_EMBD), jnp.float32)
    w1, b1, w2, b2 = init_params(k_p)

    # One-time bf16 prep outside the per-call path (per perf review).
    params = prepare_params(w1, b1, w2, b2)

    out = feed_forward(x, *params)
    out = jax.block_until_ready(out)
    assert out.shape == (B, T, N_EMBD)

    # Reference 1: same bf16-input / f32-accumulate computation in plain JAX
    # (should match the kernel to f32 rounding).
    x2 = x.reshape(-1, N_EMBD).astype(jnp.bfloat16)
    h_ref = jnp.maximum(
        jnp.dot(x2, w1.astype(jnp.bfloat16), preferred_element_type=jnp.float32)
        + b1, 0.0)
    ref_bf16 = (jnp.dot(h_ref.astype(jnp.bfloat16), w2.astype(jnp.bfloat16),
                        preferred_element_type=jnp.float32)
                + b2).reshape(B, T, N_EMBD)
    assert jnp.allclose(out, ref_bf16, atol=1e-3, rtol=1e-3)

    # Reference 2: full-f32 reference, looser tolerance (bf16 quantization).
    ref_f32 = (jnp.maximum(x.reshape(-1, N_EMBD) @ w1 + b1, 0.0) @ w2
               + b2).reshape(B, T, N_EMBD)
    assert jnp.allclose(out, ref_f32, atol=1e-1, rtol=1e-1)

    print("KERNEL_OK")
</pallas_src>

<mosaic_0001>
module attributes {stable_mosaic.version = 11 : i64} {
  func.func @_ffn_kernel(%arg0: i32, %arg1: memref<8x384xf32, #tpu.memory_space<vmem>>, %arg2: memref<384x1536xbf16, #tpu.memory_space<vmem>>, %arg3: memref<1x1536xf32, #tpu.memory_space<vmem>>, %arg4: memref<1536x384xbf16, #tpu.memory_space<vmem>>, %arg5: memref<1x384xf32, #tpu.memory_space<vmem>>, %arg6: memref<8x384xf32, #tpu.memory_space<vmem>>) attributes {dimension_semantics = [#tpu.dimension_semantics<parallel>], iteration_bounds = array<i64: 2>, scalar_prefetch = 0 : i64, scratch_operands = 0 : i64, tpu.core_type = #tpu.core_type<tc>, window_params = [{transform_indices = @transform_0, window_bounds = array<i64: 8, 384>}, {pipeline_mode = #tpu.pipeline_mode<synchronous>, transform_indices = @transform_1, window_bounds = array<i64: 384, 1536>}, {pipeline_mode = #tpu.pipeline_mode<synchronous>, transform_indices = @transform_2, window_bounds = array<i64: 1, 1536>}, {pipeline_mode = #tpu.pipeline_mode<synchronous>, transform_indices = @transform_3, window_bounds = array<i64: 1536, 384>}, {pipeline_mode = #tpu.pipeline_mode<synchronous>, transform_indices = @transform_4, window_bounds = array<i64: 1, 384>}, {transform_indices = @transform_5, window_bounds = array<i64: 8, 384>}]} {
    %c0 = arith.constant 0 : index
    %c0_0 = arith.constant 0 : index
    %0 = vector.load %arg1[%c0, %c0_0] : memref<8x384xf32, #tpu.memory_space<vmem>>, vector<8x384xf32>
    %1 = arith.truncf %0 : vector<8x384xf32> to vector<8x384xbf16>
    %c0_1 = arith.constant 0 : index
    %c0_2 = arith.constant 0 : index
    %2 = vector.load %arg2[%c0_1, %c0_2] : memref<384x1536xbf16, #tpu.memory_space<vmem>>, vector<384x1536xbf16>
    %cst = arith.constant dense<0.000000e+00> : vector<8x1536xf32>
    %3 = tpu.matmul %1, %2, %cst {dimension_numbers = #tpu.dot_dimension_numbers<[1], [0], [0], [1], [0, 0, 1, 1], [], []>} : vector<8x384xbf16>, vector<384x1536xbf16>, vector<8x1536xf32> -> vector<8x1536xf32>
    %c0_3 = arith.constant 0 : index
    %c0_4 = arith.constant 0 : index
    %4 = vector.load %arg3[%c0_3, %c0_4] : memref<1x1536xf32, #tpu.memory_space<vmem>>, vector<1x1536xf32>
    %5 = vector.broadcast %4 : vector<1x1536xf32> to vector<8x1536xf32>
    %6 = arith.addf %3, %5 : vector<8x1536xf32>
    %cst_5 = arith.constant 0.000000e+00 : f32
    %7 = vector.broadcast %cst_5 : f32 to vector<8x1536xf32>
    %8 = arith.maximumf %6, %7 : vector<8x1536xf32>
    %9 = arith.truncf %8 : vector<8x1536xf32> to vector<8x1536xbf16>
    %c0_6 = arith.constant 0 : index
    %c0_7 = arith.constant 0 : index
    %10 = vector.load %arg4[%c0_6, %c0_7] : memref<1536x384xbf16, #tpu.memory_space<vmem>>, vector<1536x384xbf16>
    %cst_8 = arith.constant dense<0.000000e+00> : vector<8x384xf32>
    %11 = tpu.matmul %9, %10, %cst_8 {dimension_numbers = #tpu.dot_dimension_numbers<[1], [0], [0], [1], [0, 0, 1, 1], [], []>} : vector<8x1536xbf16>, vector<1536x384xbf16>, vector<8x384xf32> -> vector<8x384xf32>
    %c0_9 = arith.constant 0 : index
    %c0_10 = arith.constant 0 : index
    %12 = vector.load %arg5[%c0_9, %c0_10] : memref<1x384xf32, #tpu.memory_space<vmem>>, vector<1x384xf32>
    %13 = vector.broadcast %12 : vector<1x384xf32> to vector<8x384xf32>
    %14 = arith.addf %11, %13 : vector<8x384xf32>
    %c0_11 = arith.constant 0 : index
    %c0_12 = arith.constant 0 : index
    %15 = vector.load %arg6[%c0_11, %c0_12] : memref<8x384xf32, #tpu.memory_space<vmem>>, vector<8x384xf32>
    tpu.vector_store %arg6[%c0_11, %c0_12], %14 {strides = array<i32>} : memref<8x384xf32, #tpu.memory_space<vmem>>, vector<8x384xf32>,
    return
  }
  func.func @transform_0(%arg0: i32) -> (i32, i32) {
    %c0_i32 = arith.constant 0 : i32
    %c0_i32_0 = arith.constant 0 : i32
    return %arg0, %c0_i32 : i32, i32
  }
  func.func @transform_1(%arg0: i32) -> (i32, i32) {
    %c0_i32 = arith.constant 0 : i32
    %c0_i32_0 = arith.constant 0 : i32
    %c0_i32_1 = arith.constant 0 : i32
    return %c0_i32, %c0_i32_0 : i32, i32
  }
  func.func @transform_2(%arg0: i32) -> (i32, i32) {
    %c0_i32 = arith.constant 0 : i32
    %c0_i32_0 = arith.constant 0 : i32
    %c0_i32_1 = arith.constant 0 : i32
    return %c0_i32, %c0_i32_0 : i32, i32
  }
  func.func @transform_3(%arg0: i32) -> (i32, i32) {
    %c0_i32 = arith.constant 0 : i32
    %c0_i32_0 = arith.constant 0 : i32
    %c0_i32_1 = arith.constant 0 : i32
    return %c0_i32, %c0_i32_0 : i32, i32
  }
  func.func @transform_4(%arg0: i32) -> (i32, i32) {
    %c0_i32 = arith.constant 0 : i32
    %c0_i32_0 = arith.constant 0 : i32
    %c0_i32_1 = arith.constant 0 : i32
    return %c0_i32, %c0_i32_0 : i32, i32
  }
  func.func @transform_5(%arg0: i32) -> (i32, i32) {
    %c0_i32 = arith.constant 0 : i32
    %c0_i32_0 = arith.constant 0 : i32
    return %arg0, %c0_i32 : i32, i32
  }
}

</mosaic_0001>

<llo_original>
// kernel: _feed_forward_impl.1
$region0: #{_feed_forward_impl.1}
  #allocation0 [shape = 'u32[]', space=smem, size = 0x4, offset = 0x4, fixed_abs, tag = 'smem constant byte address 0x4 - core index']
  #allocation1 [shape = 'u32[144,128]{1,0:T(1,128)}', space=vmem, size = 0x12000, scoped, tag = 'internal scratch']
  %s0 = inlined_call_operand.hbm [shape: f32[16,384], index: 0, kind: input, shape index: {}]
  %s1 = inlined_call_operand.hbm [shape: bf16[384,1536], index: 1, kind: input, shape index: {}]
  %s2 = inlined_call_operand.vmem [shape: f32[1,1536], index: 2, kind: input, shape index: {}]
  %s3 = inlined_call_operand.hbm [shape: bf16[1536,384], index: 3, kind: input, shape index: {}]
  %s4 = inlined_call_operand.vmem [shape: f32[1,384], index: 4, kind: input, shape index: {}]
  %s5 = inlined_call_operand.hbm [shape: f32[16,384], index: 5, kind: output, shape index: {}]
  %s6 = sld [smem:[#allocation0]]
  $region65: #{_feed_forward_impl.1} parent=0
    _
  %s8 = ssub.s32 1, %s6
  %s9 = scalar_select 0, %s8, %s6
  $region1: #{_feed_forward_impl.1} parent=0
    #allocation2 [shape = 'u8[24576]{0}', space=vmem, size = 0x6000, scoped, tag = 'input window, operand 0']
    #allocation3 [shape = 's32[2]{0}', space=sflag, size = 0x8, scoped, tag = 'scoped memory for _feed_forward_impl.1']
    #allocation4 [shape = 's32[2]{0}', space=sflag, size = 0x8, scoped, tag = 'scoped memory for _feed_forward_impl.1']
    #allocation5 [shape = 'u8[1179648]{0}', space=vmem, size = 0x120000, scoped, tag = 'input window, operand 1, single buffered']
    #allocation6 [shape = 's32[1]{0}', space=sflag, size = 0x4, scoped, tag = 'scoped memory for _feed_forward_impl.1']
    #allocation7 [shape = 'u8[1179648]{0}', space=vmem, size = 0x120000, scoped, tag = 'input window, operand 3, single buffered']
    #allocation8 [shape = 'u8[24576]{0}', space=vmem, size = 0x6000, scoped, tag = 'output window, operand 0']
    %10 = vsyncpa [#allocation3], 0
    %s11 = scalar_lea.sflag [#allocation3], 1
    %12 = vsyncpa %s11, 0
    %13 = vsyncpa [#allocation6], 0
    %14 = vsyncpa [#allocation4], 0
    %s15 = scalar_lea.sflag [#allocation4], 1
    %16 = vsyncpa %s15, 0
    loop: start=0, step=1, limit=4
    $region2: #{_feed_forward_impl.1} parent=1 // loop_pre_header
      _
    $region3: #{_feed_forward_impl.1} parent=1 // loop_header
      %s18 = sphi 0, %s22
      %p19 = scmp.ge.s32.totalorder %s18, 4
      %s28 = sphi 0, %s30
      %s31 = sphi 0, %s28
      %s32 = sphi 0, %s31
      %s48 = sphi 0, %s32
      %s52 = sphi 0, %s52
      %s54 = sphi 0, %s52
      %s55 = sphi 0, %s54
      %s69 = sphi 0, %s55
      %s73 = sphi 0, %s73
      %s75 = sphi 0, %s73
      %s76 = sphi 0, %s75
      %s90 = sphi 0, %s76
      %s94 = sphi 0, %s94
      %s96 = sphi 0, %s94
      %s97 = sphi 0, %s96
      %s111 = sphi 0, %s97
      %s115 = sphi 0, %s115
      %s117 = sphi 0, %s115
      %s118 = sphi 0, %s117
      %s132 = sphi 0, %s118
      %s138 = sphi 0, %s140
      %s141 = sphi 0, %s138
      %s142 = sphi 0, %s141
      %s158 = sphi 0, %s142
    $region4: #{_feed_forward_impl.1} parent=1 // loop_header_branch
      %21 = sbr.rel (%p19) target = $region8
    $region5: #{_feed_forward_impl.1} parent=1 // loop_body
      %s23 = ssub.s32 %s18, 1
      %s24 = ssub.s32 %s18, 2
      %s25 = sadd.s32 %s18, 1
      %s26 = ssub.s32 %s18, %s25
      %p27 = scmp.eq.s32.totalorder %s26, 0
      %s29 = sadd.s32 %s28, 1
      %s30 = scalar_select %p27, %s28, %s29
      %p33 = pneg %p27
      %p34 = scmp.eq.s32.totalorder %s18, 1
      %p35 = por %p33, %p34
      %p36 = scmp.ne.s32.totalorder %s28, %s31
      %p37 = scmp.eq.s32.totalorder %s18, 0
      %p38 = por %p36, %p37
      %p39 = scmp.ne.s32.totalorder %s28, %s31
      %p40 = scmp.eq.s32.totalorder %s23, 1
      %p41 = por %p39, %p40
      %p42 = scmp.ne.s32.totalorder %s31, %s32
      %p43 = scmp.eq.s32.totalorder %s23, 0
      %p44 = por %p42, %p43
      %p45 = scmp.ne.s32.totalorder %s31, %s32
      %p46 = scmp.eq.s32.totalorder %s24, 1
      %p47 = por %p45, %p46
      %p49 = scmp.ne.s32.totalorder %s32, %s48
      %p50 = scmp.eq.s32.totalorder %s24, 0
      %p51 = por %p49, %p50
      %s53 = sadd.s32 %s52, 1
      %p56 = scmp.eq.s32.totalorder %s18, 1
      %p57 = scmp.ne.s32.totalorder %s52, %s54
      %p58 = scmp.eq.s32.totalorder %s18, 0
      %p59 = por %p57, %p58
      %p60 = scmp.ne.s32.totalorder %s52, %s54
      %p61 = scmp.eq.s32.totalorder %s23, 1
      %p62 = por %p60, %p61
      %p63 = scmp.ne.s32.totalorder %s54, %s55
      %p64 = scmp.eq.s32.totalorder %s23, 0
      %p65 = por %p63, %p64
      %p66 = scmp.ne.s32.totalorder %s54, %s55
      %p67 = scmp.eq.s32.totalorder %s24, 1
      %p68 = por %p66, %p67
      %p70 = scmp.ne.s32.totalorder %s55, %s69
      %p71 = scmp.eq.s32.totalorder %s24, 0
      %p72 = por %p70, %p71
      %s74 = sadd.s32 %s73, 1
      %p77 = scmp.eq.s32.totalorder %s18, 1
      %p78 = scmp.ne.s32.totalorder %s73, %s75
      %p79 = scmp.eq.s32.totalorder %s18, 0
      %p80 = por %p78, %p79
      %p81 = scmp.ne.s32.totalorder %s73, %s75
      %p82 = scmp.eq.s32.totalorder %s23, 1
      %p83 = por %p81, %p82
      %p84 = scmp.ne.s32.totalorder %s75, %s76
      %p85 = scmp.eq.s32.totalorder %s23, 0
      %p86 = por %p84, %p85
      %p87 = scmp.ne.s32.totalorder %s75, %s76
      %p88 = scmp.eq.s32.totalorder %s24, 1
      %p89 = por %p87, %p88
      %p91 = scmp.ne.s32.totalorder %s76, %s90
      %p92 = scmp.eq.s32.totalorder %s24, 0
      %p93 = por %p91, %p92
      %s95 = sadd.s32 %s94, 1
      %p98 = scmp.eq.s32.totalorder %s18, 1
      %p99 = scmp.ne.s32.totalorder %s94, %s96
      %p100 = scmp.eq.s32.totalorder %s18, 0
      %p101 = por %p99, %p100
      %p102 = scmp.ne.s32.totalorder %s94, %s96
      %p103 = scmp.eq.s32.totalorder %s23, 1
      %p104 = por %p102, %p103
      %p105 = scmp.ne.s32.totalorder %s96, %s97
      %p106 = scmp.eq.s32.totalorder %s23, 0
      %p107 = por %p105, %p106
      %p108 = scmp.ne.s32.totalorder %s96, %s97
      %p109 = scmp.eq.s32.totalorder %s24, 1
      %p110 = por %p108, %p109
      %p112 = scmp.ne.s32.totalorder %s97, %s111
      %p113 = scmp.eq.s32.totalorder %s24, 0
      %p114 = por %p112, %p113
      %s116 = sadd.s32 %s115, 1
      %p119 = scmp.eq.s32.totalorder %s18, 1
      %p120 = scmp.ne.s32.totalorder %s115, %s117
      %p121 = scmp.eq.s32.totalorder %s18, 0
      %p122 = por %p120, %p121
      %p123 = scmp.ne.s32.totalorder %s115, %s117
      %p124 = scmp.eq.s32.totalorder %s23, 1
      %p125 = por %p123, %p124
      %p126 = scmp.ne.s32.totalorder %s117, %s118
      %p127 = scmp.eq.s32.totalorder %s23, 0
      %p128 = por %p126, %p127
      %p129 = scmp.ne.s32.totalorder %s117, %s118
      %p130 = scmp.eq.s32.totalorder %s24, 1
      %p131 = por %p129, %p130
      %p133 = scmp.ne.s32.totalorder %s118, %s132
      %p134 = scmp.eq.s32.totalorder %s24, 0
      %p135 = por %p133, %p134
      %s136 = ssub.s32 %s18, %s25
      %p137 = scmp.eq.s32.totalorder %s136, 0
      %s139 = sadd.s32 %s138, 1
      %s140 = scalar_select %p137, %s138, %s139
      %p143 = pneg %p137
      %p144 = scmp.eq.s32.totalorder %s18, 1
      %p145 = por %p143, %p144
      %p146 = scmp.ne.s32.totalorder %s138, %s141
      %p147 = scmp.eq.s32.totalorder %s18, 0
      %p148 = por %p146, %p147
      %p149 = scmp.ne.s32.totalorder %s138, %s141
      %p150 = scmp.eq.s32.totalorder %s23, 1
      %p151 = por %p149, %p150
      %p152 = scmp.ne.s32.totalorder %s141, %s142
      %p153 = scmp.eq.s32.totalorder %s23, 0
      %p154 = por %p152, %p153
      %p155 = scmp.ne.s32.totalorder %s141, %s142
      %p156 = scmp.eq.s32.totalorder %s24, 1
      %p157 = por %p155, %p156
      %p159 = scmp.ne.s32.totalorder %s142, %s158
      %p160 = scmp.eq.s32.totalorder %s24, 0
      %p161 = por %p159, %p160
      %p162 = scmp.le.s32.totalorder 1, %s18
      %p163 = scmp.lt.s32.totalorder %s18, 3
      %p164 = pnand %p162, %p163
      %p165 = pneg %p164
      // Predicated region
      $region9: #{_feed_forward_impl.1} parent=5 // pred_check
        _
      $region10: #{_feed_forward_impl.1} parent=5 // pred_check_branch
        %167 = sbr.rel (%p164) target = $region12
      $region11: #{_feed_forward_impl.1} parent=5 // pred_region
        %s168 = ssub.s32 %s18, 1
        // Predicated region
        $region13: #{_feed_forward_impl.1} parent=11 // pred_check
          %p169 = pneg %p65
        $region14: #{_feed_forward_impl.1} parent=11 // pred_check_branch
          %171 = sbr.rel (%p169) target = $region16
        $region15: #{_feed_forward_impl.1} parent=11 // pred_region
          %s173 = ssub.s32 36864, 36864
          %174 = vsyncadd [#allocation6], %s173
          %s175 = sshll.u32 [#allocation5], 4
          %s176 = int_to_ptr.vmem [resolvable:$true] %s175
          %181 = dma.hbm_to_vmem [thread:$0]  %s1, 36864, %s176, [#allocation6], 768, 768, 48
        $region16: #{_feed_forward_impl.1} parent=11 // pred_fallthru
          _
        // Predicated region
        $region17: #{_feed_forward_impl.1} parent=11 // pred_check
          %p182 = pneg %p86
        $region18: #{_feed_forward_impl.1} parent=11 // pred_check_branch
          %184 = sbr.rel (%p182) target = $region20
        $region19: #{_feed_forward_impl.1} parent=11 // pred_region
          _
        $region20: #{_feed_forward_impl.1} parent=11 // pred_fallthru
          _
        // Predicated region
        $region21: #{_feed_forward_impl.1} parent=11 // pred_check
          %p185 = pneg %p107
        $region22: #{_feed_forward_impl.1} parent=11 // pred_check_branch
          %187 = sbr.rel (%p185) target = $region24
        $region23: #{_feed_forward_impl.1} parent=11 // pred_region
          %s189 = ssub.s32 36864, 36864
          %190 = vsyncadd [#allocation6], %s189
          %s191 = sshll.u32 [#allocation7], 4
          %s192 = int_to_ptr.vmem [resolvable:$true] %s191
          %197 = dma.hbm_to_vmem [thread:$0]  %s3, 36864, %s192, [#allocation6], 192, 192, 12
        $region24: #{_feed_forward_impl.1} parent=11 // pred_fallthru
          _
        // Predicated region
        $region25: #{_feed_forward_impl.1} parent=11 // pred_check
          %p198 = pneg %p128
        $region26: #{_feed_forward_impl.1} parent=11 // pred_check_branch
          %200 = sbr.rel (%p198) target = $region28
        $region27: #{_feed_forward_impl.1} parent=11 // pred_region
          _
        $region28: #{_feed_forward_impl.1} parent=11 // pred_fallthru
          _
      $region12: #{_feed_forward_impl.1} parent=5 // pred_fallthru
        _
      %p201 = scmp.lt.s32.totalorder %s18, 2
      // Predicated region
      $region29: #{_feed_forward_impl.1} parent=5 // pred_check
        %p202 = pneg %p201
      $region30: #{_feed_forward_impl.1} parent=5 // pred_check_branch
        %204 = sbr.rel (%p202) target = $region32
      $region31: #{_feed_forward_impl.1} parent=5 // pred_region
        // Predicated region
        $region33: #{_feed_forward_impl.1} parent=31 // pred_check
          %p205 = pneg %p38
        $region34: #{_feed_forward_impl.1} parent=31 // pred_check_branch
          %207 = sbr.rel (%p205) target = $region36
        $region35: #{_feed_forward_impl.1} parent=31 // pred_region
          %s208 = sand.u32 %s28, 1
          %s209 = scalar_lea.sflag [#allocation3], %s208
          %s210 = sand.u32 %s28, 1
          %s211 = smul.addr %s210, 24
          %s212 = scalar_lea.vmem [#allocation2], %s211
          %s214 = ssub.s32 384, 384
          %215 = vsyncadd %s209, %s214
          %s216 = smul.addr %s18, 3
          %s217 = smul.addr %s216, 128
          %s218 = scalar_lea.hbm %s0, %s217
          %s220 = sshll.u32 %s212, 4
          %s221 = int_to_ptr.vmem [resolvable:$true] %s220
          %223 = dma.hbm_to_vmem [thread:$0]  %s218, 384, %s221, %s209
        $region36: #{_feed_forward_impl.1} parent=31 // pred_fallthru
          _
      $region32: #{_feed_forward_impl.1} parent=5 // pred_fallthru
        _
      %p224 = scmp.le.s32.totalorder 1, %s18
      %p225 = scmp.lt.s32.totalorder %s18, 3
      %p226 = pnand %p224, %p225
      %p227 = pneg %p226
      // Predicated region
      $region37: #{_feed_forward_impl.1} parent=5 // pred_check
        _
      $region38: #{_feed_forward_impl.1} parent=5 // pred_check_branch
        %229 = sbr.rel (%p226) target = $region40
      $region39: #{_feed_forward_impl.1} parent=5 // pred_region
        %s230 = ssub.s32 %s18, 1
        %s231 = sand.u32 %s31, 1
        %s232 = scalar_lea.sflag [#allocation3], %s231
        %s233 = sand.u32 %s31, 1
        %s234 = smul.addr %s233, 24
        %s235 = scalar_lea.vmem [#allocation2], %s234
        // Predicated region
        $region41: #{_feed_forward_impl.1} parent=39 // pred_check
          %p236 = pneg %p44
        $region42: #{_feed_forward_impl.1} parent=39 // pred_check_branch
          %238 = sbr.rel (%p236) target = $region44
        $region43: #{_feed_forward_impl.1} parent=39 // pred_region
          %239 = dma.done %s232, 384
        $region44: #{_feed_forward_impl.1} parent=39 // pred_fallthru
          _
        // Predicated region
        $region45: #{_feed_forward_impl.1} parent=39 // pred_check
          %p240 = pneg %p65
        $region46: #{_feed_forward_impl.1} parent=39 // pred_check_branch
          %242 = sbr.rel (%p240) target = $region48
        $region47: #{_feed_forward_impl.1} parent=39 // pred_region
          %243 = dma.done [#allocation6], 36864
        $region48: #{_feed_forward_impl.1} parent=39 // pred_fallthru
          _
        // Predicated region
        $region49: #{_feed_forward_impl.1} parent=39 // pred_check
          %p244 = pneg %p107
        $region50: #{_feed_forward_impl.1} parent=39 // pred_check_branch
          %246 = sbr.rel (%p244) target = $region52
        $region51: #{_feed_forward_impl.1} parent=39 // pred_region
          %247 = dma.done [#allocation6], 36864
        $region52: #{_feed_forward_impl.1} parent=39 // pred_fallthru
          _
        %s248 = sand.u32 %s31, 1
        %s249 = scalar_lea.sflag [#allocation3], %s248
        %s250 = sand.u32 %s31, 1
        %s251 = smul.addr %s250, 24
        %s252 = scalar_lea.vmem [#allocation2], %s251
        %p253 = pneg %p44
        %p254 = pneg %p41
        %p255 = pneg %p65
        %p256 = pneg %p62
        %p257 = pneg %p86
        %p258 = pneg %p83
        %p259 = pneg %p107
        %p260 = pneg %p104
        %p261 = pneg %p128
        %p262 = pneg %p125
        %p263 = pneg %p154
        %p264 = pneg %p151
        %s265 = sand.u32 %s141, 1
        %s266 = scalar_lea.sflag [#allocation4], %s265
        %s267 = sand.u32 %s141, 1
        %s268 = smul.addr %s267, 24
        %s269 = scalar_lea.vmem [#allocation8], %s268
        %v271 = vld [vmem:[%s235] sm:$0xff]
        %v272 = vld [vmem:[%s235 + $0x8] sm:$0xff]
        %v273 = vld [vmem:[%s235 + $0x10] sm:$0xff]
        %v274 = vpack.c.bf16 %v271, %v271
        %v275 = vpack.c.bf16 %v272, %v272
        %v276 = vpack.c.bf16 %v273, %v273
        %v277 = vld [vmem:[#allocation5] sm:$0xff]
        %v278 = vld [vmem:[#allocation5 + $0x8] sm:$0xff]
        %v279 = vld [vmem:[#allocation5 + $0x10] sm:$0xff]
        %v280 = vld [vmem:[#allocation5 + $0x18] sm:$0xff]
        %v281 = vld [vmem:[#allocation5 + $0x20] sm:$0xff]
        %v282 = vld [vmem:[#allocation5 + $0x28] sm:$0xff]
        %v283 = vld [vmem:[#allocation5 + $0x30] sm:$0xff]
        %v284 = vld [vmem:[#allocation5 + $0x38] sm:$0xff]
        %v285 = vld [vmem:[#allocation5 + $0x40] sm:$0xff]
        %v286 = vld [vmem:[#allocation5 + $0x48] sm:$0xff]
        %v287 = vld [vmem:[#allocation5 + $0x50] sm:$0xff]
        %v288 = vld [vmem:[#allocation5 + $0x58] sm:$0xff]
        %v289 = vld [vmem:[#allocation5 + $0x60] sm:$0xff]
        %v290 = vld [vmem:[#allocation5 + $0x68] sm:$0xff]
        %v291 = vld [vmem:[#allocation5 + $0x70] sm:$0xff]
        %v292 = vld [vmem:[#allocation5 + $0x78] sm:$0xff]
        %v293 = vld [vmem:[#allocation5 + $0x80] sm:$0xff]
        %v294 = vld [vmem:[#allocation5 + $0x88] sm:$0xff]
        %v295 = vld [vmem:[#allocation5 + $0x90] sm:$0xff]
        %v296 = vld [vmem:[#allocation5 + $0x98] sm:$0xff]
        %v297 = vld [vmem:[#allocation5 + $0xa0] sm:$0xff]
        %v298 = vld [vmem:[#allocation5 + $0xa8] sm:$0xff]
        %v299 = vld [vmem:[#allocation5 + $0xb0] sm:$0xff]
        %v300 = vld [vmem:[#allocation5 + $0xb8] sm:$0xff]
        %v301 = vld [vmem:[#allocation5 + $0xc0] sm:$0xff]
        %v302 = vld [vmem:[#allocation5 + $0xc8] sm:$0xff]
        %v303 = vld [vmem:[#allocation5 + $0xd0] sm:$0xff]
        %v304 = vld [vmem:[#allocation5 + $0xd8] sm:$0xff]
        %v305 = vld [vmem:[#allocation5 + $0xe0] sm:$0xff]
        %v306 = vld [vmem:[#allocation5 + $0xe8] sm:$0xff]
        %v307 = vld [vmem:[#allocation5 + $0xf0] sm:$0xff]
        %v308 = vld [vmem:[#allocation5 + $0xf8] sm:$0xff]
        %v309 = vld [vmem:[#allocation5 + $0x100] sm:$0xff]
        %v310 = vld [vmem:[#allocation5 + $0x108] sm:$0xff]
        %v311 = vld [vmem:[#allocation5 + $0x110] sm:$0xff]
        %v312 = vld [vmem:[#allocation5 + $0x118] sm:$0xff]
        %v313 = vld [vmem:[#allocation5 + $0x120] sm:$0xff]
        %v314 = vld [vmem:[#allocation5 + $0x128] sm:$0xff]
        %v315 = vld [vmem:[#allocation5 + $0x130] sm:$0xff]
        %v316 = vld [vmem:[#allocation5 + $0x138] sm:$0xff]
        %v317 = vld [vmem:[#allocation5 + $0x140] sm:$0xff]
        %v318 = vld [vmem:[#allocation5 + $0x148] sm:$0xff]
        %v319 = vld [vmem:[#allocation5 + $0x150] sm:$0xff]
        %v320 = vld [vmem:[#allocation5 + $0x158] sm:$0xff]
        %v321 = vld [vmem:[#allocation5 + $0x160] sm:$0xff]
        %v322 = vld [vmem:[#allocation5 + $0x168] sm:$0xff]
        %v323 = vld [vmem:[#allocation5 + $0x170] sm:$0xff]
        %v324 = vld [vmem:[#allocation5 + $0x178] sm:$0xff]
        %v325 = vld [vmem:[#allocation5 + $0x180] sm:$0xff]
        %v326 = vld [vmem:[#allocation5 + $0x188] sm:$0xff]
        %v327 = vld [vmem:[#allocation5 + $0x190] sm:$0xff]
        %v328 = vld [vmem:[#allocation5 + $0x198] sm:$0xff]
        %v329 = vld [vmem:[#allocation5 + $0x1a0] sm:$0xff]
        %v330 = vld [vmem:[#allocation5 + $0x1a8] sm:$0xff]
        %v331 = vld [vmem:[#allocation5 + $0x1b0] sm:$0xff]
        %v332 = vld [vmem:[#allocation5 + $0x1b8] sm:$0xff]
        %v333 = vld [vmem:[#allocation5 + $0x1c0] sm:$0xff]
        %v334 = vld [vmem:[#allocation5 + $0x1c8] sm:$0xff]
        %v335 = vld [vmem:[#allocation5 + $0x1d0] sm:$0xff]
        %v336 = vld [vmem:[#allocation5 + $0x1d8] sm:$0xff]
        %v337 = vld [vmem:[#allocation5 + $0x1e0] sm:$0xff]
        %v338 = vld [vmem:[#allocation5 + $0x1e8] sm:$0xff]
        %v339 = vld [vmem:[#allocation5 + $0x1f0] sm:$0xff]
        %v340 = vld [vmem:[#allocation5 + $0x1f8] sm:$0xff]
        %v341 = vld [vmem:[#allocation5 + $0x200] sm:$0xff]
        %v342 = vld [vmem:[#allocation5 + $0x208] sm:$0xff]
        %v343 = vld [vmem:[#allocation5 + $0x210] sm:$0xff]
        %v344 = vld [vmem:[#allocation5 + $0x218] sm:$0xff]
        %v345 = vld [vmem:[#allocation5 + $0x220] sm:$0xff]
        %v346 = vld [vmem:[#allocation5 + $0x228] sm:$0xff]
        %v347 = vld [vmem:[#allocation5 + $0x230] sm:$0xff]
        %v348 = vld [vmem:[#allocation5 + $0x238] sm:$0xff]
        %v349 = vld [vmem:[#allocation5 + $0x240] sm:$0xff]
        %v350 = vld [vmem:[#allocation5 + $0x248] sm:$0xff]
        %v351 = vld [vmem:[#allocation5 + $0x250] sm:$0xff]
        %v352 = vld [vmem:[#allocation5 + $0x258] sm:$0xff]
        %v353 = vld [vmem:[#allocation5 + $0x260] sm:$0xff]
        %v354 = vld [vmem:[#allocation5 + $0x268] sm:$0xff]
        %v355 = vld [vmem:[#allocation5 + $0x270] sm:$0xff]
        %v356 = vld [vmem:[#allocation5 + $0x278] sm:$0xff]
        %v357 = vld [vmem:[#allocation5 + $0x280] sm:$0xff]
        %v358 = vld [vmem:[#allocation5 + $0x288] sm:$0xff]
        %v359 = vld [vmem:[#allocation5 + $0x290] sm:$0xff]
        %v360 = vld [vmem:[#allocation5 + $0x298] sm:$0xff]
        %v361 = vld [vmem:[#allocation5 + $0x2a0] sm:$0xff]
        %v362 = vld [vmem:[#allocation5 + $0x2a8] sm:$0xff]
        %v363 = vld [vmem:[#allocation5 + $0x2b0] sm:$0xff]
        %v364 = vld [vmem:[#allocation5 + $0x2b8] sm:$0xff]
        %v365 = vld [vmem:[#allocation5 + $0x2c0] sm:$0xff]
        %v366 = vld [vmem:[#allocation5 + $0x2c8] sm:$0xff]
        %v367 = vld [vmem:[#allocation5 + $0x2d0] sm:$0xff]
        %v368 = vld [vmem:[#allocation5 + $0x2d8] sm:$0xff]
        %v369 = vld [vmem:[#allocation5 + $0x2e0] sm:$0xff]
        %v370 = vld [vmem:[#allocation5 + $0x2e8] sm:$0xff]
        %v371 = vld [vmem:[#allocation5 + $0x2f0] sm:$0xff]
        %v372 = vld [vmem:[#allocation5 + $0x2f8] sm:$0xff]
        %v373 = vld [vmem:[#allocation5 + $0x300] sm:$0xff]
        %v374 = vld [vmem:[#allocation5 + $0x308] sm:$0xff]
        %v375 = vld [vmem:[#allocation5 + $0x310] sm:$0xff]
        %v376 = vld [vmem:[#allocation5 + $0x318] sm:$0xff]
        %v377 = vld [vmem:[#allocation5 + $0x320] sm:$0xff]
        %v378 = vld [vmem:[#allocation5 + $0x328] sm:$0xff]
        %v379 = vld [vmem:[#allocation5 + $0x330] sm:$0xff]
        %v380 = vld [vmem:[#allocation5 + $0x338] sm:$0xff]
        %v381 = vld [vmem:[#allocation5 + $0x340] sm:$0xff]
        %v382 = vld [vmem:[#allocation5 + $0x348] sm:$0xff]
        %v383 = vld [vmem:[#allocation5 + $0x350] sm:$0xff]
        %v384 = vld [vmem:[#allocation5 + $0x358] sm:$0xff]
        %v385 = vld [vmem:[#allocation5 + $0x360] sm:$0xff]
        %v386 = vld [vmem:[#allocation5 + $0x368] sm:$0xff]
        %v387 = vld [vmem:[#allocation5 + $0x370] sm:$0xff]
        %v388 = vld [vmem:[#allocation5 + $0x378] sm:$0xff]
        %v389 = vld [vmem:[#allocation5 + $0x380] sm:$0xff]
        %v390 = vld [vmem:[#allocation5 + $0x388] sm:$0xff]
        %v391 = vld [vmem:[#allocation5 + $0x390] sm:$0xff]
        %v392 = vld [vmem:[#allocation5 + $0x398] sm:$0xff]
        %v393 = vld [vmem:[#allocation5 + $0x3a0] sm:$0xff]
        %v394 = vld [vmem:[#allocation5 + $0x3a8] sm:$0xff]
        %v395 = vld [vmem:[#allocation5 + $0x3b0] sm:$0xff]
        %v396 = vld [vmem:[#allocation5 + $0x3b8] sm:$0xff]
        %v397 = vld [vmem:[#allocation5 + $0x3c0] sm:$0xff]
        %v398 = vld [vmem:[#allocation5 + $0x3c8] sm:$0xff]
        %v399 = vld [vmem:[#allocation5 + $0x3d0] sm:$0xff]
        %v400 = vld [vmem:[#allocation5 + $0x3d8] sm:$0xff]
        %v401 = vld [vmem:[#allocation5 + $0x3e0] sm:$0xff]
        %v402 = vld [vmem:[#allocation5 + $0x3e8] sm:$0xff]
        %v403 = vld [vmem:[#allocation5 + $0x3f0] sm:$0xff]
        %v404 = vld [vmem:[#allocation5 + $0x3f8] sm:$0xff]
        %v405 = vld [vmem:[#allocation5 + $0x400] sm:$0xff]
        %v406 = vld [vmem:[#allocation5 + $0x408] sm:$0xff]
        %v407 = vld [vmem:[#allocation5 + $0x410] sm:$0xff]
        %v408 = vld [vmem:[#allocation5 + $0x418] sm:$0xff]
        %v409 = vld [vmem:[#allocation5 + $0x420] sm:$0xff]
        %v410 = vld [vmem:[#allocation5 + $0x428] sm:$0xff]
        %v411 = vld [vmem:[#allocation5 + $0x430] sm:$0xff]
        %v412 = vld [vmem:[#allocation5 + $0x438] sm:$0xff]
        %v413 = vld [vmem:[#allocation5 + $0x440] sm:$0xff]
        %v414 = vld [vmem:[#allocation5 + $0x448] sm:$0xff]
        %v415 = vld [vmem:[#allocation5 + $0x450] sm:$0xff]
        %v416 = vld [vmem:[#allocation5 + $0x458] sm:$0xff]
        %v417 = vld [vmem:[#allocation5 + $0x460] sm:$0xff]
        %v418 = vld [vmem:[#allocation5 + $0x468] sm:$0xff]
        %v419 = vld [vmem:[#allocation5 + $0x470] sm:$0xff]
        %v420 = vld [vmem:[#allocation5 + $0x478] sm:$0xff]
        %v421 = vld [vmem:[#allocation5 + $0x480] sm:$0xff]
        %v422 = vld [vmem:[#allocation5 + $0x488] sm:$0xff]
        %v423 = vld [vmem:[#allocation5 + $0x490] sm:$0xff]
        %v424 = vld [vmem:[#allocation5 + $0x498] sm:$0xff]
        %v425 = vld [vmem:[#allocation5 + $0x4a0] sm:$0xff]
        %v426 = vld [vmem:[#allocation5 + $0x4a8] sm:$0xff]
        %v427 = vld [vmem:[#allocation5 + $0x4b0] sm:$0xff]
        %v428 = vld [vmem:[#allocation5 + $0x4b8] sm:$0xff]
        %v429 = vld [vmem:[#allocation5 + $0x4c0] sm:$0xff]
        %v430 = vld [vmem:[#allocation5 + $0x4c8] sm:$0xff]
        %v431 = vld [vmem:[#allocation5 + $0x4d0] sm:$0xff]
        %v432 = vld [vmem:[#allocation5 + $0x4d8] sm:$0xff]
        %v433 = vld [vmem:[#allocation5 + $0x4e0] sm:$0xff]
        %v434 = vld [vmem:[#allocation5 + $0x4e8] sm:$0xff]
        %v435 = vld [vmem:[#allocation5 + $0x4f0] sm:$0xff]
        %v436 = vld [vmem:[#allocation5 + $0x4f8] sm:$0xff]
        %v437 = vld [vmem:[#allocation5 + $0x500] sm:$0xff]
        %v438 = vld [vmem:[#allocation5 + $0x508] sm:$0xff]
        %v439 = vld [vmem:[#allocation5 + $0x510] sm:$0xff]
        %v440 = vld [vmem:[#allocation5 + $0x518] sm:$0xff]
        %v441 = vld [vmem:[#allocation5 + $0x520] sm:$0xff]
        %v442 = vld [vmem:[#allocation5 + $0x528] sm:$0xff]
        %v443 = vld [vmem:[#allocation5 + $0x530] sm:$0xff]
        %v444 = vld [vmem:[#allocation5 + $0x538] sm:$0xff]
        %v445 = vld [vmem:[#allocation5 + $0x540] sm:$0xff]
        %v446 = vld [vmem:[#allocation5 + $0x548] sm:$0xff]
        %v447 = vld [vmem:[#allocation5 + $0x550] sm:$0xff]
        %v448 = vld [vmem:[#allocation5 + $0x558] sm:$0xff]
        %v449 = vld [vmem:[#allocation5 + $0x560] sm:$0xff]
        %v450 = vld [vmem:[#allocation5 + $0x568] sm:$0xff]
        %v451 = vld [vmem:[#allocation5 + $0x570] sm:$0xff]
        %v452 = vld [vmem:[#allocation5 + $0x578] sm:$0xff]
        %v453 = vld [vmem:[#allocation5 + $0x580] sm:$0xff]
        %v454 = vld [vmem:[#allocation5 + $0x588] sm:$0xff]
        %v455 = vld [vmem:[#allocation5 + $0x590] sm:$0xff]
        %v456 = vld [vmem:[#allocation5 + $0x598] sm:$0xff]
        %v457 = vld [vmem:[#allocation5 + $0x5a0] sm:$0xff]
        %v458 = vld [vmem:[#allocation5 + $0x5a8] sm:$0xff]
        %v459 = vld [vmem:[#allocation5 + $0x5b0] sm:$0xff]
        %v460 = vld [vmem:[#allocation5 + $0x5b8] sm:$0xff]
        %v461 = vld [vmem:[#allocation5 + $0x5c0] sm:$0xff]
        %v462 = vld [vmem:[#allocation5 + $0x5c8] sm:$0xff]
        %v463 = vld [vmem:[#allocation5 + $0x5d0] sm:$0xff]
        %v464 = vld [vmem:[#allocation5 + $0x5d8] sm:$0xff]
        %v465 = vld [vmem:[#allocation5 + $0x5e0] sm:$0xff]
        %v466 = vld [vmem:[#allocation5 + $0x5e8] sm:$0xff]
        %v467 = vld [vmem:[#allocation5 + $0x5f0] sm:$0xff]
        %v468 = vld [vmem:[#allocation5 + $0x5f8] sm:$0xff]
        %v469 = vld [vmem:[#allocation5 + $0x600] sm:$0xff]
        %v470 = vld [vmem:[#allocation5 + $0x608] sm:$0xff]
        %v471 = vld [vmem:[#allocation5 + $0x610] sm:$0xff]
        %v472 = vld [vmem:[#allocation5 + $0x618] sm:$0xff]
        %v473 = vld [vmem:[#allocation5 + $0x620] sm:$0xff]
        %v474 = vld [vmem:[#allocation5 + $0x628] sm:$0xff]
        %v475 = vld [vmem:[#allocation5 + $0x630] sm:$0xff]
        %v476 = vld [vmem:[#allocation5 + $0x638] sm:$0xff]
        %v477 = vld [vmem:[#allocation5 + $0x640] sm:$0xff]
        %v478 = vld [vmem:[#allocation5 + $0x648] sm:$0xff]
        %v479 = vld [vmem:[#allocation5 + $0x650] sm:$0xff]
        %v480 = vld [vmem:[#allocation5 + $0x658] sm:$0xff]
        %v481 = vld [vmem:[#allocation5 + $0x660] sm:$0xff]
        %v482 = vld [vmem:[#allocation5 + $0x668] sm:$0xff]
        %v483 = vld [vmem:[#allocation5 + $0x670] sm:$0xff]
        %v484 = vld [vmem:[#allocation5 + $0x678] sm:$0xff]
        %v485 = vld [vmem:[#allocation5 + $0x680] sm:$0xff]
        %v486 = vld [vmem:[#allocation5 + $0x688] sm:$0xff]
        %v487 = vld [vmem:[#allocation5 + $0x690] sm:$0xff]
        %v488 = vld [vmem:[#allocation5 + $0x698] sm:$0xff]
        %v489 = vld [vmem:[#allocation5 + $0x6a0] sm:$0xff]
        %v490 = vld [vmem:[#allocation5 + $0x6a8] sm:$0xff]
        %v491 = vld [vmem:[#allocation5 + $0x6b0] sm:$0xff]
        %v492 = vld [vmem:[#allocation5 + $0x6b8] sm:$0xff]
        %v493 = vld [vmem:[#allocation5 + $0x6c0] sm:$0xff]
        %v494 = vld [vmem:[#allocation5 + $0x6c8] sm:$0xff]
        %v495 = vld [vmem:[#allocation5 + $0x6d0] sm:$0xff]
        %v496 = vld [vmem:[#allocation5 + $0x6d8] sm:$0xff]
        %v497 = vld [vmem:[#allocation5 + $0x6e0] sm:$0xff]
        %v498 = vld [vmem:[#allocation5 + $0x6e8] sm:$0xff]
        %v499 = vld [vmem:[#allocation5 + $0x6f0] sm:$0xff]
        %v500 = vld [vmem:[#allocation5 + $0x6f8] sm:$0xff]
        %v501 = vld [vmem:[#allocation5 + $0x700] sm:$0xff]
        %v502 = vld [vmem:[#allocation5 + $0x708] sm:$0xff]
        %v503 = vld [vmem:[#allocation5 + $0x710] sm:$0xff]
        %v504 = vld [vmem:[#allocation5 + $0x718] sm:$0xff]
        %v505 = vld [vmem:[#allocation5 + $0x720] sm:$0xff]
        %v506 = vld [vmem:[#allocation5 + $0x728] sm:$0xff]
        %v507 = vld [vmem:[#allocation5 + $0x730] sm:$0xff]
        %v508 = vld [vmem:[#allocation5 + $0x738] sm:$0xff]
        %v509 = vld [vmem:[#allocation5 + $0x740] sm:$0xff]
        %v510 = vld [vmem:[#allocation5 + $0x748] sm:$0xff]
        %v511 = vld [vmem:[#allocation5 + $0x750] sm:$0xff]
        %v512 = vld [vmem:[#allocation5 + $0x758] sm:$0xff]
        %v513 = vld [vmem:[#allocation5 + $0x760] sm:$0xff]
        %v514 = vld [vmem:[#allocation5 + $0x768] sm:$0xff]
        %v515 = vld [vmem:[#allocation5 + $0x770] sm:$0xff]
        %v516 = vld [vmem:[#allocation5 + $0x778] sm:$0xff]
        %v517 = vld [vmem:[#allocation5 + $0x780] sm:$0xff]
        %v518 = vld [vmem:[#allocation5 + $0x788] sm:$0xff]
        %v519 = vld [vmem:[#allocation5 + $0x790] sm:$0xff]
        %v520 = vld [vmem:[#allocation5 + $0x798] sm:$0xff]
        %v521 = vld [vmem:[#allocation5 + $0x7a0] sm:$0xff]
        %v522 = vld [vmem:[#allocation5 + $0x7a8] sm:$0xff]
        %v523 = vld [vmem:[#allocation5 + $0x7b0] sm:$0xff]
        %v524 = vld [vmem:[#allocation5 + $0x7b8] sm:$0xff]
        %v525 = vld [vmem:[#allocation5 + $0x7c0] sm:$0xff]
        %v526 = vld [vmem:[#allocation5 + $0x7c8] sm:$0xff]
        %v527 = vld [vmem:[#allocation5 + $0x7d0] sm:$0xff]
        %v528 = vld [vmem:[#allocation5 + $0x7d8] sm:$0xff]
        %v529 = vld [vmem:[#allocation5 + $0x7e0] sm:$0xff]
        %v530 = vld [vmem:[#allocation5 + $0x7e8] sm:$0xff]
        %v531 = vld [vmem:[#allocation5 + $0x7f0] sm:$0xff]
        %v532 = vld [vmem:[#allocation5 + $0x7f8] sm:$0xff]
        %v533 = vld [vmem:[#allocation5 + $0x800] sm:$0xff]
        %v534 = vld [vmem:[#allocation5 + $0x808] sm:$0xff]
        %v535 = vld [vmem:[#allocation5 + $0x810] sm:$0xff]
        %v536 = vld [vmem:[#allocation5 + $0x818] sm:$0xff]
        %v537 = vld [vmem:[#allocation5 + $0x820] sm:$0xff]
        %v538 = vld [vmem:[#allocation5 + $0x828] sm:$0xff]
        %v539 = vld [vmem:[#allocation5 + $0x830] sm:$0xff]
        %v540 = vld [vmem:[#allocation5 + $0x838] sm:$0xff]
        %v541 = vld [vmem:[#allocation5 + $0x840] sm:$0xff]
        %v542 = vld [vmem:[#allocation5 + $0x848] sm:$0xff]
        %v543 = vld [vmem:[#allocation5 + $0x850] sm:$0xff]
        %v544 = vld [vmem:[#allocation5 + $0x858] sm:$0xff]
        %v545 = vld [vmem:[#allocation5 + $0x860] sm:$0xff]
        %v546 = vld [vmem:[#allocation5 + $0x868] sm:$0xff]
        %v547 = vld [vmem:[#allocation5 + $0x870] sm:$0xff]
        %v548 = vld [vmem:[#allocation5 + $0x878] sm:$0xff]
        %v549 = vld [vmem:[#allocation5 + $0x880] sm:$0xff]
        %v550 = vld [vmem:[#allocation5 + $0x888] sm:$0xff]
        %v551 = vld [vmem:[#allocation5 + $0x890] sm:$0xff]
        %v552 = vld [vmem:[#allocation5 + $0x898] sm:$0xff]
        %v553 = vld [vmem:[#allocation5 + $0x8a0] sm:$0xff]
        %v554 = vld [vmem:[#allocation5 + $0x8a8] sm:$0xff]
        %v555 = vld [vmem:[#allocation5 + $0x8b0] sm:$0xff]
        %v556 = vld [vmem:[#allocation5 + $0x8b8] sm:$0xff]
        %v557 = vld [vmem:[#allocation5 + $0x8c0] sm:$0xff]
        %v558 = vld [vmem:[#allocation5 + $0x8c8] sm:$0xff]
        %v559 = vld [vmem:[#allocation5 + $0x8d0] sm:$0xff]
        %v560 = vld [vmem:[#allocation5 + $0x8d8] sm:$0xff]
        %v561 = vld [vmem:[#allocation5 + $0x8e0] sm:$0xff]
        %v562 = vld [vmem:[#allocation5 + $0x8e8] sm:$0xff]
        %v563 = vld [vmem:[#allocation5 + $0x8f0] sm:$0xff]
        %v564 = vld [vmem:[#allocation5 + $0x8f8] sm:$0xff]
        %v565 = vld [vmem:[%s2] sm:$0xff]
        %v566 = vld [vmem:[%s2 + $0x8] sm:$0xf]
        %v569 = vlaneseq
        %v570 = vshrl.u32 %v569, 7
        %v571 = vsub.s32 0, %v570
        %v572 = vrot.slane %v565, %v571
        %v573 = vlaneseq
        %v574 = vshrl.u32 %v573, 7
        %v575 = vsub.s32 1, %v574
        %v576 = vrot.slane %v565, %v575
        %v577 = vlaneseq
        %v578 = vshrl.u32 %v577, 7
        %v579 = vsub.s32 2, %v578
        %v580 = vrot.slane %v565, %v579
        %v581 = vlaneseq
        %v582 = vshrl.u32 %v581, 7
        %v583 = vsub.s32 3, %v582
        %v584 = vrot.slane %v565, %v583
        %v585 = vlaneseq
        %v586 = vshrl.u32 %v585, 7
        %v587 = vsub.s32 4, %v586
        %v588 = vrot.slane %v565, %v587
        %v589 = vlaneseq
        %v590 = vshrl.u32 %v589, 7
        %v591 = vsub.s32 5, %v590
        %v592 = vrot.slane %v565, %v591
        %v593 = vlaneseq
        %v594 = vshrl.u32 %v593, 7
        %v595 = vsub.s32 6, %v594
        %v596 = vrot.slane %v565, %v595
        %v597 = vlaneseq
        %v598 = vshrl.u32 %v597, 7
        %v599 = vsub.s32 7, %v598
        %v600 = vrot.slane %v565, %v599
        %v601 = vlaneseq
        %v602 = vshrl.u32 %v601, 7
        %v603 = vsub.s32 0, %v602
        %v604 = vrot.slane %v566, %v603
        %v605 = vlaneseq
        %v606 = vshrl.u32 %v605, 7
        %v607 = vsub.s32 1, %v606
        %v608 = vrot.slane %v566, %v607
        %v609 = vlaneseq
        %v610 = vshrl.u32 %v609, 7
        %v611 = vsub.s32 2, %v610
        %v612 = vrot.slane %v566, %v611
        %v613 = vlaneseq
        %v614 = vshrl.u32 %v613, 7
        %v615 = vsub.s32 3, %v614
        %v616 = vrot.slane %v566, %v615
        %v917 = vunpack.c.l.b16 %v277
        %v918 = vunpack.c.h.b16 %v277
        %v919 = vunpack.c.l.b16 %v278
        %v920 = vunpack.c.h.b16 %v278
        %v921 = vunpack.c.l.b16 %v279
        %v922 = vunpack.c.h.b16 %v279
        %v923 = vunpack.c.l.b16 %v280
        %v924 = vunpack.c.h.b16 %v280
        %v925 = vunpack.c.l.b16 %v281
        %v926 = vunpack.c.h.b16 %v281
        %v927 = vunpack.c.l.b16 %v282
        %v928 = vunpack.c.h.b16 %v282
        %v929 = vunpack.c.l.b16 %v283
        %v930 = vunpack.c.h.b16 %v283
        %v931 = vunpack.c.l.b16 %v284
        %v932 = vunpack.c.h.b16 %v284
        %v933 = vunpack.c.l.b16 %v285
        %v934 = vunpack.c.h.b16 %v285
        %v935 = vunpack.c.l.b16 %v286
        %v936 = vunpack.c.h.b16 %v286
        %v937 = vunpack.c.l.b16 %v287
        %v938 = vunpack.c.h.b16 %v287
        %v939 = vunpack.c.l.b16 %v288
        %v940 = vunpack.c.h.b16 %v288
        %v941 = vunpack.c.l.b16 %v289
        %v942 = vunpack.c.h.b16 %v289
        %v943 = vunpack.c.l.b16 %v290
        %v944 = vunpack.c.h.b16 %v290
        %v945 = vunpack.c.l.b16 %v291
        %v946 = vunpack.c.h.b16 %v291
        %v947 = vunpack.c.l.b16 %v292
        %v948 = vunpack.c.h.b16 %v292
        %v949 = vunpack.c.l.b16 %v293
        %v950 = vunpack.c.h.b16 %v293
        %v951 = vunpack.c.l.b16 %v294
        %v952 = vunpack.c.h.b16 %v294
        %v953 = vunpack.c.l.b16 %v295
        %v954 = vunpack.c.h.b16 %v295
        %v955 = vunpack.c.l.b16 %v296
        %v956 = vunpack.c.h.b16 %v296
        %v957 = vunpack.c.l.b16 %v297
        %v958 = vunpack.c.h.b16 %v297
        %v959 = vunpack.c.l.b16 %v298
        %v960 = vunpack.c.h.b16 %v298
        %v961 = vunpack.c.l.b16 %v299
        %v962 = vunpack.c.h.b16 %v299
        %v963 = vunpack.c.l.b16 %v300
        %v964 = vunpack.c.h.b16 %v300
        %v965 = vunpack.c.l.b16 %v301
        %v966 = vunpack.c.h.b16 %v301
        %v967 = vunpack.c.l.b16 %v302
        %v968 = vunpack.c.h.b16 %v302
        %v969 = vunpack.c.l.b16 %v303
        %v970 = vunpack.c.h.b16 %v303
        %v971 = vunpack.c.l.b16 %v304
        %v972 = vunpack.c.h.b16 %v304
        %v973 = vunpack.c.l.b16 %v305
        %v974 = vunpack.c.h.b16 %v305
        %v975 = vunpack.c.l.b16 %v306
        %v976 = vunpack.c.h.b16 %v306
        %v977 = vunpack.c.l.b16 %v307
        %v978 = vunpack.c.h.b16 %v307
        %v979 = vunpack.c.l.b16 %v308
        %v980 = vunpack.c.h.b16 %v308
        %v981 = vunpack.c.l.b16 %v309
        %v982 = vunpack.c.h.b16 %v309
        %v983 = vunpack.c.l.b16 %v310
        %v984 = vunpack.c.h.b16 %v310
        %v985 = vunpack.c.l.b16 %v311
        %v986 = vunpack.c.h.b16 %v311
        %v987 = vunpack.c.l.b16 %v312
        %v988 = vunpack.c.h.b16 %v312
        %v989 = vunpack.c.l.b16 %v313
        %v990 = vunpack.c.h.b16 %v313
        %v991 = vunpack.c.l.b16 %v314
        %v992 = vunpack.c.h.b16 %v314
        %v993 = vunpack.c.l.b16 %v315
        %v994 = vunpack.c.h.b16 %v315
        %v995 = vunpack.c.l.b16 %v316
        %v996 = vunpack.c.h.b16 %v316
        %v997 = vunpack.c.l.b16 %v317
        %v998 = vunpack.c.h.b16 %v317
        %v999 = vunpack.c.l.b16 %v318
        %v1000 = vunpack.c.h.b16 %v318
        %v1001 = vunpack.c.l.b16 %v319
        %v1002 = vunpack.c.h.b16 %v319
        %v1003 = vunpack.c.l.b16 %v320
        %v1004 = vunpack.c.h.b16 %v320
        %v1005 = vunpack.c.l.b16 %v321
        %v1006 = vunpack.c.h.b16 %v321
        %v1007 = vunpack.c.l.b16 %v322
        %v1008 = vunpack.c.h.b16 %v322
        %v1009 = vunpack.c.l.b16 %v323
        %v1010 = vunpack.c.h.b16 %v323
        %v1011 = vunpack.c.l.b16 %v324
        %v1012 = vunpack.c.h.b16 %v324
        %v1013 = vunpack.c.l.b16 %v325
        %v1014 = vunpack.c.h.b16 %v325
        %v1015 = vunpack.c.l.b16 %v326
        %v1016 = vunpack.c.h.b16 %v326
        %v1017 = vunpack.c.l.b16 %v327
        %v1018 = vunpack.c.h.b16 %v327
        %v1019 = vunpack.c.l.b16 %v328
        %v1020 = vunpack.c.h.b16 %v328
        %v1021 = vunpack.c.l.b16 %v329
        %v1022 = vunpack.c.h.b16 %v329
        %v1023 = vunpack.c.l.b16 %v330
        %v1024 = vunpack.c.h.b16 %v330
        %v1025 = vunpack.c.l.b16 %v331
        %v1026 = vunpack.c.h.b16 %v331
        %v1027 = vunpack.c.l.b16 %v332
        %v1028 = vunpack.c.h.b16 %v332
        %v1029 = vunpack.c.l.b16 %v333
        %v1030 = vunpack.c.h.b16 %v333
        %v1031 = vunpack.c.l.b16 %v334
        %v1032 = vunpack.c.h.b16 %v334
        %v1033 = vunpack.c.l.b16 %v335
        %v1034 = vunpack.c.h.b16 %v335
        %v1035 = vunpack.c.l.b16 %v336
        %v1036 = vunpack.c.h.b16 %v336
        %v1037 = vunpack.c.l.b16 %v337
        %v1038 = vunpack.c.h.b16 %v337
        %v1039 = vunpack.c.l.b16 %v338
        %v1040 = vunpack.c.h.b16 %v338
        %v1041 = vunpack.c.l.b16 %v339
        %v1042 = vunpack.c.h.b16 %v339
        %v1043 = vunpack.c.l.b16 %v340
        %v1044 = vunpack.c.h.b16 %v340
        %v1045 = vunpack.c.l.b16 %v341
        %v1046 = vunpack.c.h.b16 %v341
        %v1047 = vunpack.c.l.b16 %v342
        %v1048 = vunpack.c.h.b16 %v342
        %v1049 = vunpack.c.l.b16 %v343
        %v1050 = vunpack.c.h.b16 %v343
        %v1051 = vunpack.c.l.b16 %v344
        %v1052 = vunpack.c.h.b16 %v344
        %v1053 = vunpack.c.l.b16 %v345
        %v1054 = vunpack.c.h.b16 %v345
        %v1055 = vunpack.c.l.b16 %v346
        %v1056 = vunpack.c.h.b16 %v346
        %v1057 = vunpack.c.l.b16 %v347
        %v1058 = vunpack.c.h.b16 %v347
        %v1059 = vunpack.c.l.b16 %v348
        %v1060 = vunpack.c.h.b16 %v348
        %v1061 = vunpack.c.l.b16 %v349
        %v1062 = vunpack.c.h.b16 %v349
        %v1063 = vunpack.c.l.b16 %v350
        %v1064 = vunpack.c.h.b16 %v350
        %v1065 = vunpack.c.l.b16 %v351
        %v1066 = vunpack.c.h.b16 %v351
        %v1067 = vunpack.c.l.b16 %v352
        %v1068 = vunpack.c.h.b16 %v352
        %v1069 = vunpack.c.l.b16 %v353
        %v1070 = vunpack.c.h.b16 %v353
        %v1071 = vunpack.c.l.b16 %v354
        %v1072 = vunpack.c.h.b16 %v354
        %v1073 = vunpack.c.l.b16 %v355
        %v1074 = vunpack.c.h.b16 %v355
        %v1075 = vunpack.c.l.b16 %v356
        %v1076 = vunpack.c.h.b16 %v356
        %v1077 = vunpack.c.l.b16 %v357
        %v1078 = vunpack.c.h.b16 %v357
        %v1079 = vunpack.c.l.b16 %v358
        %v1080 = vunpack.c.h.b16 %v358
        %v1081 = vunpack.c.l.b16 %v359
        %v1082 = vunpack.c.h.b16 %v359
        %v1083 = vunpack.c.l.b16 %v360
        %v1084 = vunpack.c.h.b16 %v360
        %v1085 = vunpack.c.l.b16 %v361
        %v1086 = vunpack.c.h.b16 %v361
        %v1087 = vunpack.c.l.b16 %v362
        %v1088 = vunpack.c.h.b16 %v362
        %v1089 = vunpack.c.l.b16 %v363
        %v1090 = vunpack.c.h.b16 %v363
        %v1091 = vunpack.c.l.b16 %v364
        %v1092 = vunpack.c.h.b16 %v364
        %v1093 = vunpack.c.l.b16 %v365
        %v1094 = vunpack.c.h.b16 %v365
        %v1095 = vunpack.c.l.b16 %v366
        %v1096 = vunpack.c.h.b16 %v366
        %v1097 = vunpack.c.l.b16 %v367
        %v1098 = vunpack.c.h.b16 %v367
        %v1099 = vunpack.c.l.b16 %v368
        %v1100 = vunpack.c.h.b16 %v368
        %v1101 = vunpack.c.l.b16 %v369
        %v1102 = vunpack.c.h.b16 %v369
        %v1103 = vunpack.c.l.b16 %v370
        %v1104 = vunpack.c.h.b16 %v370
        %v1105 = vunpack.c.l.b16 %v371
        %v1106 = vunpack.c.h.b16 %v371
        %v1107 = vunpack.c.l.b16 %v372
        %v1108 = vunpack.c.h.b16 %v372
        %v1109 = vunpack.c.l.b16 %v373
        %v1110 = vunpack.c.h.b16 %v373
        %v1111 = vunpack.c.l.b16 %v374
        %v1112 = vunpack.c.h.b16 %v374
        %v1113 = vunpack.c.l.b16 %v375
        %v1114 = vunpack.c.h.b16 %v375
        %v1115 = vunpack.c.l.b16 %v376
        %v1116 = vunpack.c.h.b16 %v376
        %v1117 = vunpack.c.l.b16 %v377
        %v1118 = vunpack.c.h.b16 %v377
        %v1119 = vunpack.c.l.b16 %v378
        %v1120 = vunpack.c.h.b16 %v378
        %v1121 = vunpack.c.l.b16 %v379
        %v1122 = vunpack.c.h.b16 %v379
        %v1123 = vunpack.c.l.b16 %v380
        %v1124 = vunpack.c.h.b16 %v380
        %v1125 = vunpack.c.l.b16 %v381
        %v1126 = vunpack.c.h.b16 %v381
        %v1127 = vunpack.c.l.b16 %v382
        %v1128 = vunpack.c.h.b16 %v382
        %v1129 = vunpack.c.l.b16 %v383
        %v1130 = vunpack.c.h.b16 %v383
        %v1131 = vunpack.c.l.b16 %v384
        %v1132 = vunpack.c.h.b16 %v384
        %v1133 = vunpack.c.l.b16 %v385
        %v1134 = vunpack.c.h.b16 %v385
        %v1135 = vunpack.c.l.b16 %v386
        %v1136 = vunpack.c.h.b16 %v386
        %v1137 = vunpack.c.l.b16 %v387
        %v1138 = vunpack.c.h.b16 %v387
        %v1139 = vunpack.c.l.b16 %v388
        %v1140 = vunpack.c.h.b16 %v388
        %v1141 = vunpack.c.l.b16 %v389
        %v1142 = vunpack.c.h.b16 %v389
        %v1143 = vunpack.c.l.b16 %v390
        %v1144 = vunpack.c.h.b16 %v390
        %v1145 = vunpack.c.l.b16 %v391
        %v1146 = vunpack.c.h.b16 %v391
        %v1147 = vunpack.c.l.b16 %v392
        %v1148 = vunpack.c.h.b16 %v392
        %v1149 = vunpack.c.l.b16 %v393
        %v1150 = vunpack.c.h.b16 %v393
        %v1151 = vunpack.c.l.b16 %v394
        %v1152 = vunpack.c.h.b16 %v394
        %v1153 = vunpack.c.l.b16 %v395
        %v1154 = vunpack.c.h.b16 %v395
        %v1155 = vunpack.c.l.b16 %v396
        %v1156 = vunpack.c.h.b16 %v396
        %v1157 = vunpack.c.l.b16 %v397
        %v1158 = vunpack.c.h.b16 %v397
        %v1159 = vunpack.c.l.b16 %v398
        %v1160 = vunpack.c.h.b16 %v398
        %v1161 = vunpack.c.l.b16 %v399
        %v1162 = vunpack.c.h.b16 %v399
        %v1163 = vunpack.c.l.b16 %v400
        %v1164 = vunpack.c.h.b16 %v400
        %v1165 = vunpack.c.l.b16 %v401
        %v1166 = vunpack.c.h.b16 %v401
        %v1167 = vunpack.c.l.b16 %v402
        %v1168 = vunpack.c.h.b16 %v402
        %v1169 = vunpack.c.l.b16 %v403
        %v1170 = vunpack.c.h.b16 %v403
        %v1171 = vunpack.c.l.b16 %v404
        %v1172 = vunpack.c.h.b16 %v404
        %v1173 = vunpack.c.l.b16 %v405
        %v1174 = vunpack.c.h.b16 %v405
        %v1175 = vunpack.c.l.b16 %v406
        %v1176 = vunpack.c.h.b16 %v406
        %v1177 = vunpack.c.l.b16 %v407
        %v1178 = vunpack.c.h.b16 %v407
        %v1179 = vunpack.c.l.b16 %v408
        %v1180 = vunpack.c.h.b16 %v408
        %v1181 = vunpack.c.l.b16 %v409
        %v1182 = vunpack.c.h.b16 %v409
        %v1183 = vunpack.c.l.b16 %v410
        %v1184 = vunpack.c.h.b16 %v410
        %v1185 = vunpack.c.l.b16 %v411
        %v1186 = vunpack.c.h.b16 %v411
        %v1187 = vunpack.c.l.b16 %v412
        %v1188 = vunpack.c.h.b16 %v412
        %v1189 = vunpack.c.l.b16 %v413
        %v1190 = vunpack.c.h.b16 %v413
        %v1191 = vunpack.c.l.b16 %v414
        %v1192 = vunpack.c.h.b16 %v414
        %v1193 = vunpack.c.l.b16 %v415
        %v1194 = vunpack.c.h.b16 %v415
        %v1195 = vunpack.c.l.b16 %v416
        %v1196 = vunpack.c.h.b16 %v416
        %v1197 = vunpack.c.l.b16 %v417
        %v1198 = vunpack.c.h.b16 %v417
        %v1199 = vunpack.c.l.b16 %v418
        %v1200 = vunpack.c.h.b16 %v418
        %v1201 = vunpack.c.l.b16 %v419
        %v1202 = vunpack.c.h.b16 %v419
        %v1203 = vunpack.c.l.b16 %v420
        %v1204 = vunpack.c.h.b16 %v420
        %v1205 = vunpack.c.l.b16 %v421
        %v1206 = vunpack.c.h.b16 %v421
        %v1207 = vunpack.c.l.b16 %v422
        %v1208 = vunpack.c.h.b16 %v422
        %v1209 = vunpack.c.l.b16 %v423
        %v1210 = vunpack.c.h.b16 %v423
        %v1211 = vunpack.c.l.b16 %v424
        %v1212 = vunpack.c.h.b16 %v424
        %v1213 = vunpack.c.l.b16 %v425
        %v1214 = vunpack.c.h.b16 %v425
        %v1215 = vunpack.c.l.b16 %v426
        %v1216 = vunpack.c.h.b16 %v426
        %v1217 = vunpack.c.l.b16 %v427
        %v1218 = vunpack.c.h.b16 %v427
        %v1219 = vunpack.c.l.b16 %v428
        %v1220 = vunpack.c.h.b16 %v428
        %v1221 = vunpack.c.l.b16 %v429
        %v1222 = vunpack.c.h.b16 %v429
        %v1223 = vunpack.c.l.b16 %v430
        %v1224 = vunpack.c.h.b16 %v430
        %v1225 = vunpack.c.l.b16 %v431
        %v1226 = vunpack.c.h.b16 %v431
        %v1227 = vunpack.c.l.b16 %v432
        %v1228 = vunpack.c.h.b16 %v432
        %v1229 = vunpack.c.l.b16 %v433
        %v1230 = vunpack.c.h.b16 %v433
        %v1231 = vunpack.c.l.b16 %v434
        %v1232 = vunpack.c.h.b16 %v434
        %v1233 = vunpack.c.l.b16 %v435
        %v1234 = vunpack.c.h.b16 %v435
        %v1235 = vunpack.c.l.b16 %v436
        %v1236 = vunpack.c.h.b16 %v436
        %v1237 = vunpack.c.l.b16 %v437
        %v1238 = vunpack.c.h.b16 %v437
        %v1239 = vunpack.c.l.b16 %v438
        %v1240 = vunpack.c.h.b16 %v438
        %v1241 = vunpack.c.l.b16 %v439
        %v1242 = vunpack.c.h.b16 %v439
        %v1243 = vunpack.c.l.b16 %v440
        %v1244 = vunpack.c.h.b16 %v440
        %v1245 = vunpack.c.l.b16 %v441
        %v1246 = vunpack.c.h.b16 %v441
        %v1247 = vunpack.c.l.b16 %v442
        %v1248 = vunpack.c.h.b16 %v442
        %v1249 = vunpack.c.l.b16 %v443
        %v1250 = vunpack.c.h.b16 %v443
        %v1251 = vunpack.c.l.b16 %v444
        %v1252 = vunpack.c.h.b16 %v444
        %v1253 = vunpack.c.l.b16 %v445
        %v1254 = vunpack.c.h.b16 %v445
        %v1255 = vunpack.c.l.b16 %v446
        %v1256 = vunpack.c.h.b16 %v446
        %v1257 = vunpack.c.l.b16 %v447
        %v1258 = vunpack.c.h.b16 %v447
        %v1259 = vunpack.c.l.b16 %v448
        %v1260 = vunpack.c.h.b16 %v448
        %v1261 = vunpack.c.l.b16 %v449
        %v1262 = vunpack.c.h.b16 %v449
        %v1263 = vunpack.c.l.b16 %v450
        %v1264 = vunpack.c.h.b16 %v450
        %v1265 = vunpack.c.l.b16 %v451
        %v1266 = vunpack.c.h.b16 %v451
        %v1267 = vunpack.c.l.b16 %v452
        %v1268 = vunpack.c.h.b16 %v452
        %v1269 = vunpack.c.l.b16 %v453
        %v1270 = vunpack.c.h.b16 %v453
        %v1271 = vunpack.c.l.b16 %v454
        %v1272 = vunpack.c.h.b16 %v454
        %v1273 = vunpack.c.l.b16 %v455
        %v1274 = vunpack.c.h.b16 %v455
        %v1275 = vunpack.c.l.b16 %v456
        %v1276 = vunpack.c.h.b16 %v456
        %v1277 = vunpack.c.l.b16 %v457
        %v1278 = vunpack.c.h.b16 %v457
        %v1279 = vunpack.c.l.b16 %v458
        %v1280 = vunpack.c.h.b16 %v458
        %v1281 = vunpack.c.l.b16 %v459
        %v1282 = vunpack.c.h.b16 %v459
        %v1283 = vunpack.c.l.b16 %v460
        %v1284 = vunpack.c.h.b16 %v460
        %v1285 = vunpack.c.l.b16 %v461
        %v1286 = vunpack.c.h.b16 %v461
        %v1287 = vunpack.c.l.b16 %v462
        %v1288 = vunpack.c.h.b16 %v462
        %v1289 = vunpack.c.l.b16 %v463
        %v1290 = vunpack.c.h.b16 %v463
        %v1291 = vunpack.c.l.b16 %v464
        %v1292 = vunpack.c.h.b16 %v464
        %v1293 = vunpack.c.l.b16 %v465
        %v1294 = vunpack.c.h.b16 %v465
        %v1295 = vunpack.c.l.b16 %v466
        %v1296 = vunpack.c.h.b16 %v466
        %v1297 = vunpack.c.l.b16 %v467
        %v1298 = vunpack.c.h.b16 %v467
        %v1299 = vunpack.c.l.b16 %v468
        %v1300 = vunpack.c.h.b16 %v468
        %v1301 = vunpack.c.l.b16 %v469
        %v1302 = vunpack.c.h.b16 %v469
        %v1303 = vunpack.c.l.b16 %v470
        %v1304 = vunpack.c.h.b16 %v470
        %v1305 = vunpack.c.l.b16 %v471
        %v1306 = vunpack.c.h.b16 %v471
        %v1307 = vunpack.c.l.b16 %v472
        %v1308 = vunpack.c.h.b16 %v472
        %v1309 = vunpack.c.l.b16 %v473
        %v1310 = vunpack.c.h.b16 %v473
        %v1311 = vunpack.c.l.b16 %v474
        %v1312 = vunpack.c.h.b16 %v474
        %v1313 = vunpack.c.l.b16 %v475
        %v1314 = vunpack.c.h.b16 %v475
        %v1315 = vunpack.c.l.b16 %v476
        %v1316 = vunpack.c.h.b16 %v476
        %v1317 = vunpack.c.l.b16 %v477
        %v1318 = vunpack.c.h.b16 %v477
        %v1319 = vunpack.c.l.b16 %v478
        %v1320 = vunpack.c.h.b16 %v478
        %v1321 = vunpack.c.l.b16 %v479
        %v1322 = vunpack.c.h.b16 %v479
        %v1323 = vunpack.c.l.b16 %v480
        %v1324 = vunpack.c.h.b16 %v480
        %v1325 = vunpack.c.l.b16 %v481
        %v1326 = vunpack.c.h.b16 %v481
        %v1327 = vunpack.c.l.b16 %v482
        %v1328 = vunpack.c.h.b16 %v482
        %v1329 = vunpack.c.l.b16 %v483
        %v1330 = vunpack.c.h.b16 %v483
        %v1331 = vunpack.c.l.b16 %v484
        %v1332 = vunpack.c.h.b16 %v484
        %v1333 = vunpack.c.l.b16 %v485
        %v1334 = vunpack.c.h.b16 %v485
        %v1335 = vunpack.c.l.b16 %v486
        %v1336 = vunpack.c.h.b16 %v486
        %v1337 = vunpack.c.l.b16 %v487
        %v1338 = vunpack.c.h.b16 %v487
        %v1339 = vunpack.c.l.b16 %v488
        %v1340 = vunpack.c.h.b16 %v488
        %v1341 = vunpack.c.l.b16 %v489
        %v1342 = vunpack.c.h.b16 %v489
        %v1343 = vunpack.c.l.b16 %v490
        %v1344 = vunpack.c.h.b16 %v490
        %v1345 = vunpack.c.l.b16 %v491
        %v1346 = vunpack.c.h.b16 %v491
        %v1347 = vunpack.c.l.b16 %v492
        %v1348 = vunpack.c.h.b16 %v492
        %v1349 = vunpack.c.l.b16 %v493
        %v1350 = vunpack.c.h.b16 %v493
        %v1351 = vunpack.c.l.b16 %v494
        %v1352 = vunpack.c.h.b16 %v494
        %v1353 = vunpack.c.l.b16 %v495
        %v1354 = vunpack.c.h.b16 %v495
        %v1355 = vunpack.c.l.b16 %v496
        %v1356 = vunpack.c.h.b16 %v496
        %v1357 = vunpack.c.l.b16 %v497
        %v1358 = vunpack.c.h.b16 %v497
        %v1359 = vunpack.c.l.b16 %v498
        %v1360 = vunpack.c.h.b16 %v498
        %v1361 = vunpack.c.l.b16 %v499
        %v1362 = vunpack.c.h.b16 %v499
        %v1363 = vunpack.c.l.b16 %v500
        %v1364 = vunpack.c.h.b16 %v500
        %v1365 = vunpack.c.l.b16 %v501
        %v1366 = vunpack.c.h.b16 %v501
        %v1367 = vunpack.c.l.b16 %v502
        %v1368 = vunpack.c.h.b16 %v502
        %v1369 = vunpack.c.l.b16 %v503
        %v1370 = vunpack.c.h.b16 %v503
        %v1371 = vunpack.c.l.b16 %v504
        %v1372 = vunpack.c.h.b16 %v504
        %v1373 = vunpack.c.l.b16 %v505
        %v1374 = vunpack.c.h.b16 %v505
        %v1375 = vunpack.c.l.b16 %v506
        %v1376 = vunpack.c.h.b16 %v506
        %v1377 = vunpack.c.l.b16 %v507
        %v1378 = vunpack.c.h.b16 %v507
        %v1379 = vunpack.c.l.b16 %v508
        %v1380 = vunpack.c.h.b16 %v508
        %v1381 = vunpack.c.l.b16 %v509
        %v1382 = vunpack.c.h.b16 %v509
        %v1383 = vunpack.c.l.b16 %v510
        %v1384 = vunpack.c.h.b16 %v510
        %v1385 = vunpack.c.l.b16 %v511
        %v1386 = vunpack.c.h.b16 %v511
        %v1387 = vunpack.c.l.b16 %v512
        %v1388 = vunpack.c.h.b16 %v512
        %v1389 = vunpack.c.l.b16 %v513
        %v1390 = vunpack.c.h.b16 %v513
        %v1391 = vunpack.c.l.b16 %v514
        %v1392 = vunpack.c.h.b16 %v514
        %v1393 = vunpack.c.l.b16 %v515
        %v1394 = vunpack.c.h.b16 %v515
        %v1395 = vunpack.c.l.b16 %v516
        %v1396 = vunpack.c.h.b16 %v516
        %v1397 = vunpack.c.l.b16 %v517
        %v1398 = vunpack.c.h.b16 %v517
        %v1399 = vunpack.c.l.b16 %v518
        %v1400 = vunpack.c.h.b16 %v518
        %v1401 = vunpack.c.l.b16 %v519
        %v1402 = vunpack.c.h.b16 %v519
        %v1403 = vunpack.c.l.b16 %v520
        %v1404 = vunpack.c.h.b16 %v520
        %v1405 = vunpack.c.l.b16 %v521
        %v1406 = vunpack.c.h.b16 %v521
        %v1407 = vunpack.c.l.b16 %v522
        %v1408 = vunpack.c.h.b16 %v522
        %v1409 = vunpack.c.l.b16 %v523
        %v1410 = vunpack.c.h.b16 %v523
        %v1411 = vunpack.c.l.b16 %v524
        %v1412 = vunpack.c.h.b16 %v524
        %v1413 = vunpack.c.l.b16 %v525
        %v1414 = vunpack.c.h.b16 %v525
        %v1415 = vunpack.c.l.b16 %v526
        %v1416 = vunpack.c.h.b16 %v526
        %v1417 = vunpack.c.l.b16 %v527
        %v1418 = vunpack.c.h.b16 %v527
        %v1419 = vunpack.c.l.b16 %v528
        %v1420 = vunpack.c.h.b16 %v528
        %v1421 = vunpack.c.l.b16 %v529
        %v1422 = vunpack.c.h.b16 %v529
        %v1423 = vunpack.c.l.b16 %v530
        %v1424 = vunpack.c.h.b16 %v530
        %v1425 = vunpack.c.l.b16 %v531
        %v1426 = vunpack.c.h.b16 %v531
        %v1427 = vunpack.c.l.b16 %v532
        %v1428 = vunpack.c.h.b16 %v532
        %v1429 = vunpack.c.l.b16 %v533
        %v1430 = vunpack.c.h.b16 %v533
        %v1431 = vunpack.c.l.b16 %v534
        %v1432 = vunpack.c.h.b16 %v534
        %v1433 = vunpack.c.l.b16 %v535
        %v1434 = vunpack.c.h.b16 %v535
        %v1435 = vunpack.c.l.b16 %v536
        %v1436 = vunpack.c.h.b16 %v536
        %v1437 = vunpack.c.l.b16 %v537
        %v1438 = vunpack.c.h.b16 %v537
        %v1439 = vunpack.c.l.b16 %v538
        %v1440 = vunpack.c.h.b16 %v538
        %v1441 = vunpack.c.l.b16 %v539
        %v1442 = vunpack.c.h.b16 %v539
        %v1443 = vunpack.c.l.b16 %v540
        %v1444 = vunpack.c.h.b16 %v540
        %v1445 = vunpack.c.l.b16 %v541
        %v1446 = vunpack.c.h.b16 %v541
        %v1447 = vunpack.c.l.b16 %v542
        %v1448 = vunpack.c.h.b16 %v542
        %v1449 = vunpack.c.l.b16 %v543
        %v1450 = vunpack.c.h.b16 %v543
        %v1451 = vunpack.c.l.b16 %v544
        %v1452 = vunpack.c.h.b16 %v544
        %v1453 = vunpack.c.l.b16 %v545
        %v1454 = vunpack.c.h.b16 %v545
        %v1455 = vunpack.c.l.b16 %v546
        %v1456 = vunpack.c.h.b16 %v546
        %v1457 = vunpack.c.l.b16 %v547
        %v1458 = vunpack.c.h.b16 %v547
        %v1459 = vunpack.c.l.b16 %v548
        %v1460 = vunpack.c.h.b16 %v548
        %v1461 = vunpack.c.l.b16 %v549
        %v1462 = vunpack.c.h.b16 %v549
        %v1463 = vunpack.c.l.b16 %v550
        %v1464 = vunpack.c.h.b16 %v550
        %v1465 = vunpack.c.l.b16 %v551
        %v1466 = vunpack.c.h.b16 %v551
        %v1467 = vunpack.c.l.b16 %v552
        %v1468 = vunpack.c.h.b16 %v552
        %v1469 = vunpack.c.l.b16 %v553
        %v1470 = vunpack.c.h.b16 %v553
        %v1471 = vunpack.c.l.b16 %v554
        %v1472 = vunpack.c.h.b16 %v554
        %v1473 = vunpack.c.l.b16 %v555
        %v1474 = vunpack.c.h.b16 %v555
        %v1475 = vunpack.c.l.b16 %v556
        %v1476 = vunpack.c.h.b16 %v556
        %v1477 = vunpack.c.l.b16 %v557
        %v1478 = vunpack.c.h.b16 %v557
        %v1479 = vunpack.c.l.b16 %v558
        %v1480 = vunpack.c.h.b16 %v558
        %v1481 = vunpack.c.l.b16 %v559
        %v1482 = vunpack.c.h.b16 %v559
        %v1483 = vunpack.c.l.b16 %v560
        %v1484 = vunpack.c.h.b16 %v560
        %v1485 = vunpack.c.l.b16 %v561
        %v1486 = vunpack.c.h.b16 %v561
        %v1487 = vunpack.c.l.b16 %v562
        %v1488 = vunpack.c.h.b16 %v562
        %v1489 = vunpack.c.l.b16 %v563
        %v1490 = vunpack.c.h.b16 %v563
        %v1491 = vunpack.c.l.b16 %v564
        %v1492 = vunpack.c.h.b16 %v564
        %v1493 = vpack.c.b16 %v929, %v917
        %v1494 = vpack.c.b16 %v930, %v918
        %v1495 = vpack.c.b16 %v931, %v919
        %v1496 = vpack.c.b16 %v932, %v920
        %v1497 = vpack.c.b16 %v933, %v921
        %v1498 = vpack.c.b16 %v934, %v922
        %v1499 = vpack.c.b16 %v935, %v923
        %v1500 = vpack.c.b16 %v936, %v924
        %v1501 = vpack.c.b16 %v937, %v925
        %v1502 = vpack.c.b16 %v938, %v926
        %v1503 = vpack.c.b16 %v939, %v927
        %v1504 = vpack.c.b16 %v940, %v928
        %v1505 = vpack.c.b16 %v953, %v941
        %v1506 = vpack.c.b16 %v954, %v942
        %v1507 = vpack.c.b16 %v955, %v943
        %v1508 = vpack.c.b16 %v956, %v944
        %v1509 = vpack.c.b16 %v957, %v945
        %v1510 = vpack.c.b16 %v958, %v946
        %v1511 = vpack.c.b16 %v959, %v947
        %v1512 = vpack.c.b16 %v960, %v948
        %v1513 = vpack.c.b16 %v961, %v949
        %v1514 = vpack.c.b16 %v962, %v950
        %v1515 = vpack.c.b16 %v963, %v951
        %v1516 = vpack.c.b16 %v964, %v952
        %v1517 = vpack.c.b16 %v977, %v965
        %v1518 = vpack.c.b16 %v978, %v966
        %v1519 = vpack.c.b16 %v979, %v967
        %v1520 = vpack.c.b16 %v980, %v968
        %v1521 = vpack.c.b16 %v981, %v969
        %v1522 = vpack.c.b16 %v982, %v970
        %v1523 = vpack.c.b16 %v983, %v971
        %v1524 = vpack.c.b16 %v984, %v972
        %v1525 = vpack.c.b16 %v985, %v973
        %v1526 = vpack.c.b16 %v986, %v974
        %v1527 = vpack.c.b16 %v987, %v975
        %v1528 = vpack.c.b16 %v988, %v976
        %v1529 = vpack.c.b16 %v1001, %v989
        %v1530 = vpack.c.b16 %v1002, %v990
        %v1531 = vpack.c.b16 %v1003, %v991
        %v1532 = vpack.c.b16 %v1004, %v992
        %v1533 = vpack.c.b16 %v1005, %v993
        %v1534 = vpack.c.b16 %v1006, %v994
        %v1535 = vpack.c.b16 %v1007, %v995
        %v1536 = vpack.c.b16 %v1008, %v996
        %v1537 = vpack.c.b16 %v1009, %v997
        %v1538 = vpack.c.b16 %v1010, %v998
        %v1539 = vpack.c.b16 %v1011, %v999
        %v1540 = vpack.c.b16 %v1012, %v1000
        %v1541 = vpack.c.b16 %v1025, %v1013
        %v1542 = vpack.c.b16 %v1026, %v1014
        %v1543 = vpack.c.b16 %v1027, %v1015
        %v1544 = vpack.c.b16 %v1028, %v1016
        %v1545 = vpack.c.b16 %v1029, %v1017
        %v1546 = vpack.c.b16 %v1030, %v1018
        %v1547 = vpack.c.b16 %v1031, %v1019
        %v1548 = vpack.c.b16 %v1032, %v1020
        %v1549 = vpack.c.b16 %v1033, %v1021
        %v1550 = vpack.c.b16 %v1034, %v1022
        %v1551 = vpack.c.b16 %v1035, %v1023
        %v1552 = vpack.c.b16 %v1036, %v1024
        %v1553 = vpack.c.b16 %v1049, %v1037
        %v1554 = vpack.c.b16 %v1050, %v1038
        %v1555 = vpack.c.b16 %v1051, %v1039
        %v1556 = vpack.c.b16 %v1052, %v1040
        %v1557 = vpack.c.b16 %v1053, %v1041
        %v1558 = vpack.c.b16 %v1054, %v1042
        %v1559 = vpack.c.b16 %v1055, %v1043
        %v1560 = vpack.c.b16 %v1056, %v1044
        %v1561 = vpack.c.b16 %v1057, %v1045
        %v1562 = vpack.c.b16 %v1058, %v1046
        %v1563 = vpack.c.b16 %v1059, %v1047
        %v1564 = vpack.c.b16 %v1060, %v1048
        %v1565 = vpack.c.b16 %v1073, %v1061
        %v1566 = vpack.c.b16 %v1074, %v1062
        %v1567 = vpack.c.b16 %v1075, %v1063
        %v1568 = vpack.c.b16 %v1076, %v1064
        %v1569 = vpack.c.b16 %v1077, %v1065
        %v1570 = vpack.c.b16 %v1078, %v1066
        %v1571 = vpack.c.b16 %v1079, %v1067
        %v1572 = vpack.c.b16 %v1080, %v1068
        %v1573 = vpack.c.b16 %v1081, %v1069
        %v1574 = vpack.c.b16 %v1082, %v1070
        %v1575 = vpack.c.b16 %v1083, %v1071
        %v1576 = vpack.c.b16 %v1084, %v1072
        %v1577 = vpack.c.b16 %v1097, %v1085
        %v1578 = vpack.c.b16 %v1098, %v1086
        %v1579 = vpack.c.b16 %v1099, %v1087
        %v1580 = vpack.c.b16 %v1100, %v1088
        %v1581 = vpack.c.b16 %v1101, %v1089
        %v1582 = vpack.c.b16 %v1102, %v1090
        %v1583 = vpack.c.b16 %v1103, %v1091
        %v1584 = vpack.c.b16 %v1104, %v1092
        %v1585 = vpack.c.b16 %v1105, %v1093
        %v1586 = vpack.c.b16 %v1106, %v1094
        %v1587 = vpack.c.b16 %v1107, %v1095
        %v1588 = vpack.c.b16 %v1108, %v1096
        %v1589 = vpack.c.b16 %v1121, %v1109
        %v1590 = vpack.c.b16 %v1122, %v1110
        %v1591 = vpack.c.b16 %v1123, %v1111
        %v1592 = vpack.c.b16 %v1124, %v1112
        %v1593 = vpack.c.b16 %v1125, %v1113
        %v1594 = vpack.c.b16 %v1126, %v1114
        %v1595 = vpack.c.b16 %v1127, %v1115
        %v1596 = vpack.c.b16 %v1128, %v1116
        %v1597 = vpack.c.b16 %v1129, %v1117
        %v1598 = vpack.c.b16 %v1130, %v1118
        %v1599 = vpack.c.b16 %v1131, %v1119
        %v1600 = vpack.c.b16 %v1132, %v1120
        %v1601 = vpack.c.b16 %v1145, %v1133
        %v1602 = vpack.c.b16 %v1146, %v1134
        %v1603 = vpack.c.b16 %v1147, %v1135
        %v1604 = vpack.c.b16 %v1148, %v1136
        %v1605 = vpack.c.b16 %v1149, %v1137
        %v1606 = vpack.c.b16 %v1150, %v1138
        %v1607 = vpack.c.b16 %v1151, %v1139
        %v1608 = vpack.c.b16 %v1152, %v1140
        %v1609 = vpack.c.b16 %v1153, %v1141
        %v1610 = vpack.c.b16 %v1154, %v1142
        %v1611 = vpack.c.b16 %v1155, %v1143
        %v1612 = vpack.c.b16 %v1156, %v1144
        %v1613 = vpack.c.b16 %v1169, %v1157
        %v1614 = vpack.c.b16 %v1170, %v1158
        %v1615 = vpack.c.b16 %v1171, %v1159
        %v1616 = vpack.c.b16 %v1172, %v1160
        %v1617 = vpack.c.b16 %v1173, %v1161
        %v1618 = vpack.c.b16 %v1174, %v1162
        %v1619 = vpack.c.b16 %v1175, %v1163
        %v1620 = vpack.c.b16 %v1176, %v1164
        %v1621 = vpack.c.b16 %v1177, %v1165
        %v1622 = vpack.c.b16 %v1178, %v1166
        %v1623 = vpack.c.b16 %v1179, %v1167
        %v1624 = vpack.c.b16 %v1180, %v1168
        %v1625 = vpack.c.b16 %v1193, %v1181
        %v1626 = vpack.c.b16 %v1194, %v1182
        %v1627 = vpack.c.b16 %v1195, %v1183
        %v1628 = vpack.c.b16 %v1196, %v1184
        %v1629 = vpack.c.b16 %v1197, %v1185
        %v1630 = vpack.c.b16 %v1198, %v1186
        %v1631 = vpack.c.b16 %v1199, %v1187
        %v1632 = vpack.c.b16 %v1200, %v1188
        %v1633 = vpack.c.b16 %v1201, %v1189
        %v1634 = vpack.c.b16 %v1202, %v1190
        %v1635 = vpack.c.b16 %v1203, %v1191
        %v1636 = vpack.c.b16 %v1204, %v1192
        %v1637 = vpack.c.b16 %v1217, %v1205
        %v1638 = vpack.c.b16 %v1218, %v1206
        %v1639 = vpack.c.b16 %v1219, %v1207
        %v1640 = vpack.c.b16 %v1220, %v1208
        %v1641 = vpack.c.b16 %v1221, %v1209
        %v1642 = vpack.c.b16 %v1222, %v1210
        %v1643 = vpack.c.b16 %v1223, %v1211
        %v1644 = vpack.c.b16 %v1224, %v1212
        %v1645 = vpack.c.b16 %v1225, %v1213
        %v1646 = vpack.c.b16 %v1226, %v1214
        %v1647 = vpack.c.b16 %v1227, %v1215
        %v1648 = vpack.c.b16 %v1228, %v1216
        %v1649 = vpack.c.b16 %v1241, %v1229
        %v1650 = vpack.c.b16 %v1242, %v1230
        %v1651 = vpack.c.b16 %v1243, %v1231
        %v1652 = vpack.c.b16 %v1244, %v1232
        %v1653 = vpack.c.b16 %v1245, %v1233
        %v1654 = vpack.c.b16 %v1246, %v1234
        %v1655 = vpack.c.b16 %v1247, %v1235
        %v1656 = vpack.c.b16 %v1248, %v1236
        %v1657 = vpack.c.b16 %v1249, %v1237
        %v1658 = vpack.c.b16 %v1250, %v1238
        %v1659 = vpack.c.b16 %v1251, %v1239
        %v1660 = vpack.c.b16 %v1252, %v1240
        %v1661 = vpack.c.b16 %v1265, %v1253
        %v1662 = vpack.c.b16 %v1266, %v1254
        %v1663 = vpack.c.b16 %v1267, %v1255
        %v1664 = vpack.c.b16 %v1268, %v1256
        %v1665 = vpack.c.b16 %v1269, %v1257
        %v1666 = vpack.c.b16 %v1270, %v1258
        %v1667 = vpack.c.b16 %v1271, %v1259
        %v1668 = vpack.c.b16 %v1272, %v1260
        %v1669 = vpack.c.b16 %v1273, %v1261
        %v1670 = vpack.c.b16 %v1274, %v1262
        %v1671 = vpack.c.b16 %v1275, %v1263
        %v1672 = vpack.c.b16 %v1276, %v1264
        %v1673 = vpack.c.b16 %v1289, %v1277
        %v1674 = vpack.c.b16 %v1290, %v1278
        %v1675 = vpack.c.b16 %v1291, %v1279
        %v1676 = vpack.c.b16 %v1292, %v1280
        %v1677 = vpack.c.b16 %v1293, %v1281
        %v1678 = vpack.c.b16 %v1294, %v1282
        %v1679 = vpack.c.b16 %v1295, %v1283
        %v1680 = vpack.c.b16 %v1296, %v1284
        %v1681 = vpack.c.b16 %v1297, %v1285
        %v1682 = vpack.c.b16 %v1298, %v1286
        %v1683 = vpack.c.b16 %v1299, %v1287
        %v1684 = vpack.c.b16 %v1300, %v1288
        %v1685 = vpack.c.b16 %v1313, %v1301
        %v1686 = vpack.c.b16 %v1314, %v1302
        %v1687 = vpack.c.b16 %v1315, %v1303
        %v1688 = vpack.c.b16 %v1316, %v1304
        %v1689 = vpack.c.b16 %v1317, %v1305
        %v1690 = vpack.c.b16 %v1318, %v1306
        %v1691 = vpack.c.b16 %v1319, %v1307
        %v1692 = vpack.c.b16 %v1320, %v1308
        %v1693 = vpack.c.b16 %v1321, %v1309
        %v1694 = vpack.c.b16 %v1322, %v1310
        %v1695 = vpack.c.b16 %v1323, %v1311
        %v1696 = vpack.c.b16 %v1324, %v1312
        %v1697 = vpack.c.b16 %v1337, %v1325
        %v1698 = vpack.c.b16 %v1338, %v1326
        %v1699 = vpack.c.b16 %v1339, %v1327
        %v1700 = vpack.c.b16 %v1340, %v1328
        %v1701 = vpack.c.b16 %v1341, %v1329
        %v1702 = vpack.c.b16 %v1342, %v1330
        %v1703 = vpack.c.b16 %v1343, %v1331
        %v1704 = vpack.c.b16 %v1344, %v1332
        %v1705 = vpack.c.b16 %v1345, %v1333
        %v1706 = vpack.c.b16 %v1346, %v1334
        %v1707 = vpack.c.b16 %v1347, %v1335
        %v1708 = vpack.c.b16 %v1348, %v1336
        %v1709 = vpack.c.b16 %v1361, %v1349
        %v1710 = vpack.c.b16 %v1362, %v1350
        %v1711 = vpack.c.b16 %v1363, %v1351
        %v1712 = vpack.c.b16 %v1364, %v1352
        %v1713 = vpack.c.b16 %v1365, %v1353
        %v1714 = vpack.c.b16 %v1366, %v1354
        %v1715 = vpack.c.b16 %v1367, %v1355
        %v1716 = vpack.c.b16 %v1368, %v1356
        %v1717 = vpack.c.b16 %v1369, %v1357
        %v1718 = vpack.c.b16 %v1370, %v1358
        %v1719 = vpack.c.b16 %v1371, %v1359
        %v1720 = vpack.c.b16 %v1372, %v1360
        %v1721 = vpack.c.b16 %v1385, %v1373
        %v1722 = vpack.c.b16 %v1386, %v1374
        %v1723 = vpack.c.b16 %v1387, %v1375
        %v1724 = vpack.c.b16 %v1388, %v1376
        %v1725 = vpack.c.b16 %v1389, %v1377
        %v1726 = vpack.c.b16 %v1390, %v1378
        %v1727 = vpack.c.b16 %v1391, %v1379
        %v1728 = vpack.c.b16 %v1392, %v1380
        %v1729 = vpack.c.b16 %v1393, %v1381
        %v1730 = vpack.c.b16 %v1394, %v1382
        %v1731 = vpack.c.b16 %v1395, %v1383
        %v1732 = vpack.c.b16 %v1396, %v1384
        %v1733 = vpack.c.b16 %v1409, %v1397
        %v1734 = vpack.c.b16 %v1410, %v1398
        %v1735 = vpack.c.b16 %v1411, %v1399
        %v1736 = vpack.c.b16 %v1412, %v1400
        %v1737 = vpack.c.b16 %v1413, %v1401
        %v1738 = vpack.c.b16 %v1414, %v1402
        %v1739 = vpack.c.b16 %v1415, %v1403
        %v1740 = vpack.c.b16 %v1416, %v1404
        %v1741 = vpack.c.b16 %v1417, %v1405
        %v1742 = vpack.c.b16 %v1418, %v1406
        %v1743 = vpack.c.b16 %v1419, %v1407
        %v1744 = vpack.c.b16 %v1420, %v1408
        %v1745 = vpack.c.b16 %v1433, %v1421
        %v1746 = vpack.c.b16 %v1434, %v1422
        %v1747 = vpack.c.b16 %v1435, %v1423
        %v1748 = vpack.c.b16 %v1436, %v1424
        %v1749 = vpack.c.b16 %v1437, %v1425
        %v1750 = vpack.c.b16 %v1438, %v1426
        %v1751 = vpack.c.b16 %v1439, %v1427
        %v1752 = vpack.c.b16 %v1440, %v1428
        %v1753 = vpack.c.b16 %v1441, %v1429
        %v1754 = vpack.c.b16 %v1442, %v1430
        %v1755 = vpack.c.b16 %v1443, %v1431
        %v1756 = vpack.c.b16 %v1444, %v1432
        %v1757 = vpack.c.b16 %v1457, %v1445
        %v1758 = vpack.c.b16 %v1458, %v1446
        %v1759 = vpack.c.b16 %v1459, %v1447
        %v1760 = vpack.c.b16 %v1460, %v1448
        %v1761 = vpack.c.b16 %v1461, %v1449
        %v1762 = vpack.c.b16 %v1462, %v1450
        %v1763 = vpack.c.b16 %v1463, %v1451
        %v1764 = vpack.c.b16 %v1464, %v1452
        %v1765 = vpack.c.b16 %v1465, %v1453
        %v1766 = vpack.c.b16 %v1466, %v1454
        %v1767 = vpack.c.b16 %v1467, %v1455
        %v1768 = vpack.c.b16 %v1468, %v1456
        %v1769 = vpack.c.b16 %v1481, %v1469
        %v1770 = vpack.c.b16 %v1482, %v1470
        %v1771 = vpack.c.b16 %v1483, %v1471
        %v1772 = vpack.c.b16 %v1484, %v1472
        %v1773 = vpack.c.b16 %v1485, %v1473
        %v1774 = vpack.c.b16 %v1486, %v1474
        %v1775 = vpack.c.b16 %v1487, %v1475
        %v1776 = vpack.c.b16 %v1488, %v1476
        %v1777 = vpack.c.b16 %v1489, %v1477
        %v1778 = vpack.c.b16 %v1490, %v1478
        %v1779 = vpack.c.b16 %v1491, %v1479
        %v1780 = vpack.c.b16 %v1492, %v1480
        %2069 = vmatprep.subr.bf16.mxu0 %v1578
        %2070 = vmatpush1.bf16.msra.mxu0 %v1577
        %2071 = vmatprep.subr.bf16.mxu0 %v1566
        %2072 = vmatpush1.bf16.msra.mxu0 %v1565
        %2073 = vmatprep.subr.bf16.mxu0 %v1554
        %2074 = vmatpush1.bf16.msra.mxu0 %v1553
        %2075 = vmatprep.subr.bf16.mxu0 %v1542
        %2076 = vmatpush1.bf16.msra.mxu0 %v1541
        %2077 = vmatprep.subr.bf16.mxu0 %v1530
        %2078 = vmatpush1.bf16.msra.mxu0 %v1529
        %2079 = vmatprep.subr.bf16.mxu0 %v1518
        %2080 = vmatpush1.bf16.msra.mxu0 %v1517
        %2081 = vmatprep.subr.bf16.mxu0 %v1506
        %2082 = vmatpush1.bf16.msra.mxu0 %v1505
        %2083 = vmatprep.subr.bf16.mxu0 %v1494
        %2084 = vmatpush1.bf16.msra.mxu0 %v1493
        %2085 = vmatprep.subr.bf16.mxu0 %v1674
        %2086 = vmatpush2.bf16.msra.mxu0 %v1673
        %2087 = vmatprep.subr.bf16.mxu0 %v1662
        %2088 = vmatpush2.bf16.msra.mxu0 %v1661
        %2089 = vmatprep.subr.bf16.mxu0 %v1650
        %2090 = vmatpush2.bf16.msra.mxu0 %v1649
        %2091 = vmatprep.subr.bf16.mxu0 %v1638
        %2092 = vmatpush2.bf16.msra.mxu0 %v1637
        %2093 = vmatprep.subr.bf16.mxu0 %v1626
        %2094 = vmatpush2.bf16.msra.mxu0 %v1625
        %2095 = vmatprep.subr.bf16.mxu0 %v1614
        %2096 = vmatpush2.bf16.msra.mxu0 %v1613
        %2097 = vmatprep.subr.bf16.mxu0 %v1602
        %2098 = vmatpush2.bf16.msra.mxu0 %v1601
        %2099 = vmatprep.subr.bf16.mxu0 %v1590
        %2100 = vmatpush2.bf16.msra.mxu0 %v1589
        %2101 = vmatprep.mubr.bf16.mxu0 %v275
        %2102 = vmatmul.mubr.bf16.gmra.mxu0 %v274
        %v2103 = vpop.f32.mrf.mxu0
        %v2104 = vadd.f32 %v572, %v2103
        %v2105 = vpop.f32.mrf.mxu0
        %v2106 = vadd.f32 %v576, %v2105
        %v2107 = vpop.f32.mrf.mxu0
        %v2108 = vpop.f32.mrf.mxu0
        %2109 = vdwg.mxu0
        %2110 = vmatprep.subr.bf16.mxu0 %v1770
        %2111 = vmatpush1.bf16.msra.mxu0 %v1769
        %2112 = vmatprep.subr.bf16.mxu0 %v1758
        %2113 = vmatpush1.bf16.msra.mxu0 %v1757
        %2114 = vmatprep.subr.bf16.mxu0 %v1746
        %2115 = vmatpush1.bf16.msra.mxu0 %v1745
        %2116 = vmatprep.subr.bf16.mxu0 %v1734
        %2117 = vmatpush1.bf16.msra.mxu0 %v1733
        %2118 = vmatprep.subr.bf16.mxu0 %v1722
        %2119 = vmatpush1.bf16.msra.mxu0 %v1721
        %2120 = vmatprep.subr.bf16.mxu0 %v1710
        %2121 = vmatpush1.bf16.msra.mxu0 %v1709
        %2122 = vmatprep.subr.bf16.mxu0 %v1698
        %2123 = vmatpush1.bf16.msra.mxu0 %v1697
        %2124 = vmatprep.subr.bf16.mxu0 %v1686
        %2125 = vmatpush1.bf16.msra.mxu0 %v1685
        %2126 = vmatprep.subr.bf16.mxu0 0
        %2127 = vmatpush2.bf16.msra.mxu0 0
        %2128 = vmatprep.subr.bf16.mxu0 0
        %2129 = vmatpush2.bf16.msra.mxu0 0
        %2130 = vmatprep.subr.bf16.mxu0 0
        %2131 = vmatpush2.bf16.msra.mxu0 0
        %2132 = vmatprep.subr.bf16.mxu0 0
        %2133 = vmatpush2.bf16.msra.mxu0 0
        %2134 = vmatprep.subr.bf16.mxu0 0
        %2135 = vmatpush2.bf16.msra.mxu0 0
        %2136 = vmatprep.subr.bf16.mxu0 0
        %2137 = vmatpush2.bf16.msra.mxu0 0
        %2138 = vmatprep.subr.bf16.mxu0 0
        %2139 = vmatpush2.bf16.msra.mxu0 0
        %2140 = vmatprep.subr.bf16.mxu0 0
        %2141 = vmatpush2.bf16.msra.mxu0 0
        %2142 = vmatprep.mubr.bf16.mxu0 0
        %2143 = vmatmul.mubr.bf16.gmra.mxu0 %v276
        %v2144 = vpop.f32.mrf.mxu0
        %v2145 = vadd.f32 %v2104, %v2144
        %v2146 = vpop.f32.mrf.mxu0
        %v2147 = vadd.f32 %v2106, %v2146
        %v2148 = vpop.f32.mrf.mxu0
        %v2149 = vpop.f32.mrf.mxu0
        %2150 = vdwg.mxu0
        %2151 = vmatprep.subr.bf16.mxu0 %v1580
        %2152 = vmatpush1.bf16.msra.mxu0 %v1579
        %2153 = vmatprep.subr.bf16.mxu0 %v1568
        %2154 = vmatpush1.bf16.msra.mxu0 %v1567
        %2155 = vmatprep.subr.bf16.mxu0 %v1556
        %2156 = vmatpush1.bf16.msra.mxu0 %v1555
        %2157 = vmatprep.subr.bf16.mxu0 %v1544
        %2158 = vmatpush1.bf16.msra.mxu0 %v1543
        %2159 = vmatprep.subr.bf16.mxu0 %v1532
        %2160 = vmatpush1.bf16.msra.mxu0 %v1531
        %2161 = vmatprep.subr.bf16.mxu0 %v1520
        %2162 = vmatpush1.bf16.msra.mxu0 %v1519
        %2163 = vmatprep.subr.bf16.mxu0 %v1508
        %2164 = vmatpush1.bf16.msra.mxu0 %v1507
        %2165 = vmatprep.subr.bf16.mxu0 %v1496
        %2166 = vmatpush1.bf16.msra.mxu0 %v1495
        %2167 = vmatprep.subr.bf16.mxu0 %v1676
        %2168 = vmatpush2.bf16.msra.mxu0 %v1675
        %2169 = vmatprep.subr.bf16.mxu0 %v1664
        %2170 = vmatpush2.bf16.msra.mxu0 %v1663
        %2171 = vmatprep.subr.bf16.mxu0 %v1652
        %2172 = vmatpush2.bf16.msra.mxu0 %v1651
        %2173 = vmatprep.subr.bf16.mxu0 %v1640
        %2174 = vmatpush2.bf16.msra.mxu0 %v1639
        %2175 = vmatprep.subr.bf16.mxu0 %v1628
        %2176 = vmatpush2.bf16.msra.mxu0 %v1627
        %2177 = vmatprep.subr.bf16.mxu0 %v1616
        %2178 = vmatpush2.bf16.msra.mxu0 %v1615
        %2179 = vmatprep.subr.bf16.mxu0 %v1604
        %2180 = vmatpush2.bf16.msra.mxu0 %v1603
        %2181 = vmatprep.subr.bf16.mxu0 %v1592
        %2182 = vmatpush2.bf16.msra.mxu0 %v1591
        %2183 = vmatprep.mubr.bf16.mxu0 %v275
        %2184 = vmatmul.mubr.bf16.gmra.mxu0 %v274
        %v2185 = vpop.f32.mrf.mxu0
        %v2186 = vadd.f32 %v580, %v2185
        %v2187 = vpop.f32.mrf.mxu0
        %v2188 = vadd.f32 %v584, %v2187
        %v2189 = vpop.f32.mrf.mxu0
        %v2190 = vpop.f32.mrf.mxu0
        %2191 = vdwg.mxu0
        %2192 = vmatprep.subr.bf16.mxu0 %v1772
        %2193 = vmatpush1.bf16.msra.mxu0 %v1771
        %2194 = vmatprep.subr.bf16.mxu0 %v1760
        %2195 = vmatpush1.bf16.msra.mxu0 %v1759
        %2196 = vmatprep.subr.bf16.mxu0 %v1748
        %2197 = vmatpush1.bf16.msra.mxu0 %v1747
        %2198 = vmatprep.subr.bf16.mxu0 %v1736
        %2199 = vmatpush1.bf16.msra.mxu0 %v1735
        %2200 = vmatprep.subr.bf16.mxu0 %v1724
        %2201 = vmatpush1.bf16.msra.mxu0 %v1723
        %2202 = vmatprep.subr.bf16.mxu0 %v1712
        %2203 = vmatpush1.bf16.msra.mxu0 %v1711
        %2204 = vmatprep.subr.bf16.mxu0 %v1700
        %2205 = vmatpush1.bf16.msra.mxu0 %v1699
        %2206 = vmatprep.subr.bf16.mxu0 %v1688
        %2207 = vmatpush1.bf16.msra.mxu0 %v1687
        %2208 = vmatprep.subr.bf16.mxu0 0
        %2209 = vmatpush2.bf16.msra.mxu0 0
        %2210 = vmatprep.subr.bf16.mxu0 0
        %2211 = vmatpush2.bf16.msra.mxu0 0
        %2212 = vmatprep.subr.bf16.mxu0 0
        %2213 = vmatpush2.bf16.msra.mxu0 0
        %2214 = vmatprep.subr.bf16.mxu0 0
        %2215 = vmatpush2.bf16.msra.mxu0 0
        %2216 = vmatprep.subr.bf16.mxu0 0
        %2217 = vmatpush2.bf16.msra.mxu0 0
        %2218 = vmatprep.subr.bf16.mxu0 0
        %2219 = vmatpush2.bf16.msra.mxu0 0
        %2220 = vmatprep.subr.bf16.mxu0 0
        %2221 = vmatpush2.bf16.msra.mxu0 0
        %2222 = vmatprep.subr.bf16.mxu0 0
        %2223 = vmatpush2.bf16.msra.mxu0 0
        %2224 = vmatprep.mubr.bf16.mxu0 0
        %2225 = vmatmul.mubr.bf16.gmra.mxu0 %v276
        %v2226 = vpop.f32.mrf.mxu0
        %v2227 = vadd.f32 %v2186, %v2226
        %v2228 = vpop.f32.mrf.mxu0
        %v2229 = vadd.f32 %v2188, %v2228
        %v2230 = vpop.f32.mrf.mxu0
        %v2231 = vpop.f32.mrf.mxu0
        %2232 = vdwg.mxu0
        %2233 = vmatprep.subr.bf16.mxu0 %v1582
        %2234 = vmatpush1.bf16.msra.mxu0 %v1581
        %2235 = vmatprep.subr.bf16.mxu0 %v1570
        %2236 = vmatpush1.bf16.msra.mxu0 %v1569
        %2237 = vmatprep.subr.bf16.mxu0 %v1558
        %2238 = vmatpush1.bf16.msra.mxu0 %v1557
        %2239 = vmatprep.subr.bf16.mxu0 %v1546
        %2240 = vmatpush1.bf16.msra.mxu0 %v1545
        %2241 = vmatprep.subr.bf16.mxu0 %v1534
        %2242 = vmatpush1.bf16.msra.mxu0 %v1533
        %2243 = vmatprep.subr.bf16.mxu0 %v1522
        %2244 = vmatpush1.bf16.msra.mxu0 %v1521
        %2245 = vmatprep.subr.bf16.mxu0 %v1510
        %2246 = vmatpush1.bf16.msra.mxu0 %v1509
        %2247 = vmatprep.subr.bf16.mxu0 %v1498
        %2248 = vmatpush1.bf16.msra.mxu0 %v1497
        %2249 = vmatprep.subr.bf16.mxu0 %v1678
        %2250 = vmatpush2.bf16.msra.mxu0 %v1677
        %2251 = vmatprep.subr.bf16.mxu0 %v1666
        %2252 = vmatpush2.bf16.msra.mxu0 %v1665
        %2253 = vmatprep.subr.bf16.mxu0 %v1654
        %2254 = vmatpush2.bf16.msra.mxu0 %v1653
        %2255 = vmatprep.subr.bf16.mxu0 %v1642
        %2256 = vmatpush2.bf16.msra.mxu0 %v1641
        %2257 = vmatprep.subr.bf16.mxu0 %v1630
        %2258 = vmatpush2.bf16.msra.mxu0 %v1629
        %2259 = vmatprep.subr.bf16.mxu0 %v1618
        %2260 = vmatpush2.bf16.msra.mxu0 %v1617
        %2261 = vmatprep.subr.bf16.mxu0 %v1606
        %2262 = vmatpush2.bf16.msra.mxu0 %v1605
        %2263 = vmatprep.subr.bf16.mxu0 %v1594
        %2264 = vmatpush2.bf16.msra.mxu0 %v1593
        %2265 = vmatprep.mubr.bf16.mxu0 %v275
        %2266 = vmatmul.mubr.bf16.gmra.mxu0 %v274
        %v2267 = vpop.f32.mrf.mxu0
        %v2268 = vadd.f32 %v588, %v2267
        %v2269 = vpop.f32.mrf.mxu0
        %v2270 = vadd.f32 %v592, %v2269
        %v2271 = vpop.f32.mrf.mxu0
        %v2272 = vpop.f32.mrf.mxu0
        %2273 = vdwg.mxu0
        %2274 = vmatprep.subr.bf16.mxu0 %v1774
        %2275 = vmatpush1.bf16.msra.mxu0 %v1773
        %2276 = vmatprep.subr.bf16.mxu0 %v1762
        %2277 = vmatpush1.bf16.msra.mxu0 %v1761
        %2278 = vmatprep.subr.bf16.mxu0 %v1750
        %2279 = vmatpush1.bf16.msra.mxu0 %v1749
        %2280 = vmatprep.subr.bf16.mxu0 %v1738
        %2281 = vmatpush1.bf16.msra.mxu0 %v1737
        %2282 = vmatprep.subr.bf16.mxu0 %v1726
        %2283 = vmatpush1.bf16.msra.mxu0 %v1725
        %2284 = vmatprep.subr.bf16.mxu0 %v1714
        %2285 = vmatpush1.bf16.msra.mxu0 %v1713
        %2286 = vmatprep.subr.bf16.mxu0 %v1702
        %2287 = vmatpush1.bf16.msra.mxu0 %v1701
        %2288 = vmatprep.subr.bf16.mxu0 %v1690
        %2289 = vmatpush1.bf16.msra.mxu0 %v1689
        %2290 = vmatprep.subr.bf16.mxu0 0
        %2291 = vmatpush2.bf16.msra.mxu0 0
        %2292 = vmatprep.subr.bf16.mxu0 0
        %2293 = vmatpush2.bf16.msra.mxu0 0
        %2294 = vmatprep.subr.bf16.mxu0 0
        %2295 = vmatpush2.bf16.msra.mxu0 0
        %2296 = vmatprep.subr.bf16.mxu0 0
        %2297 = vmatpush2.bf16.msra.mxu0 0
        %2298 = vmatprep.subr.bf16.mxu0 0
        %2299 = vmatpush2.bf16.msra.mxu0 0
        %2300 = vmatprep.subr.bf16.mxu0 0
        %2301 = vmatpush2.bf16.msra.mxu0 0
        %2302 = vmatprep.subr.bf16.mxu0 0
        %2303 = vmatpush2.bf16.msra.mxu0 0
        %2304 = vmatprep.subr.bf16.mxu0 0
        %2305 = vmatpush2.bf16.msra.mxu0 0
        %2306 = vmatprep.mubr.bf16.mxu0 0
        %2307 = vmatmul.mubr.bf16.gmra.mxu0 %v276
        %v2308 = vpop.f32.mrf.mxu0
        %v2309 = vadd.f32 %v2268, %v2308
        %v2310 = vpop.f32.mrf.mxu0
        %v2311 = vadd.f32 %v2270, %v2310
        %v2312 = vpop.f32.mrf.mxu0
        %v2313 = vpop.f32.mrf.mxu0
        %2314 = vdwg.mxu0
        %2315 = vmatprep.subr.bf16.mxu0 %v1584
        %2316 = vmatpush1.bf16.msra.mxu0 %v1583
        %2317 = vmatprep.subr.bf16.mxu0 %v1572
        %2318 = vmatpush1.bf16.msra.mxu0 %v1571
        %2319 = vmatprep.subr.bf16.mxu0 %v1560
        %2320 = vmatpush1.bf16.msra.mxu0 %v1559
        %2321 = vmatprep.subr.bf16.mxu0 %v1548
        %2322 = vmatpush1.bf16.msra.mxu0 %v1547
        %2323 = vmatprep.subr.bf16.mxu0 %v1536
        %2324 = vmatpush1.bf16.msra.mxu0 %v1535
        %2325 = vmatprep.subr.bf16.mxu0 %v1524
        %2326 = vmatpush1.bf16.msra.mxu0 %v1523
        %2327 = vmatprep.subr.bf16.mxu0 %v1512
        %2328 = vmatpush1.bf16.msra.mxu0 %v1511
        %2329 = vmatprep.subr.bf16.mxu0 %v1500
        %2330 = vmatpush1.bf16.msra.mxu0 %v1499
        %2331 = vmatprep.subr.bf16.mxu0 %v1680
        %2332 = vmatpush2.bf16.msra.mxu0 %v1679
        %2333 = vmatprep.subr.bf16.mxu0 %v1668
        %2334 = vmatpush2.bf16.msra.mxu0 %v1667
        %2335 = vmatprep.subr.bf16.mxu0 %v1656
        %2336 = vmatpush2.bf16.msra.mxu0 %v1655
        %2337 = vmatprep.subr.bf16.mxu0 %v1644
        %2338 = vmatpush2.bf16.msra.mxu0 %v1643
        %2339 = vmatprep.subr.bf16.mxu0 %v1632
        %2340 = vmatpush2.bf16.msra.mxu0 %v1631
        %2341 = vmatprep.subr.bf16.mxu0 %v1620
        %2342 = vmatpush2.bf16.msra.mxu0 %v1619
        %2343 = vmatprep.subr.bf16.mxu0 %v1608
        %2344 = vmatpush2.bf16.msra.mxu0 %v1607
        %2345 = vmatprep.subr.bf16.mxu0 %v1596
        %2346 = vmatpush2.bf16.msra.mxu0 %v1595
        %2347 = vmatprep.mubr.bf16.mxu0 %v275
        %2348 = vmatmul.mubr.bf16.gmra.mxu0 %v274
        %v2349 = vpop.f32.mrf.mxu0
        %v2350 = vadd.f32 %v596, %v2349
        %v2351 = vpop.f32.mrf.mxu0
        %v2352 = vadd.f32 %v600, %v2351
        %v2353 = vpop.f32.mrf.mxu0
        %v2354 = vpop.f32.mrf.mxu0
        %2355 = vdwg.mxu0
        %2356 = vmatprep.subr.bf16.mxu0 %v1776
        %2357 = vmatpush1.bf16.msra.mxu0 %v1775
        %2358 = vmatprep.subr.bf16.mxu0 %v1764
        %2359 = vmatpush1.bf16.msra.mxu0 %v1763
        %2360 = vmatprep.subr.bf16.mxu0 %v1752
        %2361 = vmatpush1.bf16.msra.mxu0 %v1751
        %2362 = vmatprep.subr.bf16.mxu0 %v1740
        %2363 = vmatpush1.bf16.msra.mxu0 %v1739
        %2364 = vmatprep.subr.bf16.mxu0 %v1728
        %2365 = vmatpush1.bf16.msra.mxu0 %v1727
        %2366 = vmatprep.subr.bf16.mxu0 %v1716
        %2367 = vmatpush1.bf16.msra.mxu0 %v1715
        %2368 = vmatprep.subr.bf16.mxu0 %v1704
        %2369 = vmatpush1.bf16.msra.mxu0 %v1703
        %2370 = vmatprep.subr.bf16.mxu0 %v1692
        %2371 = vmatpush1.bf16.msra.mxu0 %v1691
        %2372 = vmatprep.subr.bf16.mxu0 0
        %2373 = vmatpush2.bf16.msra.mxu0 0
        %2374 = vmatprep.subr.bf16.mxu0 0
        %2375 = vmatpush2.bf16.msra.mxu0 0
        %2376 = vmatprep.subr.bf16.mxu0 0
        %2377 = vmatpush2.bf16.msra.mxu0 0
        %2378 = vmatprep.subr.bf16.mxu0 0
        %2379 = vmatpush2.bf16.msra.mxu0 0
        %2380 = vmatprep.subr.bf16.mxu0 0
        %2381 = vmatpush2.bf16.msra.mxu0 0
        %2382 = vmatprep.subr.bf16.mxu0 0
        %2383 = vmatpush2.bf16.msra.mxu0 0
        %2384 = vmatprep.subr.bf16.mxu0 0
        %2385 = vmatpush2.bf16.msra.mxu0 0
        %2386 = vmatprep.subr.bf16.mxu0 0
        %2387 = vmatpush2.bf16.msra.mxu0 0
        %2388 = vmatprep.mubr.bf16.mxu0 0
        %2389 = vmatmul.mubr.bf16.gmra.mxu0 %v276
        %v2390 = vpop.f32.mrf.mxu0
        %v2391 = vadd.f32 %v2350, %v2390
        %v2392 = vpop.f32.mrf.mxu0
        %v2393 = vadd.f32 %v2352, %v2392
        %v2394 = vpop.f32.mrf.mxu0
        %v2395 = vpop.f32.mrf.mxu0
        %2396 = vdwg.mxu0
        %2397 = vmatprep.subr.bf16.mxu0 %v1586
        %2398 = vmatpush1.bf16.msra.mxu0 %v1585
        %2399 = vmatprep.subr.bf16.mxu0 %v1574
        %2400 = vmatpush1.bf16.msra.mxu0 %v1573
        %2401 = vmatprep.subr.bf16.mxu0 %v1562
        %2402 = vmatpush1.bf16.msra.mxu0 %v1561
        %2403 = vmatprep.subr.bf16.mxu0 %v1550
        %2404 = vmatpush1.bf16.msra.mxu0 %v1549
        %2405 = vmatprep.subr.bf16.mxu0 %v1538
        %2406 = vmatpush1.bf16.msra.mxu0 %v1537
        %2407 = vmatprep.subr.bf16.mxu0 %v1526
        %2408 = vmatpush1.bf16.msra.mxu0 %v1525
        %2409 = vmatprep.subr.bf16.mxu0 %v1514
        %2410 = vmatpush1.bf16.msra.mxu0 %v1513
        %2411 = vmatprep.subr.bf16.mxu0 %v1502
        %2412 = vmatpush1.bf16.msra.mxu0 %v1501
        %2413 = vmatprep.subr.bf16.mxu0 %v1682
        %2414 = vmatpush2.bf16.msra.mxu0 %v1681
        %2415 = vmatprep.subr.bf16.mxu0 %v1670
        %2416 = vmatpush2.bf16.msra.mxu0 %v1669
        %2417 = vmatprep.subr.bf16.mxu0 %v1658
        %2418 = vmatpush2.bf16.msra.mxu0 %v1657
        %2419 = vmatprep.subr.bf16.mxu0 %v1646
        %2420 = vmatpush2.bf16.msra.mxu0 %v1645
        %2421 = vmatprep.subr.bf16.mxu0 %v1634
        %2422 = vmatpush2.bf16.msra.mxu0 %v1633
        %2423 = vmatprep.subr.bf16.mxu0 %v1622
        %2424 = vmatpush2.bf16.msra.mxu0 %v1621
        %2425 = vmatprep.subr.bf16.mxu0 %v1610
        %2426 = vmatpush2.bf16.msra.mxu0 %v1609
        %2427 = vmatprep.subr.bf16.mxu0 %v1598
        %2428 = vmatpush2.bf16.msra.mxu0 %v1597
        %2429 = vmatprep.mubr.bf16.mxu0 %v275
        %2430 = vmatmul.mubr.bf16.gmra.mxu0 %v274
        %v2431 = vpop.f32.mrf.mxu0
        %v2432 = vadd.f32 %v604, %v2431
        %v2433 = vpop.f32.mrf.mxu0
        %v2434 = vadd.f32 %v608, %v2433
        %v2435 = vpop.f32.mrf.mxu0
        %v2436 = vpop.f32.mrf.mxu0
        %2437 = vdwg.mxu0
        %2438 = vmatprep.subr.bf16.mxu0 %v1778
        %2439 = vmatpush1.bf16.msra.mxu0 %v1777
        %2440 = vmatprep.subr.bf16.mxu0 %v1766
        %2441 = vmatpush1.bf16.msra.mxu0 %v1765
        %2442 = vmatprep.subr.bf16.mxu0 %v1754
        %2443 = vmatpush1.bf16.msra.mxu0 %v1753
        %2444 = vmatprep.subr.bf16.mxu0 %v1742
        %2445 = vmatpush1.bf16.msra.mxu0 %v1741
        %2446 = vmatprep.subr.bf16.mxu0 %v1730
        %2447 = vmatpush1.bf16.msra.mxu0 %v1729
        %2448 = vmatprep.subr.bf16.mxu0 %v1718
        %2449 = vmatpush1.bf16.msra.mxu0 %v1717
        %2450 = vmatprep.subr.bf16.mxu0 %v1706
        %2451 = vmatpush1.bf16.msra.mxu0 %v1705
        %2452 = vmatprep.subr.bf16.mxu0 %v1694
        %2453 = vmatpush1.bf16.msra.mxu0 %v1693
        %2454 = vmatprep.subr.bf16.mxu0 0
        %2455 = vmatpush2.bf16.msra.mxu0 0
        %2456 = vmatprep.subr.bf16.mxu0 0
        %2457 = vmatpush2.bf16.msra.mxu0 0
        %2458 = vmatprep.subr.bf16.mxu0 0
        %2459 = vmatpush2.bf16.msra.mxu0 0
        %2460 = vmatprep.subr.bf16.mxu0 0
        %2461 = vmatpush2.bf16.msra.mxu0 0
        %2462 = vmatprep.subr.bf16.mxu0 0
        %2463 = vmatpush2.bf16.msra.mxu0 0
        %2464 = vmatprep.subr.bf16.mxu0 0
        %2465 = vmatpush2.bf16.msra.mxu0 0
        %2466 = vmatprep.subr.bf16.mxu0 0
        %2467 = vmatpush2.bf16.msra.mxu0 0
        %2468 = vmatprep.subr.bf16.mxu0 0
        %2469 = vmatpush2.bf16.msra.mxu0 0
        %2470 = vmatprep.mubr.bf16.mxu0 0
        %2471 = vmatmul.mubr.bf16.gmra.mxu0 %v276
        %v2472 = vpop.f32.mrf.mxu0
        %v2473 = vadd.f32 %v2432, %v2472
        %v2474 = vpop.f32.mrf.mxu0
        %v2475 = vadd.f32 %v2434, %v2474
        %v2476 = vpop.f32.mrf.mxu0
        %v2477 = vpop.f32.mrf.mxu0
        %2478 = vdwg.mxu0
        %2479 = vmatprep.subr.bf16.mxu0 %v1588
        %2480 = vmatpush1.bf16.msra.mxu0 %v1587
        %2481 = vmatprep.subr.bf16.mxu0 %v1576
        %2482 = vmatpush1.bf16.msra.mxu0 %v1575
        %2483 = vmatprep.subr.bf16.mxu0 %v1564
        %2484 = vmatpush1.bf16.msra.mxu0 %v1563
        %2485 = vmatprep.subr.bf16.mxu0 %v1552
        %2486 = vmatpush1.bf16.msra.mxu0 %v1551
        %2487 = vmatprep.subr.bf16.mxu0 %v1540
        %2488 = vmatpush1.bf16.msra.mxu0 %v1539
        %2489 = vmatprep.subr.bf16.mxu0 %v1528
        %2490 = vmatpush1.bf16.msra.mxu0 %v1527
        %2491 = vmatprep.subr.bf16.mxu0 %v1516
        %2492 = vmatpush1.bf16.msra.mxu0 %v1515
        %2493 = vmatprep.subr.bf16.mxu0 %v1504
        %2494 = vmatpush1.bf16.msra.mxu0 %v1503
        %2495 = vmatprep.subr.bf16.mxu0 %v1684
        %2496 = vmatpush2.bf16.msra.mxu0 %v1683
        %2497 = vmatprep.subr.bf16.mxu0 %v1672
        %2498 = vmatpush2.bf16.msra.mxu0 %v1671
        %2499 = vmatprep.subr.bf16.mxu0 %v1660
        %2500 = vmatpush2.bf16.msra.mxu0 %v1659
        %2501 = vmatprep.subr.bf16.mxu0 %v1648
        %2502 = vmatpush2.bf16.msra.mxu0 %v1647
        %2503 = vmatprep.subr.bf16.mxu0 %v1636
        %2504 = vmatpush2.bf16.msra.mxu0 %v1635
        %2505 = vmatprep.subr.bf16.mxu0 %v1624
        %2506 = vmatpush2.bf16.msra.mxu0 %v1623
        %2507 = vmatprep.subr.bf16.mxu0 %v1612
        %2508 = vmatpush2.bf16.msra.mxu0 %v1611
        %2509 = vmatprep.subr.bf16.mxu0 %v1600
        %2510 = vmatpush2.bf16.msra.mxu0 %v1599
        %2511 = vmatprep.mubr.bf16.mxu0 %v275
        %2512 = vmatmul.mubr.bf16.gmra.mxu0 %v274
        %v2513 = vpop.f32.mrf.mxu0
        %v2514 = vadd.f32 %v612, %v2513
        %v2515 = vpop.f32.mrf.mxu0
        %v2516 = vadd.f32 %v616, %v2515
        %v2517 = vpop.f32.mrf.mxu0
        %v2518 = vpop.f32.mrf.mxu0
        %2519 = vdwg.mxu0
        %2520 = vmatprep.subr.bf16.mxu0 %v1780
        %2521 = vmatpush1.bf16.msra.mxu0 %v1779
        %2522 = vmatprep.subr.bf16.mxu0 %v1768
        %2523 = vmatpush1.bf16.msra.mxu0 %v1767
        %2524 = vmatprep.subr.bf16.mxu0 %v1756
        %2525 = vmatpush1.bf16.msra.mxu0 %v1755
        %2526 = vmatprep.subr.bf16.mxu0 %v1744
        %2527 = vmatpush1.bf16.msra.mxu0 %v1743
        %2528 = vmatprep.subr.bf16.mxu0 %v1732
        %2529 = vmatpush1.bf16.msra.mxu0 %v1731
        %2530 = vmatprep.subr.bf16.mxu0 %v1720
        %2531 = vmatpush1.bf16.msra.mxu0 %v1719
        %2532 = vmatprep.subr.bf16.mxu0 %v1708
        %2533 = vmatpush1.bf16.msra.mxu0 %v1707
        %2534 = vmatprep.subr.bf16.mxu0 %v1696
        %2535 = vmatpush1.bf16.msra.mxu0 %v1695
        %2536 = vmatprep.subr.bf16.mxu0 0
        %2537 = vmatpush2.bf16.msra.mxu0 0
        %2538 = vmatprep.subr.bf16.mxu0 0
        %2539 = vmatpush2.bf16.msra.mxu0 0
        %2540 = vmatprep.subr.bf16.mxu0 0
        %2541 = vmatpush2.bf16.msra.mxu0 0
        %2542 = vmatprep.subr.bf16.mxu0 0
        %2543 = vmatpush2.bf16.msra.mxu0 0
        %2544 = vmatprep.subr.bf16.mxu0 0
        %2545 = vmatpush2.bf16.msra.mxu0 0
        %2546 = vmatprep.subr.bf16.mxu0 0
        %2547 = vmatpush2.bf16.msra.mxu0 0
        %2548 = vmatprep.subr.bf16.mxu0 0
        %2549 = vmatpush2.bf16.msra.mxu0 0
        %2550 = vmatprep.subr.bf16.mxu0 0
        %2551 = vmatpush2.bf16.msra.mxu0 0
        %2552 = vmatprep.mubr.bf16.mxu0 0
        %2553 = vmatmul.mubr.bf16.gmra.mxu0 %v276
        %v2554 = vpop.f32.mrf.mxu0
        %v2555 = vadd.f32 %v2514, %v2554
        %v2556 = vpop.f32.mrf.mxu0
        %v2557 = vadd.f32 %v2516, %v2556
        %v2558 = vpop.f32.mrf.mxu0
        %v2559 = vpop.f32.mrf.mxu0
        %2560 = vdwg.mxu0
        %v2561 = vmax.f32 %v2145, 0.0
        %v2562 = vmax.f32 %v2147, 0.0
        %v2563 = vmax.f32 %v2227, 0.0
        %v2564 = vmax.f32 %v2229, 0.0
        %v2565 = vmax.f32 %v2309, 0.0
        %v2566 = vmax.f32 %v2311, 0.0
        %v2567 = vmax.f32 %v2391, 0.0
        %v2568 = vmax.f32 %v2393, 0.0
        %v2569 = vmax.f32 %v2473, 0.0
        %v2570 = vmax.f32 %v2475, 0.0
        %v2571 = vmax.f32 %v2555, 0.0
        %v2572 = vmax.f32 %v2557, 0.0
        %v2573 = vpack.c.bf16 %v2561, %v2561
        %v2574 = vpack.c.bf16 %v2562, %v2562
        %v2575 = vpack.c.bf16 %v2563, %v2563
        %v2576 = vpack.c.bf16 %v2564, %v2564
        %v2577 = vpack.c.bf16 %v2565, %v2565
        %v2578 = vpack.c.bf16 %v2566, %v2566
        %v2579 = vpack.c.bf16 %v2567, %v2567
        %v2580 = vpack.c.bf16 %v2568, %v2568
        %v2581 = vpack.c.bf16 %v2569, %v2569
        %v2582 = vpack.c.bf16 %v2570, %v2570
        %v2583 = vpack.c.bf16 %v2571, %v2571
        %v2584 = vpack.c.bf16 %v2572, %v2572
        %v2585 = vld [vmem:[#allocation7] sm:$0xff]
        %v2586 = vld [vmem:[#allocation7 + $0x8] sm:$0xf]
        %v2587 = vld [vmem:[#allocation7 + $0xc] sm:$0xff]
        %v2588 = vld [vmem:[#allocation7 + $0x14] sm:$0xf]
        %v2589 = vld [vmem:[#allocation7 + $0x18] sm:$0xff]
        %v2590 = vld [vmem:[#allocation7 + $0x20] sm:$0xf]
        %v2591 = vld [vmem:[#allocation7 + $0x24] sm:$0xff]
        %v2592 = vld [vmem:[#allocation7 + $0x2c] sm:$0xf]
        %v2593 = vld [vmem:[#allocation7 + $0x30] sm:$0xff]
        %v2594 = vld [vmem:[#allocation7 + $0x38] sm:$0xf]
        %v2595 = vld [vmem:[#allocation7 + $0x3c] sm:$0xff]
        %v2596 = vld [vmem:[#allocation7 + $0x44] sm:$0xf]
        %v2597 = vld [vmem:[#allocation7 + $0x48] sm:$0xff]
        %v2598 = vld [vmem:[#allocation7 + $0x50] sm:$0xf]
        %v2599 = vld [vmem:[#allocation7 + $0x54] sm:$0xff]
        %v2600 = vld [vmem:[#allocation7 + $0x5c] sm:$0xf]
        %v2601 = vld [vmem:[#allocation7 + $0x60] sm:$0xff]
        %v2602 = vld [vmem:[#allocation7 + $0x68] sm:$0xf]
        %v2603 = vld [vmem:[#allocation7 + $0x6c] sm:$0xff]
        %v2604 = vld [vmem:[#allocation7 + $0x74] sm:$0xf]
        %v2605 = vld [vmem:[#allocation7 + $0x78] sm:$0xff]
        %v2606 = vld [vmem:[#allocation7 + $0x80] sm:$0xf]
        %v2607 = vld [vmem:[#allocation7 + $0x84] sm:$0xff]
        %v2608 = vld [vmem:[#allocation7 + $0x8c] sm:$0xf]
        %v2609 = vld [vmem:[#allocation7 + $0x90] sm:$0xff]
        %v2610 = vld [vmem:[#allocation7 + $0x98] sm:$0xf]
        %v2611 = vld [vmem:[#allocation7 + $0x9c] sm:$0xff]
        %v2612 = vld [vmem:[#allocation7 + $0xa4] sm:$0xf]
        %v2613 = vld [vmem:[#allocation7 + $0xa8] sm:$0xff]
        %v2614 = vld [vmem:[#allocation7 + $0xb0] sm:$0xf]
        %v2615 = vld [vmem:[#allocation7 + $0xb4] sm:$0xff]
        %v2616 = vld [vmem:[#allocation7 + $0xbc] sm:$0xf]
        %v2617 = vld [vmem:[#allocation7 + $0xc0] sm:$0xff]
        %v2618 = vld [vmem:[#allocation7 + $0xc8] sm:$0xf]
        %v2619 = vld [vmem:[#allocation7 + $0xcc] sm:$0xff]
        %v2620 = vld [vmem:[#allocation7 + $0xd4] sm:$0xf]
        %v2621 = vld [vmem:[#allocation7 + $0xd8] sm:$0xff]
        %v2622 = vld [vmem:[#allocation7 + $0xe0] sm:$0xf]
        %v2623 = vld [vmem:[#allocation7 + $0xe4] sm:$0xff]
        %v2624 = vld [vmem:[#allocation7 + $0xec] sm:$0xf]
        %v2625 = vld [vmem:[#allocation7 + $0xf0] sm:$0xff]
        %v2626 = vld [vmem:[#allocation7 + $0xf8] sm:$0xf]
        %v2627 = vld [vmem:[#allocation7 + $0xfc] sm:$0xff]
        %v2628 = vld [vmem:[#allocation7 + $0x104] sm:$0xf]
        %v2629 = vld [vmem:[#allocation7 + $0x108] sm:$0xff]
        %v2630 = vld [vmem:[#allocation7 + $0x110] sm:$0xf]
        %v2631 = vld [vmem:[#allocation7 + $0x114] sm:$0xff]
        %v2632 = vld [vmem:[#allocation7 + $0x11c] sm:$0xf]
        %v2633 = vld [vmem:[#allocation7 + $0x120] sm:$0xff]
        %v2634 = vld [vmem:[#allocation7 + $0x128] sm:$0xf]
        %v2635 = vld [vmem:[#allocation7 + $0x12c] sm:$0xff]
        %v2636 = vld [vmem:[#allocation7 + $0x134] sm:$0xf]
        %v2637 = vld [vmem:[#allocation7 + $0x138] sm:$0xff]
        %v2638 = vld [vmem:[#allocation7 + $0x140] sm:$0xf]
        %v2639 = vld [vmem:[#allocation7 + $0x144] sm:$0xff]
        %v2640 = vld [vmem:[#allocation7 + $0x14c] sm:$0xf]
        %v2641 = vld [vmem:[#allocation7 + $0x150] sm:$0xff]
        %v2642 = vld [vmem:[#allocation7 + $0x158] sm:$0xf]
        %v2643 = vld [vmem:[#allocation7 + $0x15c] sm:$0xff]
        %v2644 = vld [vmem:[#allocation7 + $0x164] sm:$0xf]
        %v2645 = vld [vmem:[#allocation7 + $0x168] sm:$0xff]
        %v2646 = vld [vmem:[#allocation7 + $0x170] sm:$0xf]
        %v2647 = vld [vmem:[#allocation7 + $0x174] sm:$0xff]
        %v2648 = vld [vmem:[#allocation7 + $0x17c] sm:$0xf]
        %v2649 = vld [vmem:[#allocation7 + $0x180] sm:$0xff]
        %v2650 = vld [vmem:[#allocation7 + $0x188] sm:$0xf]
        %v2651 = vld [vmem:[#allocation7 + $0x18c] sm:$0xff]
        %v2652 = vld [vmem:[#allocation7 + $0x194] sm:$0xf]
        %v2653 = vld [vmem:[#allocation7 + $0x198] sm:$0xff]
        %v2654 = vld [vmem:[#allocation7 + $0x1a0] sm:$0xf]
        %v2655 = vld [vmem:[#allocation7 + $0x1a4] sm:$0xff]
        %v2656 = vld [vmem:[#allocation7 + $0x1ac] sm:$0xf]
        %v2657 = vld [vmem:[#allocation7 + $0x1b0] sm:$0xff]
        %v2658 = vld [vmem:[#allocation7 + $0x1b8] sm:$0xf]
        %v2659 = vld [vmem:[#allocation7 + $0x1bc] sm:$0xff]
        %v2660 = vld [vmem:[#allocation7 + $0x1c4] sm:$0xf]
        %v2661 = vld [vmem:[#allocation7 + $0x1c8] sm:$0xff]
        %v2662 = vld [vmem:[#allocation7 + $0x1d0] sm:$0xf]
        %v2663 = vld [vmem:[#allocation7 + $0x1d4] sm:$0xff]
        %v2664 = vld [vmem:[#allocation7 + $0x1dc] sm:$0xf]
        %v2665 = vld [vmem:[#allocation7 + $0x1e0] sm:$0xff]
        %v2666 = vld [vmem:[#allocation7 + $0x1e8] sm:$0xf]
        %v2667 = vld [vmem:[#allocation7 + $0x1ec] sm:$0xff]
        %v2668 = vld [vmem:[#allocation7 + $0x1f4] sm:$0xf]
        %v2669 = vld [vmem:[#allocation7 + $0x1f8] sm:$0xff]
        %v2670 = vld [vmem:[#allocation7 + $0x200] sm:$0xf]
        %v2671 = vld [vmem:[#allocation7 + $0x204] sm:$0xff]
        %v2672 = vld [vmem:[#allocation7 + $0x20c] sm:$0xf]
        %v2673 = vld [vmem:[#allocation7 + $0x210] sm:$0xff]
        %v2674 = vld [vmem:[#allocation7 + $0x218] sm:$0xf]
        %v2675 = vld [vmem:[#allocation7 + $0x21c] sm:$0xff]
        %v2676 = vld [vmem:[#allocation7 + $0x224] sm:$0xf]
        %v2677 = vld [vmem:[#allocation7 + $0x228] sm:$0xff]
        %v2678 = vld [vmem:[#allocation7 + $0x230] sm:$0xf]
        %v2679 = vld [vmem:[#allocation7 + $0x234] sm:$0xff]
        %v2680 = vld [vmem:[#allocation7 + $0x23c] sm:$0xf]
        %v2681 = vld [vmem:[#allocation7 + $0x240] sm:$0xff]
        %v2682 = vld [vmem:[#allocation7 + $0x248] sm:$0xf]
        %v2683 = vld [vmem:[#allocation7 + $0x24c] sm:$0xff]
        %v2684 = vld [vmem:[#allocation7 + $0x254] sm:$0xf]
        %v2685 = vld [vmem:[#allocation7 + $0x258] sm:$0xff]
        %v2686 = vld [vmem:[#allocation7 + $0x260] sm:$0xf]
        %v2687 = vld [vmem:[#allocation7 + $0x264] sm:$0xff]
        %v2688 = vld [vmem:[#allocation7 + $0x26c] sm:$0xf]
        %v2689 = vld [vmem:[#allocation7 + $0x270] sm:$0xff]
        %v2690 = vld [vmem:[#allocation7 + $0x278] sm:$0xf]
        %v2691 = vld [vmem:[#allocation7 + $0x27c] sm:$0xff]
        %v2692 = vld [vmem:[#allocation7 + $0x284] sm:$0xf]
        %v2693 = vld [vmem:[#allocation7 + $0x288] sm:$0xff]
        %v2694 = vld [vmem:[#allocation7 + $0x290] sm:$0xf]
        %v2695 = vld [vmem:[#allocation7 + $0x294] sm:$0xff]
        %v2696 = vld [vmem:[#allocation7 + $0x29c] sm:$0xf]
        %v2697 = vld [vmem:[#allocation7 + $0x2a0] sm:$0xff]
        %v2698 = vld [vmem:[#allocation7 + $0x2a8] sm:$0xf]
        %v2699 = vld [vmem:[#allocation7 + $0x2ac] sm:$0xff]
        %v2700 = vld [vmem:[#allocation7 + $0x2b4] sm:$0xf]
        %v2701 = vld [vmem:[#allocation7 + $0x2b8] sm:$0xff]
        %v2702 = vld [vmem:[#allocation7 + $0x2c0] sm:$0xf]
        %v2703 = vld [vmem:[#allocation7 + $0x2c4] sm:$0xff]
        %v2704 = vld [vmem:[#allocation7 + $0x2cc] sm:$0xf]
        %v2705 = vld [vmem:[#allocation7 + $0x2d0] sm:$0xff]
        %v2706 = vld [vmem:[#allocation7 + $0x2d8] sm:$0xf]
        %v2707 = vld [vmem:[#allocation7 + $0x2dc] sm:$0xff]
        %v2708 = vld [vmem:[#allocation7 + $0x2e4] sm:$0xf]
        %v2709 = vld [vmem:[#allocation7 + $0x2e8] sm:$0xff]
        %v2710 = vld [vmem:[#allocation7 + $0x2f0] sm:$0xf]
        %v2711 = vld [vmem:[#allocation7 + $0x2f4] sm:$0xff]
        %v2712 = vld [vmem:[#allocation7 + $0x2fc] sm:$0xf]
        %v2713 = vld [vmem:[#allocation7 + $0x300] sm:$0xff]
        %v2714 = vld [vmem:[#allocation7 + $0x308] sm:$0xf]
        %v2715 = vld [vmem:[#allocation7 + $0x30c] sm:$0xff]
        %v2716 = vld [vmem:[#allocation7 + $0x314] sm:$0xf]
        %v2717 = vld [vmem:[#allocation7 + $0x318] sm:$0xff]
        %v2718 = vld [vmem:[#allocation7 + $0x320] sm:$0xf]
        %v2719 = vld [vmem:[#allocation7 + $0x324] sm:$0xff]
        %v2720 = vld [vmem:[#allocation7 + $0x32c] sm:$0xf]
        %v2721 = vld [vmem:[#allocation7 + $0x330] sm:$0xff]
        %v2722 = vld [vmem:[#allocation7 + $0x338] sm:$0xf]
        %v2723 = vld [vmem:[#allocation7 + $0x33c] sm:$0xff]
        %v2724 = vld [vmem:[#allocation7 + $0x344] sm:$0xf]
        %v2725 = vld [vmem:[#allocation7 + $0x348] sm:$0xff]
        %v2726 = vld [vmem:[#allocation7 + $0x350] sm:$0xf]
        %v2727 = vld [vmem:[#allocation7 + $0x354] sm:$0xff]
        %v2728 = vld [vmem:[#allocation7 + $0x35c] sm:$0xf]
        %v2729 = vld [vmem:[#allocation7 + $0x360] sm:$0xff]
        %v2730 = vld [vmem:[#allocation7 + $0x368] sm:$0xf]
        %v2731 = vld [vmem:[#allocation7 + $0x36c] sm:$0xff]
        %v2732 = vld [vmem:[#allocation7 + $0x374] sm:$0xf]
        %v2733 = vld [vmem:[#allocation7 + $0x378] sm:$0xff]
        %v2734 = vld [vmem:[#allocation7 + $0x380] sm:$0xf]
        %v2735 = vld [vmem:[#allocation7 + $0x384] sm:$0xff]
        %v2736 = vld [vmem:[#allocation7 + $0x38c] sm:$0xf]
        %v2737 = vld [vmem:[#allocation7 + $0x390] sm:$0xff]
        %v2738 = vld [vmem:[#allocation7 + $0x398] sm:$0xf]
        %v2739 = vld [vmem:[#allocation7 + $0x39c] sm:$0xff]
        %v2740 = vld [vmem:[#allocation7 + $0x3a4] sm:$0xf]
        %v2741 = vld [vmem:[#allocation7 + $0x3a8] sm:$0xff]
        %v2742 = vld [vmem:[#allocation7 + $0x3b0] sm:$0xf]
        %v2743 = vld [vmem:[#allocation7 + $0x3b4] sm:$0xff]
        %v2744 = vld [vmem:[#allocation7 + $0x3bc] sm:$0xf]
        %v2745 = vld [vmem:[#allocation7 + $0x3c0] sm:$0xff]
        %v2746 = vld [vmem:[#allocation7 + $0x3c8] sm:$0xf]
        %v2747 = vld [vmem:[#allocation7 + $0x3cc] sm:$0xff]
        %v2748 = vld [vmem:[#allocation7 + $0x3d4] sm:$0xf]
        %v2749 = vld [vmem:[#allocation7 + $0x3d8] sm:$0xff]
        %v2750 = vld [vmem:[#allocation7 + $0x3e0] sm:$0xf]
        %v2751 = vld [vmem:[#allocation7 + $0x3e4] sm:$0xff]
        %v2752 = vld [vmem:[#allocation7 + $0x3ec] sm:$0xf]
        %v2753 = vld [vmem:[#allocation7 + $0x3f0] sm:$0xff]
        %v2754 = vld [vmem:[#allocation7 + $0x3f8] sm:$0xf]
        %v2755 = vld [vmem:[#allocation7 + $0x3fc] sm:$0xff]
        %v2756 = vld [vmem:[#allocation7 + $0x404] sm:$0xf]
        %v2757 = vld [vmem:[#allocation7 + $0x408] sm:$0xff]
        %v2758 = vld [vmem:[#allocation7 + $0x410] sm:$0xf]
        %v2759 = vld [vmem:[#allocation7 + $0x414] sm:$0xff]
        %v2760 = vld [vmem:[#allocation7 + $0x41c] sm:$0xf]
        %v2761 = vld [vmem:[#allocation7 + $0x420] sm:$0xff]
        %v2762 = vld [vmem:[#allocation7 + $0x428] sm:$0xf]
        %v2763 = vld [vmem:[#allocation7 + $0x42c] sm:$0xff]
        %v2764 = vld [vmem:[#allocation7 + $0x434] sm:$0xf]
        %v2765 = vld [vmem:[#allocation7 + $0x438] sm:$0xff]
        %v2766 = vld [vmem:[#allocation7 + $0x440] sm:$0xf]
        %v2767 = vld [vmem:[#allocation7 + $0x444] sm:$0xff]
        %v2768 = vld [vmem:[#allocation7 + $0x44c] sm:$0xf]
        %v2769 = vld [vmem:[#allocation7 + $0x450] sm:$0xff]
        %v2770 = vld [vmem:[#allocation7 + $0x458] sm:$0xf]
        %v2771 = vld [vmem:[#allocation7 + $0x45c] sm:$0xff]
        %v2772 = vld [vmem:[#allocation7 + $0x464] sm:$0xf]
        %v2773 = vld [vmem:[#allocation7 + $0x468] sm:$0xff]
        %v2774 = vld [vmem:[#allocation7 + $0x470] sm:$0xf]
        %v2775 = vld [vmem:[#allocation7 + $0x474] sm:$0xff]
        %v2776 = vld [vmem:[#allocation7 + $0x47c] sm:$0xf]
        %v2777 = vld [vmem:[#allocation7 + $0x480] sm:$0xff]
        %v2778 = vld [vmem:[#allocation7 + $0x488] sm:$0xf]
        %v2779 = vld [vmem:[#allocation7 + $0x48c] sm:$0xff]
        %v2780 = vld [vmem:[#allocation7 + $0x494] sm:$0xf]
        %v2781 = vld [vmem:[#allocation7 + $0x498] sm:$0xff]
        %v2782 = vld [vmem:[#allocation7 + $0x4a0] sm:$0xf]
        %v2783 = vld [vmem:[#allocation7 + $0x4a4] sm:$0xff]
        %v2784 = vld [vmem:[#allocation7 + $0x4ac] sm:$0xf]
        %v2785 = vld [vmem:[#allocation7 + $0x4b0] sm:$0xff]
        %v2786 = vld [vmem:[#allocation7 + $0x4b8] sm:$0xf]
        %v2787 = vld [vmem:[#allocation7 + $0x4bc] sm:$0xff]
        %v2788 = vld [vmem:[#allocation7 + $0x4c4] sm:$0xf]
        %v2789 = vld [vmem:[#allocation7 + $0x4c8] sm:$0xff]
        %v2790 = vld [vmem:[#allocation7 + $0x4d0] sm:$0xf]
        %v2791 = vld [vmem:[#allocation7 + $0x4d4] sm:$0xff]
        %v2792 = vld [vmem:[#allocation7 + $0x4dc] sm:$0xf]
        %v2793 = vld [vmem:[#allocation7 + $0x4e0] sm:$0xff]
        %v2794 = vld [vmem:[#allocation7 + $0x4e8] sm:$0xf]
        %v2795 = vld [vmem:[#allocation7 + $0x4ec] sm:$0xff]
        %v2796 = vld [vmem:[#allocation7 + $0x4f4] sm:$0xf]
        %v2797 = vld [vmem:[#allocation7 + $0x4f8] sm:$0xff]
        %v2798 = vld [vmem:[#allocation7 + $0x500] sm:$0xf]
        %v2799 = vld [vmem:[#allocation7 + $0x504] sm:$0xff]
        %v2800 = vld [vmem:[#allocation7 + $0x50c] sm:$0xf]
        %v2801 = vld [vmem:[#allocation7 + $0x510] sm:$0xff]
        %v2802 = vld [vmem:[#allocation7 + $0x518] sm:$0xf]
        %v2803 = vld [vmem:[#allocation7 + $0x51c] sm:$0xff]
        %v2804 = vld [vmem:[#allocation7 + $0x524] sm:$0xf]
        %v2805 = vld [vmem:[#allocation7 + $0x528] sm:$0xff]
        %v2806 = vld [vmem:[#allocation7 + $0x530] sm:$0xf]
        %v2807 = vld [vmem:[#allocation7 + $0x534] sm:$0xff]
        %v2808 = vld [vmem:[#allocation7 + $0x53c] sm:$0xf]
        %v2809 = vld [vmem:[#allocation7 + $0x540] sm:$0xff]
        %v2810 = vld [vmem:[#allocation7 + $0x548] sm:$0xf]
        %v2811 = vld [vmem:[#allocation7 + $0x54c] sm:$0xff]
        %v2812 = vld [vmem:[#allocation7 + $0x554] sm:$0xf]
        %v2813 = vld [vmem:[#allocation7 + $0x558] sm:$0xff]
        %v2814 = vld [vmem:[#allocation7 + $0x560] sm:$0xf]
        %v2815 = vld [vmem:[#allocation7 + $0x564] sm:$0xff]
        %v2816 = vld [vmem:[#allocation7 + $0x56c] sm:$0xf]
        %v2817 = vld [vmem:[#allocation7 + $0x570] sm:$0xff]
        %v2818 = vld [vmem:[#allocation7 + $0x578] sm:$0xf]
        %v2819 = vld [vmem:[#allocation7 + $0x57c] sm:$0xff]
        %v2820 = vld [vmem:[#allocation7 + $0x584] sm:$0xf]
        %v2821 = vld [vmem:[#allocation7 + $0x588] sm:$0xff]
        %v2822 = vld [vmem:[#allocation7 + $0x590] sm:$0xf]
        %v2823 = vld [vmem:[#allocation7 + $0x594] sm:$0xff]
        %v2824 = vld [vmem:[#allocation7 + $0x59c] sm:$0xf]
        %v2825 = vld [vmem:[#allocation7 + $0x5a0] sm:$0xff]
        %v2826 = vld [vmem:[#allocation7 + $0x5a8] sm:$0xf]
        %v2827 = vld [vmem:[#allocation7 + $0x5ac] sm:$0xff]
        %v2828 = vld [vmem:[#allocation7 + $0x5b4] sm:$0xf]
        %v2829 = vld [vmem:[#allocation7 + $0x5b8] sm:$0xff]
        %v2830 = vld [vmem:[#allocation7 + $0x5c0] sm:$0xf]
        %v2831 = vld [vmem:[#allocation7 + $0x5c4] sm:$0xff]
        %v2832 = vld [vmem:[#allocation7 + $0x5cc] sm:$0xf]
        %v2833 = vld [vmem:[#allocation7 + $0x5d0] sm:$0xff]
        %v2834 = vld [vmem:[#allocation7 + $0x5d8] sm:$0xf]
        %v2835 = vld [vmem:[#allocation7 + $0x5dc] sm:$0xff]
        %v2836 = vld [vmem:[#allocation7 + $0x5e4] sm:$0xf]
        %v2837 = vld [vmem:[#allocation7 + $0x5e8] sm:$0xff]
        %v2838 = vld [vmem:[#allocation7 + $0x5f0] sm:$0xf]
        %v2839 = vld [vmem:[#allocation7 + $0x5f4] sm:$0xff]
        %v2840 = vld [vmem:[#allocation7 + $0x5fc] sm:$0xf]
        %v2841 = vld [vmem:[#allocation7 + $0x600] sm:$0xff]
        %v2842 = vld [vmem:[#allocation7 + $0x608] sm:$0xf]
        %v2843 = vld [vmem:[#allocation7 + $0x60c] sm:$0xff]
        %v2844 = vld [vmem:[#allocation7 + $0x614] sm:$0xf]
        %v2845 = vld [vmem:[#allocation7 + $0x618] sm:$0xff]
        %v2846 = vld [vmem:[#allocation7 + $0x620] sm:$0xf]
        %v2847 = vld [vmem:[#allocation7 + $0x624] sm:$0xff]
        %v2848 = vld [vmem:[#allocation7 + $0x62c] sm:$0xf]
        %v2849 = vld [vmem:[#allocation7 + $0x630] sm:$0xff]
        %v2850 = vld [vmem:[#allocation7 + $0x638] sm:$0xf]
        %v2851 = vld [vmem:[#allocation7 + $0x63c] sm:$0xff]
        %v2852 = vld [vmem:[#allocation7 + $0x644] sm:$0xf]
        %v2853 = vld [vmem:[#allocation7 + $0x648] sm:$0xff]
        %v2854 = vld [vmem:[#allocation7 + $0x650] sm:$0xf]
        %v2855 = vld [vmem:[#allocation7 + $0x654] sm:$0xff]
        %v2856 = vld [vmem:[#allocation7 + $0x65c] sm:$0xf]
        %v2857 = vld [vmem:[#allocation7 + $0x660] sm:$0xff]
        %v2858 = vld [vmem:[#allocation7 + $0x668] sm:$0xf]
        %v2859 = vld [vmem:[#allocation7 + $0x66c] sm:$0xff]
        %v2860 = vld [vmem:[#allocation7 + $0x674] sm:$0xf]
        %v2861 = vld [vmem:[#allocation7 + $0x678] sm:$0xff]
        %v2862 = vld [vmem:[#allocation7 + $0x680] sm:$0xf]
        %v2863 = vld [vmem:[#allocation7 + $0x684] sm:$0xff]
        %v2864 = vld [vmem:[#allocation7 + $0x68c] sm:$0xf]
        %v2865 = vld [vmem:[#allocation7 + $0x690] sm:$0xff]
        %v2866 = vld [vmem:[#allocation7 + $0x698] sm:$0xf]
        %v2867 = vld [vmem:[#allocation7 + $0x69c] sm:$0xff]
        %v2868 = vld [vmem:[#allocation7 + $0x6a4] sm:$0xf]
        %v2869 = vld [vmem:[#allocation7 + $0x6a8] sm:$0xff]
        %v2870 = vld [vmem:[#allocation7 + $0x6b0] sm:$0xf]
        %v2871 = vld [vmem:[#allocation7 + $0x6b4] sm:$0xff]
        %v2872 = vld [vmem:[#allocation7 + $0x6bc] sm:$0xf]
        %v2873 = vld [vmem:[#allocation7 + $0x6c0] sm:$0xff]
        %v2874 = vld [vmem:[#allocation7 + $0x6c8] sm:$0xf]
        %v2875 = vld [vmem:[#allocation7 + $0x6cc] sm:$0xff]
        %v2876 = vld [vmem:[#allocation7 + $0x6d4] sm:$0xf]
        %v2877 = vld [vmem:[#allocation7 + $0x6d8] sm:$0xff]
        %v2878 = vld [vmem:[#allocation7 + $0x6e0] sm:$0xf]
        %v2879 = vld [vmem:[#allocation7 + $0x6e4] sm:$0xff]
        %v2880 = vld [vmem:[#allocation7 + $0x6ec] sm:$0xf]
        %v2881 = vld [vmem:[#allocation7 + $0x6f0] sm:$0xff]
        %v2882 = vld [vmem:[#allocation7 + $0x6f8] sm:$0xf]
        %v2883 = vld [vmem:[#allocation7 + $0x6fc] sm:$0xff]
        %v2884 = vld [vmem:[#allocation7 + $0x704] sm:$0xf]
        %v2885 = vld [vmem:[#allocation7 + $0x708] sm:$0xff]
        %v2886 = vld [vmem:[#allocation7 + $0x710] sm:$0xf]
        %v2887 = vld [vmem:[#allocation7 + $0x714] sm:$0xff]
        %v2888 = vld [vmem:[#allocation7 + $0x71c] sm:$0xf]
        %v2889 = vld [vmem:[#allocation7 + $0x720] sm:$0xff]
        %v2890 = vld [vmem:[#allocation7 + $0x728] sm:$0xf]
        %v2891 = vld [vmem:[#allocation7 + $0x72c] sm:$0xff]
        %v2892 = vld [vmem:[#allocation7 + $0x734] sm:$0xf]
        %v2893 = vld [vmem:[#allocation7 + $0x738] sm:$0xff]
        %v2894 = vld [vmem:[#allocation7 + $0x740] sm:$0xf]
        %v2895 = vld [vmem:[#allocation7 + $0x744] sm:$0xff]
        %v2896 = vld [vmem:[#allocation7 + $0x74c] sm:$0xf]
        %v2897 = vld [vmem:[#allocation7 + $0x750] sm:$0xff]
        %v2898 = vld [vmem:[#allocation7 + $0x758] sm:$0xf]
        %v2899 = vld [vmem:[#allocation7 + $0x75c] sm:$0xff]
        %v2900 = vld [vmem:[#allocation7 + $0x764] sm:$0xf]
        %v2901 = vld [vmem:[#allocation7 + $0x768] sm:$0xff]
        %v2902 = vld [vmem:[#allocation7 + $0x770] sm:$0xf]
        %v2903 = vld [vmem:[#allocation7 + $0x774] sm:$0xff]
        %v2904 = vld [vmem:[#allocation7 + $0x77c] sm:$0xf]
        %v2905 = vld [vmem:[#allocation7 + $0x780] sm:$0xff]
        %v2906 = vld [vmem:[#allocation7 + $0x788] sm:$0xf]
        %v2907 = vld [vmem:[#allocation7 + $0x78c] sm:$0xff]
        %v2908 = vld [vmem:[#allocation7 + $0x794] sm:$0xf]
        %v2909 = vld [vmem:[#allocation7 + $0x798] sm:$0xff]
        %v2910 = vld [vmem:[#allocation7 + $0x7a0] sm:$0xf]
        %v2911 = vld [vmem:[#allocation7 + $0x7a4] sm:$0xff]
        %v2912 = vld [vmem:[#allocation7 + $0x7ac] sm:$0xf]
        %v2913 = vld [vmem:[#allocation7 + $0x7b0] sm:$0xff]
        %v2914 = vld [vmem:[#allocation7 + $0x7b8] sm:$0xf]
        %v2915 = vld [vmem:[#allocation7 + $0x7bc] sm:$0xff]
        %v2916 = vld [vmem:[#allocation7 + $0x7c4] sm:$0xf]
        %v2917 = vld [vmem:[#allocation7 + $0x7c8] sm:$0xff]
        %v2918 = vld [vmem:[#allocation7 + $0x7d0] sm:$0xf]
        %v2919 = vld [vmem:[#allocation7 + $0x7d4] sm:$0xff]
        %v2920 = vld [vmem:[#allocation7 + $0x7dc] sm:$0xf]
        %v2921 = vld [vmem:[#allocation7 + $0x7e0] sm:$0xff]
        %v2922 = vld [vmem:[#allocation7 + $0x7e8] sm:$0xf]
        %v2923 = vld [vmem:[#allocation7 + $0x7ec] sm:$0xff]
        %v2924 = vld [vmem:[#allocation7 + $0x7f4] sm:$0xf]
        %v2925 = vld [vmem:[#allocation7 + $0x7f8] sm:$0xff]
        %v2926 = vld [vmem:[#allocation7 + $0x800] sm:$0xf]
        %v2927 = vld [vmem:[#allocation7 + $0x804] sm:$0xff]
        %v2928 = vld [vmem:[#allocation7 + $0x80c] sm:$0xf]
        %v2929 = vld [vmem:[#allocation7 + $0x810] sm:$0xff]
        %v2930 = vld [vmem:[#allocation7 + $0x818] sm:$0xf]
        %v2931 = vld [vmem:[#allocation7 + $0x81c] sm:$0xff]
        %v2932 = vld [vmem:[#allocation7 + $0x824] sm:$0xf]
        %v2933 = vld [vmem:[#allocation7 + $0x828] sm:$0xff]
        %v2934 = vld [vmem:[#allocation7 + $0x830] sm:$0xf]
        %v2935 = vld [vmem:[#allocation7 + $0x834] sm:$0xff]
        %v2936 = vld [vmem:[#allocation7 + $0x83c] sm:$0xf]
        %v2937 = vld [vmem:[#allocation7 + $0x840] sm:$0xff]
        %v2938 = vld [vmem:[#allocation7 + $0x848] sm:$0xf]
        %v2939 = vld [vmem:[#allocation7 + $0x84c] sm:$0xff]
        %v2940 = vld [vmem:[#allocation7 + $0x854] sm:$0xf]
        %v2941 = vld [vmem:[#allocation7 + $0x858] sm:$0xff]
        %v2942 = vld [vmem:[#allocation7 + $0x860] sm:$0xf]
        %v2943 = vld [vmem:[#allocation7 + $0x864] sm:$0xff]
        %v2944 = vld [vmem:[#allocation7 + $0x86c] sm:$0xf]
        %v2945 = vld [vmem:[#allocation7 + $0x870] sm:$0xff]
        %v2946 = vld [vmem:[#allocation7 + $0x878] sm:$0xf]
        %v2947 = vld [vmem:[#allocation7 + $0x87c] sm:$0xff]
        %v2948 = vld [vmem:[#allocation7 + $0x884] sm:$0xf]
        %v2949 = vld [vmem:[#allocation7 + $0x888] sm:$0xff]
        %v2950 = vld [vmem:[#allocation7 + $0x890] sm:$0xf]
        %v2951 = vld [vmem:[#allocation7 + $0x894] sm:$0xff]
        %v2952 = vld [vmem:[#allocation7 + $0x89c] sm:$0xf]
        %v2953 = vld [vmem:[#allocation7 + $0x8a0] sm:$0xff]
        %v2954 = vld [vmem:[#allocation7 + $0x8a8] sm:$0xf]
        %v2955 = vld [vmem:[#allocation7 + $0x8ac] sm:$0xff]
        %v2956 = vld [vmem:[#allocation7 + $0x8b4] sm:$0xf]
        %v2957 = vld [vmem:[#allocation7 + $0x8b8] sm:$0xff]
        %v2958 = vld [vmem:[#allocation7 + $0x8c0] sm:$0xf]
        %v2959 = vld [vmem:[#allocation7 + $0x8c4] sm:$0xff]
        %v2960 = vld [vmem:[#allocation7 + $0x8cc] sm:$0xf]
        %v2961 = vld [vmem:[#allocation7 + $0x8d0] sm:$0xff]
        %v2962 = vld [vmem:[#allocation7 + $0x8d8] sm:$0xf]
        %v2963 = vld [vmem:[#allocation7 + $0x8dc] sm:$0xff]
        %v2964 = vld [vmem:[#allocation7 + $0x8e4] sm:$0xf]
        %v2965 = vld [vmem:[#allocation7 + $0x8e8] sm:$0xff]
        %v2966 = vld [vmem:[#allocation7 + $0x8f0] sm:$0xf]
        %v2967 = vld [vmem:[#allocation7 + $0x8f4] sm:$0xff]
        %v2968 = vld [vmem:[#allocation7 + $0x8fc] sm:$0xf]
        %v2969 = vld [vmem:[%s4] sm:$0x7]
        %v2971 = vlaneseq
        %v2972 = vshrl.u32 %v2971, 7
        %v2973 = vsub.s32 0, %v2972
        %v2974 = vrot.slane %v2969, %v2973
        %v2975 = vlaneseq
        %v2976 = vshrl.u32 %v2975, 7
        %v2977 = vsub.s32 1, %v2976
        %v2978 = vrot.slane %v2969, %v2977
        %v2979 = vlaneseq
        %v2980 = vshrl.u32 %v2979, 7
        %v2981 = vsub.s32 2, %v2980
        %v2982 = vrot.slane %v2969, %v2981
        %v3370 = vunpack.c.l.b16 %v2585
        %v3371 = vunpack.c.h.b16 %v2585
        %v3372 = vunpack.c.l.b16 %v2586
        %v3373 = vunpack.c.l.b16 %v2587
        %v3374 = vunpack.c.h.b16 %v2587
        %v3375 = vunpack.c.l.b16 %v2588
        %v3376 = vunpack.c.l.b16 %v2589
        %v3377 = vunpack.c.h.b16 %v2589
        %v3378 = vunpack.c.l.b16 %v2590
        %v3379 = vunpack.c.l.b16 %v2591
        %v3380 = vunpack.c.h.b16 %v2591
        %v3381 = vunpack.c.l.b16 %v2592
        %v3382 = vunpack.c.l.b16 %v2593
        %v3383 = vunpack.c.h.b16 %v2593
        %v3384 = vunpack.c.l.b16 %v2594
        %v3385 = vunpack.c.l.b16 %v2595
        %v3386 = vunpack.c.h.b16 %v2595
        %v3387 = vunpack.c.l.b16 %v2596
        %v3388 = vunpack.c.l.b16 %v2597
        %v3389 = vunpack.c.h.b16 %v2597
        %v3390 = vunpack.c.l.b16 %v2598
        %v3391 = vunpack.c.l.b16 %v2599
        %v3392 = vunpack.c.h.b16 %v2599
        %v3393 = vunpack.c.l.b16 %v2600
        %v3394 = vunpack.c.l.b16 %v2601
        %v3395 = vunpack.c.h.b16 %v2601
        %v3396 = vunpack.c.l.b16 %v2602
        %v3397 = vunpack.c.l.b16 %v2603
        %v3398 = vunpack.c.h.b16 %v2603
        %v3399 = vunpack.c.l.b16 %v2604
        %v3400 = vunpack.c.l.b16 %v2605
        %v3401 = vunpack.c.h.b16 %v2605
        %v3402 = vunpack.c.l.b16 %v2606
        %v3403 = vunpack.c.l.b16 %v2607
        %v3404 = vunpack.c.h.b16 %v2607
        %v3405 = vunpack.c.l.b16 %v2608
        %v3406 = vunpack.c.l.b16 %v2609
        %v3407 = vunpack.c.h.b16 %v2609
        %v3408 = vunpack.c.l.b16 %v2610
        %v3409 = vunpack.c.l.b16 %v2611
        %v3410 = vunpack.c.h.b16 %v2611
        %v3411 = vunpack.c.l.b16 %v2612
        %v3412 = vunpack.c.l.b16 %v2613
        %v3413 = vunpack.c.h.b16 %v2613
        %v3414 = vunpack.c.l.b16 %v2614
        %v3415 = vunpack.c.l.b16 %v2615
        %v3416 = vunpack.c.h.b16 %v2615
        %v3417 = vunpack.c.l.b16 %v2616
        %v3418 = vunpack.c.l.b16 %v2617
        %v3419 = vunpack.c.h.b16 %v2617
        %v3420 = vunpack.c.l.b16 %v2618
        %v3421 = vunpack.c.l.b16 %v2619
        %v3422 = vunpack.c.h.b16 %v2619
        %v3423 = vunpack.c.l.b16 %v2620
        %v3424 = vunpack.c.l.b16 %v2621
        %v3425 = vunpack.c.h.b16 %v2621
        %v3426 = vunpack.c.l.b16 %v2622
        %v3427 = vunpack.c.l.b16 %v2623
        %v3428 = vunpack.c.h.b16 %v2623
        %v3429 = vunpack.c.l.b16 %v2624
        %v3430 = vunpack.c.l.b16 %v2625
        %v3431 = vunpack.c.h.b16 %v2625
        %v3432 = vunpack.c.l.b16 %v2626
        %v3433 = vunpack.c.l.b16 %v2627
        %v3434 = vunpack.c.h.b16 %v2627
        %v3435 = vunpack.c.l.b16 %v2628
        %v3436 = vunpack.c.l.b16 %v2629
        %v3437 = vunpack.c.h.b16 %v2629
        %v3438 = vunpack.c.l.b16 %v2630
        %v3439 = vunpack.c.l.b16 %v2631
        %v3440 = vunpack.c.h.b16 %v2631
        %v3441 = vunpack.c.l.b16 %v2632
        %v3442 = vunpack.c.l.b16 %v2633
        %v3443 = vunpack.c.h.b16 %v2633
        %v3444 = vunpack.c.l.b16 %v2634
        %v3445 = vunpack.c.l.b16 %v2635
        %v3446 = vunpack.c.h.b16 %v2635
        %v3447 = vunpack.c.l.b16 %v2636
        %v3448 = vunpack.c.l.b16 %v2637
        %v3449 = vunpack.c.h.b16 %v2637
        %v3450 = vunpack.c.l.b16 %v2638
        %v3451 = vunpack.c.l.b16 %v2639
        %v3452 = vunpack.c.h.b16 %v2639
        %v3453 = vunpack.c.l.b16 %v2640
        %v3454 = vunpack.c.l.b16 %v2641
        %v3455 = vunpack.c.h.b16 %v2641
        %v3456 = vunpack.c.l.b16 %v2642
        %v3457 = vunpack.c.l.b16 %v2643
        %v3458 = vunpack.c.h.b16 %v2643
        %v3459 = vunpack.c.l.b16 %v2644
        %v3460 = vunpack.c.l.b16 %v2645
        %v3461 = vunpack.c.h.b16 %v2645
        %v3462 = vunpack.c.l.b16 %v2646
        %v3463 = vunpack.c.l.b16 %v2647
        %v3464 = vunpack.c.h.b16 %v2647
        %v3465 = vunpack.c.l.b16 %v2648
        %v3466 = vunpack.c.l.b16 %v2649
        %v3467 = vunpack.c.h.b16 %v2649
        %v3468 = vunpack.c.l.b16 %v2650
        %v3469 = vunpack.c.l.b16 %v2651
        %v3470 = vunpack.c.h.b16 %v2651
        %v3471 = vunpack.c.l.b16 %v2652
        %v3472 = vunpack.c.l.b16 %v2653
        %v3473 = vunpack.c.h.b16 %v2653
        %v3474 = vunpack.c.l.b16 %v2654
        %v3475 = vunpack.c.l.b16 %v2655
        %v3476 = vunpack.c.h.b16 %v2655
        %v3477 = vunpack.c.l.b16 %v2656
        %v3478 = vunpack.c.l.b16 %v2657
        %v3479 = vunpack.c.h.b16 %v2657
        %v3480 = vunpack.c.l.b16 %v2658
        %v3481 = vunpack.c.l.b16 %v2659
        %v3482 = vunpack.c.h.b16 %v2659
        %v3483 = vunpack.c.l.b16 %v2660
        %v3484 = vunpack.c.l.b16 %v2661
        %v3485 = vunpack.c.h.b16 %v2661
        %v3486 = vunpack.c.l.b16 %v2662
        %v3487 = vunpack.c.l.b16 %v2663
        %v3488 = vunpack.c.h.b16 %v2663
        %v3489 = vunpack.c.l.b16 %v2664
        %v3490 = vunpack.c.l.b16 %v2665
        %v3491 = vunpack.c.h.b16 %v2665
        %v3492 = vunpack.c.l.b16 %v2666
        %v3493 = vunpack.c.l.b16 %v2667
        %v3494 = vunpack.c.h.b16 %v2667
        %v3495 = vunpack.c.l.b16 %v2668
        %v3496 = vunpack.c.l.b16 %v2669
        %v3497 = vunpack.c.h.b16 %v2669
        %v3498 = vunpack.c.l.b16 %v2670
        %v3499 = vunpack.c.l.b16 %v2671
        %v3500 = vunpack.c.h.b16 %v2671
        %v3501 = vunpack.c.l.b16 %v2672
        %v3502 = vunpack.c.l.b16 %v2673
        %v3503 = vunpack.c.h.b16 %v2673
        %v3504 = vunpack.c.l.b16 %v2674
        %v3505 = vunpack.c.l.b16 %v2675
        %v3506 = vunpack.c.h.b16 %v2675
        %v3507 = vunpack.c.l.b16 %v2676
        %v3508 = vunpack.c.l.b16 %v2677
        %v3509 = vunpack.c.h.b16 %v2677
        %v3510 = vunpack.c.l.b16 %v2678
        %v3511 = vunpack.c.l.b16 %v2679
        %v3512 = vunpack.c.h.b16 %v2679
        %v3513 = vunpack.c.l.b16 %v2680
        %v3514 = vunpack.c.l.b16 %v2681
        %v3515 = vunpack.c.h.b16 %v2681
        %v3516 = vunpack.c.l.b16 %v2682
        %v3517 = vunpack.c.l.b16 %v2683
        %v3518 = vunpack.c.h.b16 %v2683
        %v3519 = vunpack.c.l.b16 %v2684
        %v3520 = vunpack.c.l.b16 %v2685
        %v3521 = vunpack.c.h.b16 %v2685
        %v3522 = vunpack.c.l.b16 %v2686
        %v3523 = vunpack.c.l.b16 %v2687
        %v3524 = vunpack.c.h.b16 %v2687
        %v3525 = vunpack.c.l.b16 %v2688
        %v3526 = vunpack.c.l.b16 %v2689
        %v3527 = vunpack.c.h.b16 %v2689
        %v3528 = vunpack.c.l.b16 %v2690
        %v3529 = vunpack.c.l.b16 %v2691
        %v3530 = vunpack.c.h.b16 %v2691
        %v3531 = vunpack.c.l.b16 %v2692
        %v3532 = vunpack.c.l.b16 %v2693
        %v3533 = vunpack.c.h.b16 %v2693
        %v3534 = vunpack.c.l.b16 %v2694
        %v3535 = vunpack.c.l.b16 %v2695
        %v3536 = vunpack.c.h.b16 %v2695
        %v3537 = vunpack.c.l.b16 %v2696
        %v3538 = vunpack.c.l.b16 %v2697
        %v3539 = vunpack.c.h.b16 %v2697
        %v3540 = vunpack.c.l.b16 %v2698
        %v3541 = vunpack.c.l.b16 %v2699
        %v3542 = vunpack.c.h.b16 %v2699
        %v3543 = vunpack.c.l.b16 %v2700
        %v3544 = vunpack.c.l.b16 %v2701
        %v3545 = vunpack.c.h.b16 %v2701
        %v3546 = vunpack.c.l.b16 %v2702
        %v3547 = vunpack.c.l.b16 %v2703
        %v3548 = vunpack.c.h.b16 %v2703
        %v3549 = vunpack.c.l.b16 %v2704
        %v3550 = vunpack.c.l.b16 %v2705
        %v3551 = vunpack.c.h.b16 %v2705
        %v3552 = vunpack.c.l.b16 %v2706
        %v3553 = vunpack.c.l.b16 %v2707
        %v3554 = vunpack.c.h.b16 %v2707
        %v3555 = vunpack.c.l.b16 %v2708
        %v3556 = vunpack.c.l.b16 %v2709
        %v3557 = vunpack.c.h.b16 %v2709
        %v3558 = vunpack.c.l.b16 %v2710
        %v3559 = vunpack.c.l.b16 %v2711
        %v3560 = vunpack.c.h.b16 %v2711
        %v3561 = vunpack.c.l.b16 %v2712
        %v3562 = vunpack.c.l.b16 %v2713
        %v3563 = vunpack.c.h.b16 %v2713
        %v3564 = vunpack.c.l.b16 %v2714
        %v3565 = vunpack.c.l.b16 %v2715
        %v3566 = vunpack.c.h.b16 %v2715
        %v3567 = vunpack.c.l.b16 %v2716
        %v3568 = vunpack.c.l.b16 %v2717
        %v3569 = vunpack.c.h.b16 %v2717
        %v3570 = vunpack.c.l.b16 %v2718
        %v3571 = vunpack.c.l.b16 %v2719
        %v3572 = vunpack.c.h.b16 %v2719
        %v3573 = vunpack.c.l.b16 %v2720
        %v3574 = vunpack.c.l.b16 %v2721
        %v3575 = vunpack.c.h.b16 %v2721
        %v3576 = vunpack.c.l.b16 %v2722
        %v3577 = vunpack.c.l.b16 %v2723
        %v3578 = vunpack.c.h.b16 %v2723
        %v3579 = vunpack.c.l.b16 %v2724
        %v3580 = vunpack.c.l.b16 %v2725
        %v3581 = vunpack.c.h.b16 %v2725
        %v3582 = vunpack.c.l.b16 %v2726
        %v3583 = vunpack.c.l.b16 %v2727
        %v3584 = vunpack.c.h.b16 %v2727
        %v3585 = vunpack.c.l.b16 %v2728
        %v3586 = vunpack.c.l.b16 %v2729
        %v3587 = vunpack.c.h.b16 %v2729
        %v3588 = vunpack.c.l.b16 %v2730
        %v3589 = vunpack.c.l.b16 %v2731
        %v3590 = vunpack.c.h.b16 %v2731
        %v3591 = vunpack.c.l.b16 %v2732
        %v3592 = vunpack.c.l.b16 %v2733
        %v3593 = vunpack.c.h.b16 %v2733
        %v3594 = vunpack.c.l.b16 %v2734
        %v3595 = vunpack.c.l.b16 %v2735
        %v3596 = vunpack.c.h.b16 %v2735
        %v3597 = vunpack.c.l.b16 %v2736
        %v3598 = vunpack.c.l.b16 %v2737
        %v3599 = vunpack.c.h.b16 %v2737
        %v3600 = vunpack.c.l.b16 %v2738
        %v3601 = vunpack.c.l.b16 %v2739
        %v3602 = vunpack.c.h.b16 %v2739
        %v3603 = vunpack.c.l.b16 %v2740
        %v3604 = vunpack.c.l.b16 %v2741
        %v3605 = vunpack.c.h.b16 %v2741
        %v3606 = vunpack.c.l.b16 %v2742
        %v3607 = vunpack.c.l.b16 %v2743
        %v3608 = vunpack.c.h.b16 %v2743
        %v3609 = vunpack.c.l.b16 %v2744
        %v3610 = vunpack.c.l.b16 %v2745
        %v3611 = vunpack.c.h.b16 %v2745
        %v3612 = vunpack.c.l.b16 %v2746
        %v3613 = vunpack.c.l.b16 %v2747
        %v3614 = vunpack.c.h.b16 %v2747
        %v3615 = vunpack.c.l.b16 %v2748
        %v3616 = vunpack.c.l.b16 %v2749
        %v3617 = vunpack.c.h.b16 %v2749
        %v3618 = vunpack.c.l.b16 %v2750
        %v3619 = vunpack.c.l.b16 %v2751
        %v3620 = vunpack.c.h.b16 %v2751
        %v3621 = vunpack.c.l.b16 %v2752
        %v3622 = vunpack.c.l.b16 %v2753
        %v3623 = vunpack.c.h.b16 %v2753
        %v3624 = vunpack.c.l.b16 %v2754
        %v3625 = vunpack.c.l.b16 %v2755
        %v3626 = vunpack.c.h.b16 %v2755
        %v3627 = vunpack.c.l.b16 %v2756
        %v3628 = vunpack.c.l.b16 %v2757
        %v3629 = vunpack.c.h.b16 %v2757
        %v3630 = vunpack.c.l.b16 %v2758
        %v3631 = vunpack.c.l.b16 %v2759
        %v3632 = vunpack.c.h.b16 %v2759
        %v3633 = vunpack.c.l.b16 %v2760
        %v3634 = vunpack.c.l.b16 %v2761
        %v3635 = vunpack.c.h.b16 %v2761
        %v3636 = vunpack.c.l.b16 %v2762
        %v3637 = vunpack.c.l.b16 %v2763
        %v3638 = vunpack.c.h.b16 %v2763
        %v3639 = vunpack.c.l.b16 %v2764
        %v3640 = vunpack.c.l.b16 %v2765
        %v3641 = vunpack.c.h.b16 %v2765
        %v3642 = vunpack.c.l.b16 %v2766
        %v3643 = vunpack.c.l.b16 %v2767
        %v3644 = vunpack.c.h.b16 %v2767
        %v3645 = vunpack.c.l.b16 %v2768
        %v3646 = vunpack.c.l.b16 %v2769
        %v3647 = vunpack.c.h.b16 %v2769
        %v3648 = vunpack.c.l.b16 %v2770
        %v3649 = vunpack.c.l.b16 %v2771
        %v3650 = vunpack.c.h.b16 %v2771
        %v3651 = vunpack.c.l.b16 %v2772
        %v3652 = vunpack.c.l.b16 %v2773
        %v3653 = vunpack.c.h.b16 %v2773
        %v3654 = vunpack.c.l.b16 %v2774
        %v3655 = vunpack.c.l.b16 %v2775
        %v3656 = vunpack.c.h.b16 %v2775
        %v3657 = vunpack.c.l.b16 %v2776
        %v3658 = vunpack.c.l.b16 %v2777
        %v3659 = vunpack.c.h.b16 %v2777
        %v3660 = vunpack.c.l.b16 %v2778
        %v3661 = vunpack.c.l.b16 %v2779
        %v3662 = vunpack.c.h.b16 %v2779
        %v3663 = vunpack.c.l.b16 %v2780
        %v3664 = vunpack.c.l.b16 %v2781
        %v3665 = vunpack.c.h.b16 %v2781
        %v3666 = vunpack.c.l.b16 %v2782
        %v3667 = vunpack.c.l.b16 %v2783
        %v3668 = vunpack.c.h.b16 %v2783
        %v3669 = vunpack.c.l.b16 %v2784
        %v3670 = vunpack.c.l.b16 %v2785
        %v3671 = vunpack.c.h.b16 %v2785
        %v3672 = vunpack.c.l.b16 %v2786
        %v3673 = vunpack.c.l.b16 %v2787
        %v3674 = vunpack.c.h.b16 %v2787
        %v3675 = vunpack.c.l.b16 %v2788
        %v3676 = vunpack.c.l.b16 %v2789
        %v3677 = vunpack.c.h.b16 %v2789
        %v3678 = vunpack.c.l.b16 %v2790
        %v3679 = vunpack.c.l.b16 %v2791
        %v3680 = vunpack.c.h.b16 %v2791
        %v3681 = vunpack.c.l.b16 %v2792
        %v3682 = vunpack.c.l.b16 %v2793
        %v3683 = vunpack.c.h.b16 %v2793
        %v3684 = vunpack.c.l.b16 %v2794
        %v3685 = vunpack.c.l.b16 %v2795
        %v3686 = vunpack.c.h.b16 %v2795
        %v3687 = vunpack.c.l.b16 %v2796
        %v3688 = vunpack.c.l.b16 %v2797
        %v3689 = vunpack.c.h.b16 %v2797
        %v3690 = vunpack.c.l.b16 %v2798
        %v3691 = vunpack.c.l.b16 %v2799
        %v3692 = vunpack.c.h.b16 %v2799
        %v3693 = vunpack.c.l.b16 %v2800
        %v3694 = vunpack.c.l.b16 %v2801
        %v3695 = vunpack.c.h.b16 %v2801
        %v3696 = vunpack.c.l.b16 %v2802
        %v3697 = vunpack.c.l.b16 %v2803
        %v3698 = vunpack.c.h.b16 %v2803
        %v3699 = vunpack.c.l.b16 %v2804
        %v3700 = vunpack.c.l.b16 %v2805
        %v3701 = vunpack.c.h.b16 %v2805
        %v3702 = vunpack.c.l.b16 %v2806
        %v3703 = vunpack.c.l.b16 %v2807
        %v3704 = vunpack.c.h.b16 %v2807
        %v3705 = vunpack.c.l.b16 %v2808
        %v3706 = vunpack.c.l.b16 %v2809
        %v3707 = vunpack.c.h.b16 %v2809
        %v3708 = vunpack.c.l.b16 %v2810
        %v3709 = vunpack.c.l.b16 %v2811
        %v3710 = vunpack.c.h.b16 %v2811
        %v3711 = vunpack.c.l.b16 %v2812
        %v3712 = vunpack.c.l.b16 %v2813
        %v3713 = vunpack.c.h.b16 %v2813
        %v3714 = vunpack.c.l.b16 %v2814
        %v3715 = vunpack.c.l.b16 %v2815
        %v3716 = vunpack.c.h.b16 %v2815
        %v3717 = vunpack.c.l.b16 %v2816
        %v3718 = vunpack.c.l.b16 %v2817
        %v3719 = vunpack.c.h.b16 %v2817
        %v3720 = vunpack.c.l.b16 %v2818
        %v3721 = vunpack.c.l.b16 %v2819
        %v3722 = vunpack.c.h.b16 %v2819
        %v3723 = vunpack.c.l.b16 %v2820
        %v3724 = vunpack.c.l.b16 %v2821
        %v3725 = vunpack.c.h.b16 %v2821
        %v3726 = vunpack.c.l.b16 %v2822
        %v3727 = vunpack.c.l.b16 %v2823
        %v3728 = vunpack.c.h.b16 %v2823
        %v3729 = vunpack.c.l.b16 %v2824
        %v3730 = vunpack.c.l.b16 %v2825
        %v3731 = vunpack.c.h.b16 %v2825
        %v3732 = vunpack.c.l.b16 %v2826
        %v3733 = vunpack.c.l.b16 %v2827
        %v3734 = vunpack.c.h.b16 %v2827
        %v3735 = vunpack.c.l.b16 %v2828
        %v3736 = vunpack.c.l.b16 %v2829
        %v3737 = vunpack.c.h.b16 %v2829
        %v3738 = vunpack.c.l.b16 %v2830
        %v3739 = vunpack.c.l.b16 %v2831
        %v3740 = vunpack.c.h.b16 %v2831
        %v3741 = vunpack.c.l.b16 %v2832
        %v3742 = vunpack.c.l.b16 %v2833
        %v3743 = vunpack.c.h.b16 %v2833
        %v3744 = vunpack.c.l.b16 %v2834
        %v3745 = vunpack.c.l.b16 %v2835
        %v3746 = vunpack.c.h.b16 %v2835
        %v3747 = vunpack.c.l.b16 %v2836
        %v3748 = vunpack.c.l.b16 %v2837
        %v3749 = vunpack.c.h.b16 %v2837
        %v3750 = vunpack.c.l.b16 %v2838
        %v3751 = vunpack.c.l.b16 %v2839
        %v3752 = vunpack.c.h.b16 %v2839
        %v3753 = vunpack.c.l.b16 %v2840
        %v3754 = vunpack.c.l.b16 %v2841
        %v3755 = vunpack.c.h.b16 %v2841
        %v3756 = vunpack.c.l.b16 %v2842
        %v3757 = vunpack.c.l.b16 %v2843
        %v3758 = vunpack.c.h.b16 %v2843
        %v3759 = vunpack.c.l.b16 %v2844
        %v3760 = vunpack.c.l.b16 %v2845
        %v3761 = vunpack.c.h.b16 %v2845
        %v3762 = vunpack.c.l.b16 %v2846
        %v3763 = vunpack.c.l.b16 %v2847
        %v3764 = vunpack.c.h.b16 %v2847
        %v3765 = vunpack.c.l.b16 %v2848
        %v3766 = vunpack.c.l.b16 %v2849
        %v3767 = vunpack.c.h.b16 %v2849
        %v3768 = vunpack.c.l.b16 %v2850
        %v3769 = vunpack.c.l.b16 %v2851
        %v3770 = vunpack.c.h.b16 %v2851
        %v3771 = vunpack.c.l.b16 %v2852
        %v3772 = vunpack.c.l.b16 %v2853
        %v3773 = vunpack.c.h.b16 %v2853
        %v3774 = vunpack.c.l.b16 %v2854
        %v3775 = vunpack.c.l.b16 %v2855
        %v3776 = vunpack.c.h.b16 %v2855
        %v3777 = vunpack.c.l.b16 %v2856
        %v3778 = vunpack.c.l.b16 %v2857
        %v3779 = vunpack.c.h.b16 %v2857
        %v3780 = vunpack.c.l.b16 %v2858
        %v3781 = vunpack.c.l.b16 %v2859
        %v3782 = vunpack.c.h.b16 %v2859
        %v3783 = vunpack.c.l.b16 %v2860
        %v3784 = vunpack.c.l.b16 %v2861
        %v3785 = vunpack.c.h.b16 %v2861
        %v3786 = vunpack.c.l.b16 %v2862
        %v3787 = vunpack.c.l.b16 %v2863
        %v3788 = vunpack.c.h.b16 %v2863
        %v3789 = vunpack.c.l.b16 %v2864
        %v3790 = vunpack.c.l.b16 %v2865
        %v3791 = vunpack.c.h.b16 %v2865
        %v3792 = vunpack.c.l.b16 %v2866
        %v3793 = vunpack.c.l.b16 %v2867
        %v3794 = vunpack.c.h.b16 %v2867
        %v3795 = vunpack.c.l.b16 %v2868
        %v3796 = vunpack.c.l.b16 %v2869
        %v3797 = vunpack.c.h.b16 %v2869
        %v3798 = vunpack.c.l.b16 %v2870
        %v3799 = vunpack.c.l.b16 %v2871
        %v3800 = vunpack.c.h.b16 %v2871
        %v3801 = vunpack.c.l.b16 %v2872
        %v3802 = vunpack.c.l.b16 %v2873
        %v3803 = vunpack.c.h.b16 %v2873
        %v3804 = vunpack.c.l.b16 %v2874
        %v3805 = vunpack.c.l.b16 %v2875
        %v3806 = vunpack.c.h.b16 %v2875
        %v3807 = vunpack.c.l.b16 %v2876
        %v3808 = vunpack.c.l.b16 %v2877
        %v3809 = vunpack.c.h.b16 %v2877
        %v3810 = vunpack.c.l.b16 %v2878
        %v3811 = vunpack.c.l.b16 %v2879
        %v3812 = vunpack.c.h.b16 %v2879
        %v3813 = vunpack.c.l.b16 %v2880
        %v3814 = vunpack.c.l.b16 %v2881
        %v3815 = vunpack.c.h.b16 %v2881
        %v3816 = vunpack.c.l.b16 %v2882
        %v3817 = vunpack.c.l.b16 %v2883
        %v3818 = vunpack.c.h.b16 %v2883
        %v3819 = vunpack.c.l.b16 %v2884
        %v3820 = vunpack.c.l.b16 %v2885
        %v3821 = vunpack.c.h.b16 %v2885
        %v3822 = vunpack.c.l.b16 %v2886
        %v3823 = vunpack.c.l.b16 %v2887
        %v3824 = vunpack.c.h.b16 %v2887
        %v3825 = vunpack.c.l.b16 %v2888
        %v3826 = vunpack.c.l.b16 %v2889
        %v3827 = vunpack.c.h.b16 %v2889
        %v3828 = vunpack.c.l.b16 %v2890
        %v3829 = vunpack.c.l.b16 %v2891
        %v3830 = vunpack.c.h.b16 %v2891
        %v3831 = vunpack.c.l.b16 %v2892
        %v3832 = vunpack.c.l.b16 %v2893
        %v3833 = vunpack.c.h.b16 %v2893
        %v3834 = vunpack.c.l.b16 %v2894
        %v3835 = vunpack.c.l.b16 %v2895
        %v3836 = vunpack.c.h.b16 %v2895
        %v3837 = vunpack.c.l.b16 %v2896
        %v3838 = vunpack.c.l.b16 %v2897
        %v3839 = vunpack.c.h.b16 %v2897
        %v3840 = vunpack.c.l.b16 %v2898
        %v3841 = vunpack.c.l.b16 %v2899
        %v3842 = vunpack.c.h.b16 %v2899
        %v3843 = vunpack.c.l.b16 %v2900
        %v3844 = vunpack.c.l.b16 %v2901
        %v3845 = vunpack.c.h.b16 %v2901
        %v3846 = vunpack.c.l.b16 %v2902
        %v3847 = vunpack.c.l.b16 %v2903
        %v3848 = vunpack.c.h.b16 %v2903
        %v3849 = vunpack.c.l.b16 %v2904
        %v3850 = vunpack.c.l.b16 %v2905
        %v3851 = vunpack.c.h.b16 %v2905
        %v3852 = vunpack.c.l.b16 %v2906
        %v3853 = vunpack.c.l.b16 %v2907
        %v3854 = vunpack.c.h.b16 %v2907
        %v3855 = vunpack.c.l.b16 %v2908
        %v3856 = vunpack.c.l.b16 %v2909
        %v3857 = vunpack.c.h.b16 %v2909
        %v3858 = vunpack.c.l.b16 %v2910
        %v3859 = vunpack.c.l.b16 %v2911
        %v3860 = vunpack.c.h.b16 %v2911
        %v3861 = vunpack.c.l.b16 %v2912
        %v3862 = vunpack.c.l.b16 %v2913
        %v3863 = vunpack.c.h.b16 %v2913
        %v3864 = vunpack.c.l.b16 %v2914
        %v3865 = vunpack.c.l.b16 %v2915
        %v3866 = vunpack.c.h.b16 %v2915
        %v3867 = vunpack.c.l.b16 %v2916
        %v3868 = vunpack.c.l.b16 %v2917
        %v3869 = vunpack.c.h.b16 %v2917
        %v3870 = vunpack.c.l.b16 %v2918
        %v3871 = vunpack.c.l.b16 %v2919
        %v3872 = vunpack.c.h.b16 %v2919
        %v3873 = vunpack.c.l.b16 %v2920
        %v3874 = vunpack.c.l.b16 %v2921
        %v3875 = vunpack.c.h.b16 %v2921
        %v3876 = vunpack.c.l.b16 %v2922
        %v3877 = vunpack.c.l.b16 %v2923
        %v3878 = vunpack.c.h.b16 %v2923
        %v3879 = vunpack.c.l.b16 %v2924
        %v3880 = vunpack.c.l.b16 %v2925
        %v3881 = vunpack.c.h.b16 %v2925
        %v3882 = vunpack.c.l.b16 %v2926
        %v3883 = vunpack.c.l.b16 %v2927
        %v3884 = vunpack.c.h.b16 %v2927
        %v3885 = vunpack.c.l.b16 %v2928
        %v3886 = vunpack.c.l.b16 %v2929
        %v3887 = vunpack.c.h.b16 %v2929
        %v3888 = vunpack.c.l.b16 %v2930
        %v3889 = vunpack.c.l.b16 %v2931
        %v3890 = vunpack.c.h.b16 %v2931
        %v3891 = vunpack.c.l.b16 %v2932
        %v3892 = vunpack.c.l.b16 %v2933
        %v3893 = vunpack.c.h.b16 %v2933
        %v3894 = vunpack.c.l.b16 %v2934
        %v3895 = vunpack.c.l.b16 %v2935
        %v3896 = vunpack.c.h.b16 %v2935
        %v3897 = vunpack.c.l.b16 %v2936
        %v3898 = vunpack.c.l.b16 %v2937
        %v3899 = vunpack.c.h.b16 %v2937
        %v3900 = vunpack.c.l.b16 %v2938
        %v3901 = vunpack.c.l.b16 %v2939
        %v3902 = vunpack.c.h.b16 %v2939
        %v3903 = vunpack.c.l.b16 %v2940
        %v3904 = vunpack.c.l.b16 %v2941
        %v3905 = vunpack.c.h.b16 %v2941
        %v3906 = vunpack.c.l.b16 %v2942
        %v3907 = vunpack.c.l.b16 %v2943
        %v3908 = vunpack.c.h.b16 %v2943
        %v3909 = vunpack.c.l.b16 %v2944
        %v3910 = vunpack.c.l.b16 %v2945
        %v3911 = vunpack.c.h.b16 %v2945
        %v3912 = vunpack.c.l.b16 %v2946
        %v3913 = vunpack.c.l.b16 %v2947
        %v3914 = vunpack.c.h.b16 %v2947
        %v3915 = vunpack.c.l.b16 %v2948
        %v3916 = vunpack.c.l.b16 %v2949
        %v3917 = vunpack.c.h.b16 %v2949
        %v3918 = vunpack.c.l.b16 %v2950
        %v3919 = vunpack.c.l.b16 %v2951
        %v3920 = vunpack.c.h.b16 %v2951
        %v3921 = vunpack.c.l.b16 %v2952
        %v3922 = vunpack.c.l.b16 %v2953
        %v3923 = vunpack.c.h.b16 %v2953
        %v3924 = vunpack.c.l.b16 %v2954
        %v3925 = vunpack.c.l.b16 %v2955
        %v3926 = vunpack.c.h.b16 %v2955
        %v3927 = vunpack.c.l.b16 %v2956
        %v3928 = vunpack.c.l.b16 %v2957
        %v3929 = vunpack.c.h.b16 %v2957
        %v3930 = vunpack.c.l.b16 %v2958
        %v3931 = vunpack.c.l.b16 %v2959
        %v3932 = vunpack.c.h.b16 %v2959
        %v3933 = vunpack.c.l.b16 %v2960
        %v3934 = vunpack.c.l.b16 %v2961
        %v3935 = vunpack.c.h.b16 %v2961
        %v3936 = vunpack.c.l.b16 %v2962
        %v3937 = vunpack.c.l.b16 %v2963
        %v3938 = vunpack.c.h.b16 %v2963
        %v3939 = vunpack.c.l.b16 %v2964
        %v3940 = vunpack.c.l.b16 %v2965
        %v3941 = vunpack.c.h.b16 %v2965
        %v3942 = vunpack.c.l.b16 %v2966
        %v3943 = vunpack.c.l.b16 %v2967
        %v3944 = vunpack.c.h.b16 %v2967
        %v3945 = vunpack.c.l.b16 %v2968
        %v3946 = vpack.c.b16 %v3373, %v3370
        %v3947 = vpack.c.b16 %v3374, %v3371
        %v3948 = vpack.c.b16 %v3375, %v3372
        %v3949 = vpack.c.b16 %v3379, %v3376
        %v3950 = vpack.c.b16 %v3380, %v3377
        %v3951 = vpack.c.b16 %v3381, %v3378
        %v3952 = vpack.c.b16 %v3385, %v3382
        %v3953 = vpack.c.b16 %v3386, %v3383
        %v3954 = vpack.c.b16 %v3387, %v3384
        %v3955 = vpack.c.b16 %v3391, %v3388
        %v3956 = vpack.c.b16 %v3392, %v3389
        %v3957 = vpack.c.b16 %v3393, %v3390
        %v3958 = vpack.c.b16 %v3397, %v3394
        %v3959 = vpack.c.b16 %v3398, %v3395
        %v3960 = vpack.c.b16 %v3399, %v3396
        %v3961 = vpack.c.b16 %v3403, %v3400
        %v3962 = vpack.c.b16 %v3404, %v3401
        %v3963 = vpack.c.b16 %v3405, %v3402
        %v3964 = vpack.c.b16 %v3409, %v3406
        %v3965 = vpack.c.b16 %v3410, %v3407
        %v3966 = vpack.c.b16 %v3411, %v3408
        %v3967 = vpack.c.b16 %v3415, %v3412
        %v3968 = vpack.c.b16 %v3416, %v3413
        %v3969 = vpack.c.b16 %v3417, %v3414
        %v3970 = vpack.c.b16 %v3421, %v3418
        %v3971 = vpack.c.b16 %v3422, %v3419
        %v3972 = vpack.c.b16 %v3423, %v3420
        %v3973 = vpack.c.b16 %v3427, %v3424
        %v3974 = vpack.c.b16 %v3428, %v3425
        %v3975 = vpack.c.b16 %v3429, %v3426
        %v3976 = vpack.c.b16 %v3433, %v3430
        %v3977 = vpack.c.b16 %v3434, %v3431
        %v3978 = vpack.c.b16 %v3435, %v3432
        %v3979 = vpack.c.b16 %v3439, %v3436
        %v3980 = vpack.c.b16 %v3440, %v3437
        %v3981 = vpack.c.b16 %v3441, %v3438
        %v3982 = vpack.c.b16 %v3445, %v3442
        %v3983 = vpack.c.b16 %v3446, %v3443
        %v3984 = vpack.c.b16 %v3447, %v3444
        %v3985 = vpack.c.b16 %v3451, %v3448
        %v3986 = vpack.c.b16 %v3452, %v3449
        %v3987 = vpack.c.b16 %v3453, %v3450
        %v3988 = vpack.c.b16 %v3457, %v3454
        %v3989 = vpack.c.b16 %v3458, %v3455
        %v3990 = vpack.c.b16 %v3459, %v3456
        %v3991 = vpack.c.b16 %v3463, %v3460
        %v3992 = vpack.c.b16 %v3464, %v3461
        %v3993 = vpack.c.b16 %v3465, %v3462
        %v3994 = vpack.c.b16 %v3469, %v3466
        %v3995 = vpack.c.b16 %v3470, %v3467
        %v3996 = vpack.c.b16 %v3471, %v3468
        %v3997 = vpack.c.b16 %v3475, %v3472
        %v3998 = vpack.c.b16 %v3476, %v3473
        %v3999 = vpack.c.b16 %v3477, %v3474
        %v4000 = vpack.c.b16 %v3481, %v3478
        %v4001 = vpack.c.b16 %v3482, %v3479
        %v4002 = vpack.c.b16 %v3483, %v3480
        %v4003 = vpack.c.b16 %v3487, %v3484
        %v4004 = vpack.c.b16 %v3488, %v3485
        %v4005 = vpack.c.b16 %v3489, %v3486
        %v4006 = vpack.c.b16 %v3493, %v3490
        %v4007 = vpack.c.b16 %v3494, %v3491
        %v4008 = vpack.c.b16 %v3495, %v3492
        %v4009 = vpack.c.b16 %v3499, %v3496
        %v4010 = vpack.c.b16 %v3500, %v3497
        %v4011 = vpack.c.b16 %v3501, %v3498
        %v4012 = vpack.c.b16 %v3505, %v3502
        %v4013 = vpack.c.b16 %v3506, %v3503
        %v4014 = vpack.c.b16 %v3507, %v3504
        %v4015 = vpack.c.b16 %v3511, %v3508
        %v4016 = vpack.c.b16 %v3512, %v3509
        %v4017 = vpack.c.b16 %v3513, %v3510
        %v4018 = vpack.c.b16 %v3517, %v3514
        %v4019 = vpack.c.b16 %v3518, %v3515
        %v4020 = vpack.c.b16 %v3519, %v3516
        %v4021 = vpack.c.b16 %v3523, %v3520
        %v4022 = vpack.c.b16 %v3524, %v3521
        %v4023 = vpack.c.b16 %v3525, %v3522
        %v4024 = vpack.c.b16 %v3529, %v3526
        %v4025 = vpack.c.b16 %v3530, %v3527
        %v4026 = vpack.c.b16 %v3531, %v3528
        %v4027 = vpack.c.b16 %v3535, %v3532
        %v4028 = vpack.c.b16 %v3536, %v3533
        %v4029 = vpack.c.b16 %v3537, %v3534
        %v4030 = vpack.c.b16 %v3541, %v3538
        %v4031 = vpack.c.b16 %v3542, %v3539
        %v4032 = vpack.c.b16 %v3543, %v3540
        %v4033 = vpack.c.b16 %v3547, %v3544
        %v4034 = vpack.c.b16 %v3548, %v3545
        %v4035 = vpack.c.b16 %v3549, %v3546
        %v4036 = vpack.c.b16 %v3553, %v3550
        %v4037 = vpack.c.b16 %v3554, %v3551
        %v4038 = vpack.c.b16 %v3555, %v3552
        %v4039 = vpack.c.b16 %v3559, %v3556
        %v4040 = vpack.c.b16 %v3560, %v3557
        %v4041 = vpack.c.b16 %v3561, %v3558
        %v4042 = vpack.c.b16 %v3565, %v3562
        %v4043 = vpack.c.b16 %v3566, %v3563
        %v4044 = vpack.c.b16 %v3567, %v3564
        %v4045 = vpack.c.b16 %v3571, %v3568
        %v4046 = vpack.c.b16 %v3572, %v3569
        %v4047 = vpack.c.b16 %v3573, %v3570
        %v4048 = vpack.c.b16 %v3577, %v3574
        %v4049 = vpack.c.b16 %v3578, %v3575
        %v4050 = vpack.c.b16 %v3579, %v3576
        %v4051 = vpack.c.b16 %v3583, %v3580
        %v4052 = vpack.c.b16 %v3584, %v3581
        %v4053 = vpack.c.b16 %v3585, %v3582
        %v4054 = vpack.c.b16 %v3589, %v3586
        %v4055 = vpack.c.b16 %v3590, %v3587
        %v4056 = vpack.c.b16 %v3591, %v3588
        %v4057 = vpack.c.b16 %v3595, %v3592
        %v4058 = vpack.c.b16 %v3596, %v3593
        %v4059 = vpack.c.b16 %v3597, %v3594
        %v4060 = vpack.c.b16 %v3601, %v3598
        %v4061 = vpack.c.b16 %v3602, %v3599
        %v4062 = vpack.c.b16 %v3603, %v3600
        %v4063 = vpack.c.b16 %v3607, %v3604
        %v4064 = vpack.c.b16 %v3608, %v3605
        %v4065 = vpack.c.b16 %v3609, %v3606
        %v4066 = vpack.c.b16 %v3613, %v3610
        %v4067 = vpack.c.b16 %v3614, %v3611
        %v4068 = vpack.c.b16 %v3615, %v3612
        %v4069 = vpack.c.b16 %v3619, %v3616
        %v4070 = vpack.c.b16 %v3620, %v3617
        %v4071 = vpack.c.b16 %v3621, %v3618
        %v4072 = vpack.c.b16 %v3625, %v3622
        %v4073 = vpack.c.b16 %v3626, %v3623
        %v4074 = vpack.c.b16 %v3627, %v3624
        %v4075 = vpack.c.b16 %v3631, %v3628
        %v4076 = vpack.c.b16 %v3632, %v3629
        %v4077 = vpack.c.b16 %v3633, %v3630
        %v4078 = vpack.c.b16 %v3637, %v3634
        %v4079 = vpack.c.b16 %v3638, %v3635
        %v4080 = vpack.c.b16 %v3639, %v3636
        %v4081 = vpack.c.b16 %v3643, %v3640
        %v4082 = vpack.c.b16 %v3644, %v3641
        %v4083 = vpack.c.b16 %v3645, %v3642
        %v4084 = vpack.c.b16 %v3649, %v3646
        %v4085 = vpack.c.b16 %v3650, %v3647
        %v4086 = vpack.c.b16 %v3651, %v3648
        %v4087 = vpack.c.b16 %v3655, %v3652
        %v4088 = vpack.c.b16 %v3656, %v3653
        %v4089 = vpack.c.b16 %v3657, %v3654
        %v4090 = vpack.c.b16 %v3661, %v3658
        %v4091 = vpack.c.b16 %v3662, %v3659
        %v4092 = vpack.c.b16 %v3663, %v3660
        %v4093 = vpack.c.b16 %v3667, %v3664
        %v4094 = vpack.c.b16 %v3668, %v3665
        %v4095 = vpack.c.b16 %v3669, %v3666
        %v4096 = vpack.c.b16 %v3673, %v3670
        %v4097 = vpack.c.b16 %v3674, %v3671
        %v4098 = vpack.c.b16 %v3675, %v3672
        %v4099 = vpack.c.b16 %v3679, %v3676
        %v4100 = vpack.c.b16 %v3680, %v3677
        %v4101 = vpack.c.b16 %v3681, %v3678
        %v4102 = vpack.c.b16 %v3685, %v3682
        %v4103 = vpack.c.b16 %v3686, %v3683
        %v4104 = vpack.c.b16 %v3687, %v3684
        %v4105 = vpack.c.b16 %v3691, %v3688
        %v4106 = vpack.c.b16 %v3692, %v3689
        %v4107 = vpack.c.b16 %v3693, %v3690
        %v4108 = vpack.c.b16 %v3697, %v3694
        %v4109 = vpack.c.b16 %v3698, %v3695
        %v4110 = vpack.c.b16 %v3699, %v3696
        %v4111 = vpack.c.b16 %v3703, %v3700
        %v4112 = vpack.c.b16 %v3704, %v3701
        %v4113 = vpack.c.b16 %v3705, %v3702
        %v4114 = vpack.c.b16 %v3709, %v3706
        %v4115 = vpack.c.b16 %v3710, %v3707
        %v4116 = vpack.c.b16 %v3711, %v3708
        %v4117 = vpack.c.b16 %v3715, %v3712
        %v4118 = vpack.c.b16 %v3716, %v3713
        %v4119 = vpack.c.b16 %v3717, %v3714
        %v4120 = vpack.c.b16 %v3721, %v3718
        %v4121 = vpack.c.b16 %v3722, %v3719
        %v4122 = vpack.c.b16 %v3723, %v3720
        %v4123 = vpack.c.b16 %v3727, %v3724
        %v4124 = vpack.c.b16 %v3728, %v3725
        %v4125 = vpack.c.b16 %v3729, %v3726
        %v4126 = vpack.c.b16 %v3733, %v3730
        %v4127 = vpack.c.b16 %v3734, %v3731
        %v4128 = vpack.c.b16 %v3735, %v3732
        %v4129 = vpack.c.b16 %v3739, %v3736
        %v4130 = vpack.c.b16 %v3740, %v3737
        %v4131 = vpack.c.b16 %v3741, %v3738
        %v4132 = vpack.c.b16 %v3745, %v3742
        %v4133 = vpack.c.b16 %v3746, %v3743
        %v4134 = vpack.c.b16 %v3747, %v3744
        %v4135 = vpack.c.b16 %v3751, %v3748
        %v4136 = vpack.c.b16 %v3752, %v3749
        %v4137 = vpack.c.b16 %v3753, %v3750
        %v4138 = vpack.c.b16 %v3757, %v3754
        %v4139 = vpack.c.b16 %v3758, %v3755
        %v4140 = vpack.c.b16 %v3759, %v3756
        %v4141 = vpack.c.b16 %v3763, %v3760
        %v4142 = vpack.c.b16 %v3764, %v3761
        %v4143 = vpack.c.b16 %v3765, %v3762
        %v4144 = vpack.c.b16 %v3769, %v3766
        %v4145 = vpack.c.b16 %v3770, %v3767
        %v4146 = vpack.c.b16 %v3771, %v3768
        %v4147 = vpack.c.b16 %v3775, %v3772
        %v4148 = vpack.c.b16 %v3776, %v3773
        %v4149 = vpack.c.b16 %v3777, %v3774
        %v4150 = vpack.c.b16 %v3781, %v3778
        %v4151 = vpack.c.b16 %v3782, %v3779
        %v4152 = vpack.c.b16 %v3783, %v3780
        %v4153 = vpack.c.b16 %v3787, %v3784
        %v4154 = vpack.c.b16 %v3788, %v3785
        %v4155 = vpack.c.b16 %v3789, %v3786
        %v4156 = vpack.c.b16 %v3793, %v3790
        %v4157 = vpack.c.b16 %v3794, %v3791
        %v4158 = vpack.c.b16 %v3795, %v3792
        %v4159 = vpack.c.b16 %v3799, %v3796
        %v4160 = vpack.c.b16 %v3800, %v3797
        %v4161 = vpack.c.b16 %v3801, %v3798
        %v4162 = vpack.c.b16 %v3805, %v3802
        %v4163 = vpack.c.b16 %v3806, %v3803
        %v4164 = vpack.c.b16 %v3807, %v3804
        %v4165 = vpack.c.b16 %v3811, %v3808
        %v4166 = vpack.c.b16 %v3812, %v3809
        %v4167 = vpack.c.b16 %v3813, %v3810
        %v4168 = vpack.c.b16 %v3817, %v3814
        %v4169 = vpack.c.b16 %v3818, %v3815
        %v4170 = vpack.c.b16 %v3819, %v3816
        %v4171 = vpack.c.b16 %v3823, %v3820
        %v4172 = vpack.c.b16 %v3824, %v3821
        %v4173 = vpack.c.b16 %v3825, %v3822
        %v4174 = vpack.c.b16 %v3829, %v3826
        %v4175 = vpack.c.b16 %v3830, %v3827
        %v4176 = vpack.c.b16 %v3831, %v3828
        %v4177 = vpack.c.b16 %v3835, %v3832
        %v4178 = vpack.c.b16 %v3836, %v3833
        %v4179 = vpack.c.b16 %v3837, %v3834
        %v4180 = vpack.c.b16 %v3841, %v3838
        %v4181 = vpack.c.b16 %v3842, %v3839
        %v4182 = vpack.c.b16 %v3843, %v3840
        %v4183 = vpack.c.b16 %v3847, %v3844
        %v4184 = vpack.c.b16 %v3848, %v3845
        %v4185 = vpack.c.b16 %v3849, %v3846
        %v4186 = vpack.c.b16 %v3853, %v3850
        %v4187 = vpack.c.b16 %v3854, %v3851
        %v4188 = vpack.c.b16 %v3855, %v3852
        %v4189 = vpack.c.b16 %v3859, %v3856
        %v4190 = vpack.c.b16 %v3860, %v3857
        %v4191 = vpack.c.b16 %v3861, %v3858
        %v4192 = vpack.c.b16 %v3865, %v3862
        %v4193 = vpack.c.b16 %v3866, %v3863
        %v4194 = vpack.c.b16 %v3867, %v3864
        %v4195 = vpack.c.b16 %v3871, %v3868
        %v4196 = vpack.c.b16 %v3872, %v3869
        %v4197 = vpack.c.b16 %v3873, %v3870
        %v4198 = vpack.c.b16 %v3877, %v3874
        %v4199 = vpack.c.b16 %v3878, %v3875
        %v4200 = vpack.c.b16 %v3879, %v3876
        %v4201 = vpack.c.b16 %v3883, %v3880
        %v4202 = vpack.c.b16 %v3884, %v3881
        %v4203 = vpack.c.b16 %v3885, %v3882
        %v4204 = vpack.c.b16 %v3889, %v3886
        %v4205 = vpack.c.b16 %v3890, %v3887
        %v4206 = vpack.c.b16 %v3891, %v3888
        %v4207 = vpack.c.b16 %v3895, %v3892
        %v4208 = vpack.c.b16 %v3896, %v3893
        %v4209 = vpack.c.b16 %v3897, %v3894
        %v4210 = vpack.c.b16 %v3901, %v3898
        %v4211 = vpack.c.b16 %v3902, %v3899
        %v4212 = vpack.c.b16 %v3903, %v3900
        %v4213 = vpack.c.b16 %v3907, %v3904
        %v4214 = vpack.c.b16 %v3908, %v3905
        %v4215 = vpack.c.b16 %v3909, %v3906
        %v4216 = vpack.c.b16 %v3913, %v3910
        %v4217 = vpack.c.b16 %v3914, %v3911
        %v4218 = vpack.c.b16 %v3915, %v3912
        %v4219 = vpack.c.b16 %v3919, %v3916
        %v4220 = vpack.c.b16 %v3920, %v3917
        %v4221 = vpack.c.b16 %v3921, %v3918
        %v4222 = vpack.c.b16 %v3925, %v3922
        %v4223 = vpack.c.b16 %v3926, %v3923
        %v4224 = vpack.c.b16 %v3927, %v3924
        %v4225 = vpack.c.b16 %v3931, %v3928
        %v4226 = vpack.c.b16 %v3932, %v3929
        %v4227 = vpack.c.b16 %v3933, %v3930
        %v4228 = vpack.c.b16 %v3937, %v3934
        %v4229 = vpack.c.b16 %v3938, %v3935
        %v4230 = vpack.c.b16 %v3939, %v3936
        %v4231 = vpack.c.b16 %v3943, %v3940
        %v4232 = vpack.c.b16 %v3944, %v3941
        %v4233 = vpack.c.b16 %v3945, %v3942
        %4522 = vmatprep.subr.bf16.mxu0 %v3968
        %4523 = vmatpush1.bf16.msra.mxu0 %v3967
        %4524 = vmatprep.subr.bf16.mxu0 %v3965
        %4525 = vmatpush1.bf16.msra.mxu0 %v3964
        %4526 = vmatprep.subr.bf16.mxu0 %v3962
        %4527 = vmatpush1.bf16.msra.mxu0 %v3961
        %4528 = vmatprep.subr.bf16.mxu0 %v3959
        %4529 = vmatpush1.bf16.msra.mxu0 %v3958
        %4530 = vmatprep.subr.bf16.mxu0 %v3956
        %4531 = vmatpush1.bf16.msra.mxu0 %v3955
        %4532 = vmatprep.subr.bf16.mxu0 %v3953
        %4533 = vmatpush1.bf16.msra.mxu0 %v3952
        %4534 = vmatprep.subr.bf16.mxu0 %v3950
        %4535 = vmatpush1.bf16.msra.mxu0 %v3949
        %4536 = vmatprep.subr.bf16.mxu0 %v3947
        %4537 = vmatpush1.bf16.msra.mxu0 %v3946
        %4538 = vmatprep.subr.bf16.mxu0 %v3992
        %4539 = vmatpush2.bf16.msra.mxu0 %v3991
        %4540 = vmatprep.subr.bf16.mxu0 %v3989
        %4541 = vmatpush2.bf16.msra.mxu0 %v3988
        %4542 = vmatprep.subr.bf16.mxu0 %v3986
        %4543 = vmatpush2.bf16.msra.mxu0 %v3985
        %4544 = vmatprep.subr.bf16.mxu0 %v3983
        %4545 = vmatpush2.bf16.msra.mxu0 %v3982
        %4546 = vmatprep.subr.bf16.mxu0 %v3980
        %4547 = vmatpush2.bf16.msra.mxu0 %v3979
        %4548 = vmatprep.subr.bf16.mxu0 %v3977
        %4549 = vmatpush2.bf16.msra.mxu0 %v3976
        %4550 = vmatprep.subr.bf16.mxu0 %v3974
        %4551 = vmatpush2.bf16.msra.mxu0 %v3973
        %4552 = vmatprep.subr.bf16.mxu0 %v3971
        %4553 = vmatpush2.bf16.msra.mxu0 %v3970
        %4554 = vmatprep.mubr.bf16.mxu0 %v2574
        %4555 = vmatmul.mubr.bf16.gmra.mxu0 %v2573
        %v4556 = vpop.f32.mrf.mxu0
        %v4557 = vadd.f32 %v2974, %v4556
        %v4558 = vpop.f32.mrf.mxu0
        %v4559 = vadd.f32 %v2978, %v4558
        %v4560 = vpop.f32.mrf.mxu0
        %v4561 = vpop.f32.mrf.mxu0
        %4562 = vdwg.mxu0
        %4563 = vmatprep.subr.bf16.mxu0 %v4016
        %4564 = vmatpush1.bf16.msra.mxu0 %v4015
        %4565 = vmatprep.subr.bf16.mxu0 %v4013
        %4566 = vmatpush1.bf16.msra.mxu0 %v4012
        %4567 = vmatprep.subr.bf16.mxu0 %v4010
        %4568 = vmatpush1.bf16.msra.mxu0 %v4009
        %4569 = vmatprep.subr.bf16.mxu0 %v4007
        %4570 = vmatpush1.bf16.msra.mxu0 %v4006
        %4571 = vmatprep.subr.bf16.mxu0 %v4004
        %4572 = vmatpush1.bf16.msra.mxu0 %v4003
        %4573 = vmatprep.subr.bf16.mxu0 %v4001
        %4574 = vmatpush1.bf16.msra.mxu0 %v4000
        %4575 = vmatprep.subr.bf16.mxu0 %v3998
        %4576 = vmatpush1.bf16.msra.mxu0 %v3997
        %4577 = vmatprep.subr.bf16.mxu0 %v3995
        %4578 = vmatpush1.bf16.msra.mxu0 %v3994
        %4579 = vmatprep.subr.bf16.mxu0 %v4040
        %4580 = vmatpush2.bf16.msra.mxu0 %v4039
        %4581 = vmatprep.subr.bf16.mxu0 %v4037
        %4582 = vmatpush2.bf16.msra.mxu0 %v4036
        %4583 = vmatprep.subr.bf16.mxu0 %v4034
        %4584 = vmatpush2.bf16.msra.mxu0 %v4033
        %4585 = vmatprep.subr.bf16.mxu0 %v4031
        %4586 = vmatpush2.bf16.msra.mxu0 %v4030
        %4587 = vmatprep.subr.bf16.mxu0 %v4028
        %4588 = vmatpush2.bf16.msra.mxu0 %v4027
        %4589 = vmatprep.subr.bf16.mxu0 %v4025
        %4590 = vmatpush2.bf16.msra.mxu0 %v4024
        %4591 = vmatprep.subr.bf16.mxu0 %v4022
        %4592 = vmatpush2.bf16.msra.mxu0 %v4021
        %4593 = vmatprep.subr.bf16.mxu0 %v4019
        %4594 = vmatpush2.bf16.msra.mxu0 %v4018
        %4595 = vmatprep.mubr.bf16.mxu0 %v2576
        %4596 = vmatmul.mubr.bf16.gmra.mxu0 %v2575
        %v4597 = vpop.f32.mrf.mxu0
        %v4598 = vadd.f32 %v4557, %v4597
        %v4599 = vpop.f32.mrf.mxu0
        %v4600 = vadd.f32 %v4559, %v4599
        %v4601 = vpop.f32.mrf.mxu0
        %v4602 = vpop.f32.mrf.mxu0
        %4603 = vdwg.mxu0
        %4604 = vmatprep.subr.bf16.mxu0 %v4064
        %4605 = vmatpush1.bf16.msra.mxu0 %v4063
        %4606 = vmatprep.subr.bf16.mxu0 %v4061
        %4607 = vmatpush1.bf16.msra.mxu0 %v4060
        %4608 = vmatprep.subr.bf16.mxu0 %v4058
        %4609 = vmatpush1.bf16.msra.mxu0 %v4057
        %4610 = vmatprep.subr.bf16.mxu0 %v4055
        %4611 = vmatpush1.bf16.msra.mxu0 %v4054
        %4612 = vmatprep.subr.bf16.mxu0 %v4052
        %4613 = vmatpush1.bf16.msra.mxu0 %v4051
        %4614 = vmatprep.subr.bf16.mxu0 %v4049
        %4615 = vmatpush1.bf16.msra.mxu0 %v4048
        %4616 = vmatprep.subr.bf16.mxu0 %v4046
        %4617 = vmatpush1.bf16.msra.mxu0 %v4045
        %4618 = vmatprep.subr.bf16.mxu0 %v4043
        %4619 = vmatpush1.bf16.msra.mxu0 %v4042
        %4620 = vmatprep.subr.bf16.mxu0 %v4088
        %4621 = vmatpush2.bf16.msra.mxu0 %v4087
        %4622 = vmatprep.subr.bf16.mxu0 %v4085
        %4623 = vmatpush2.bf16.msra.mxu0 %v4084
        %4624 = vmatprep.subr.bf16.mxu0 %v4082
        %4625 = vmatpush2.bf16.msra.mxu0 %v4081
        %4626 = vmatprep.subr.bf16.mxu0 %v4079
        %4627 = vmatpush2.bf16.msra.mxu0 %v4078
        %4628 = vmatprep.subr.bf16.mxu0 %v4076
        %4629 = vmatpush2.bf16.msra.mxu0 %v4075
        %4630 = vmatprep.subr.bf16.mxu0 %v4073
        %4631 = vmatpush2.bf16.msra.mxu0 %v4072
        %4632 = vmatprep.subr.bf16.mxu0 %v4070
        %4633 = vmatpush2.bf16.msra.mxu0 %v4069
        %4634 = vmatprep.subr.bf16.mxu0 %v4067
        %4635 = vmatpush2.bf16.msra.mxu0 %v4066
        %4636 = vmatprep.mubr.bf16.mxu0 %v2578
        %4637 = vmatmul.mubr.bf16.gmra.mxu0 %v2577
        %v4638 = vpop.f32.mrf.mxu0
        %v4639 = vadd.f32 %v4598, %v4638
        %v4640 = vpop.f32.mrf.mxu0
        %v4641 = vadd.f32 %v4600, %v4640
        %v4642 = vpop.f32.mrf.mxu0
        %v4643 = vpop.f32.mrf.mxu0
        %4644 = vdwg.mxu0
        %4645 = vmatprep.subr.bf16.mxu0 %v4112
        %4646 = vmatpush1.bf16.msra.mxu0 %v4111
        %4647 = vmatprep.subr.bf16.mxu0 %v4109
        %4648 = vmatpush1.bf16.msra.mxu0 %v4108
        %4649 = vmatprep.subr.bf16.mxu0 %v4106
        %4650 = vmatpush1.bf16.msra.mxu0 %v4105
        %4651 = vmatprep.subr.bf16.mxu0 %v4103
        %4652 = vmatpush1.bf16.msra.mxu0 %v4102
        %4653 = vmatprep.subr.bf16.mxu0 %v4100
        %4654 = vmatpush1.bf16.msra.mxu0 %v4099
        %4655 = vmatprep.subr.bf16.mxu0 %v4097
        %4656 = vmatpush1.bf16.msra.mxu0 %v4096
        %4657 = vmatprep.subr.bf16.mxu0 %v4094
        %4658 = vmatpush1.bf16.msra.mxu0 %v4093
        %4659 = vmatprep.subr.bf16.mxu0 %v4091
        %4660 = vmatpush1.bf16.msra.mxu0 %v4090
        %4661 = vmatprep.subr.bf16.mxu0 %v4136
        %4662 = vmatpush2.bf16.msra.mxu0 %v4135
        %4663 = vmatprep.subr.bf16.mxu0 %v4133
        %4664 = vmatpush2.bf16.msra.mxu0 %v4132
        %4665 = vmatprep.subr.bf16.mxu0 %v4130
        %4666 = vmatpush2.bf16.msra.mxu0 %v4129
        %4667 = vmatprep.subr.bf16.mxu0 %v4127
        %4668 = vmatpush2.bf16.msra.mxu0 %v4126
        %4669 = vmatprep.subr.bf16.mxu0 %v4124
        %4670 = vmatpush2.bf16.msra.mxu0 %v4123
        %4671 = vmatprep.subr.bf16.mxu0 %v4121
        %4672 = vmatpush2.bf16.msra.mxu0 %v4120
        %4673 = vmatprep.subr.bf16.mxu0 %v4118
        %4674 = vmatpush2.bf16.msra.mxu0 %v4117
        %4675 = vmatprep.subr.bf16.mxu0 %v4115
        %4676 = vmatpush2.bf16.msra.mxu0 %v4114
        %4677 = vmatprep.mubr.bf16.mxu0 %v2580
        %4678 = vmatmul.mubr.bf16.gmra.mxu0 %v2579
        %v4679 = vpop.f32.mrf.mxu0
        %v4680 = vadd.f32 %v4639, %v4679
        %v4681 = vpop.f32.mrf.mxu0
        %v4682 = vadd.f32 %v4641, %v4681
        %v4683 = vpop.f32.mrf.mxu0
        %v4684 = vpop.f32.mrf.mxu0
        %4685 = vdwg.mxu0
        %4686 = vmatprep.subr.bf16.mxu0 %v4160
        %4687 = vmatpush1.bf16.msra.mxu0 %v4159
        %4688 = vmatprep.subr.bf16.mxu0 %v4157
        %4689 = vmatpush1.bf16.msra.mxu0 %v4156
        %4690 = vmatprep.subr.bf16.mxu0 %v4154
        %4691 = vmatpush1.bf16.msra.mxu0 %v4153
        %4692 = vmatprep.subr.bf16.mxu0 %v4151
        %4693 = vmatpush1.bf16.msra.mxu0 %v4150
        %4694 = vmatprep.subr.bf16.mxu0 %v4148
        %4695 = vmatpush1.bf16.msra.mxu0 %v4147
        %4696 = vmatprep.subr.bf16.mxu0 %v4145
        %4697 = vmatpush1.bf16.msra.mxu0 %v4144
        %4698 = vmatprep.subr.bf16.mxu0 %v4142
        %4699 = vmatpush1.bf16.msra.mxu0 %v4141
        %4700 = vmatprep.subr.bf16.mxu0 %v4139
        %4701 = vmatpush1.bf16.msra.mxu0 %v4138
        %4702 = vmatprep.subr.bf16.mxu0 %v4184
        %4703 = vmatpush2.bf16.msra.mxu0 %v4183
        %4704 = vmatprep.subr.bf16.mxu0 %v4181
        %4705 = vmatpush2.bf16.msra.mxu0 %v4180
        %4706 = vmatprep.subr.bf16.mxu0 %v4178
        %4707 = vmatpush2.bf16.msra.mxu0 %v4177
        %4708 = vmatprep.subr.bf16.mxu0 %v4175
        %4709 = vmatpush2.bf16.msra.mxu0 %v4174
        %4710 = vmatprep.subr.bf16.mxu0 %v4172
        %4711 = vmatpush2.bf16.msra.mxu0 %v4171
        %4712 = vmatprep.subr.bf16.mxu0 %v4169
        %4713 = vmatpush2.bf16.msra.mxu0 %v4168
        %4714 = vmatprep.subr.bf16.mxu0 %v4166
        %4715 = vmatpush2.bf16.msra.mxu0 %v4165
        %4716 = vmatprep.subr.bf16.mxu0 %v4163
        %4717 = vmatpush2.bf16.msra.mxu0 %v4162
        %4718 = vmatprep.mubr.bf16.mxu0 %v2582
        %4719 = vmatmul.mubr.bf16.gmra.mxu0 %v2581
        %v4720 = vpop.f32.mrf.mxu0
        %v4721 = vadd.f32 %v4680, %v4720
        %v4722 = vpop.f32.mrf.mxu0
        %v4723 = vadd.f32 %v4682, %v4722
        %v4724 = vpop.f32.mrf.mxu0
        %v4725 = vpop.f32.mrf.mxu0
        %4726 = vdwg.mxu0
        %4727 = vmatprep.subr.bf16.mxu0 %v4208
        %4728 = vmatpush1.bf16.msra.mxu0 %v4207
        %4729 = vmatprep.subr.bf16.mxu0 %v4205
        %4730 = vmatpush1.bf16.msra.mxu0 %v4204
        %4731 = vmatprep.subr.bf16.mxu0 %v4202
        %4732 = vmatpush1.bf16.msra.mxu0 %v4201
        %4733 = vmatprep.subr.bf16.mxu0 %v4199
        %4734 = vmatpush1.bf16.msra.mxu0 %v4198
        %4735 = vmatprep.subr.bf16.mxu0 %v4196
        %4736 = vmatpush1.bf16.msra.mxu0 %v4195
        %4737 = vmatprep.subr.bf16.mxu0 %v4193
        %4738 = vmatpush1.bf16.msra.mxu0 %v4192
        %4739 = vmatprep.subr.bf16.mxu0 %v4190
        %4740 = vmatpush1.bf16.msra.mxu0 %v4189
        %4741 = vmatprep.subr.bf16.mxu0 %v4187
        %4742 = vmatpush1.bf16.msra.mxu0 %v4186
        %4743 = vmatprep.subr.bf16.mxu0 %v4232
        %4744 = vmatpush2.bf16.msra.mxu0 %v4231
        %4745 = vmatprep.subr.bf16.mxu0 %v4229
        %4746 = vmatpush2.bf16.msra.mxu0 %v4228
        %4747 = vmatprep.subr.bf16.mxu0 %v4226
        %4748 = vmatpush2.bf16.msra.mxu0 %v4225
        %4749 = vmatprep.subr.bf16.mxu0 %v4223
        %4750 = vmatpush2.bf16.msra.mxu0 %v4222
        %4751 = vmatprep.subr.bf16.mxu0 %v4220
        %4752 = vmatpush2.bf16.msra.mxu0 %v4219
        %4753 = vmatprep.subr.bf16.mxu0 %v4217
        %4754 = vmatpush2.bf16.msra.mxu0 %v4216
        %4755 = vmatprep.subr.bf16.mxu0 %v4214
        %4756 = vmatpush2.bf16.msra.mxu0 %v4213
        %4757 = vmatprep.subr.bf16.mxu0 %v4211
        %4758 = vmatpush2.bf16.msra.mxu0 %v4210
        %4759 = vmatprep.mubr.bf16.mxu0 %v2584
        %4760 = vmatmul.mubr.bf16.gmra.mxu0 %v2583
        %v4761 = vpop.f32.mrf.mxu0
        %v4762 = vadd.f32 %v4721, %v4761
        %v4763 = vpop.f32.mrf.mxu0
        %v4764 = vadd.f32 %v4723, %v4763
        %v4765 = vpop.f32.mrf.mxu0
        %v4766 = vpop.f32.mrf.mxu0
        %4767 = vdwg.mxu0
        %4768 = vmatprep.subr.bf16.mxu0 0
        %4769 = vmatpush1.bf16.msra.mxu0 %v3969
        %4770 = vmatprep.subr.bf16.mxu0 0
        %4771 = vmatpush1.bf16.msra.mxu0 %v3966
        %4772 = vmatprep.subr.bf16.mxu0 0
        %4773 = vmatpush1.bf16.msra.mxu0 %v3963
        %4774 = vmatprep.subr.bf16.mxu0 0
        %4775 = vmatpush1.bf16.msra.mxu0 %v3960
        %4776 = vmatprep.subr.bf16.mxu0 0
        %4777 = vmatpush1.bf16.msra.mxu0 %v3957
        %4778 = vmatprep.subr.bf16.mxu0 0
        %4779 = vmatpush1.bf16.msra.mxu0 %v3954
        %4780 = vmatprep.subr.bf16.mxu0 0
        %4781 = vmatpush1.bf16.msra.mxu0 %v3951
        %4782 = vmatprep.subr.bf16.mxu0 0
        %4783 = vmatpush1.bf16.msra.mxu0 %v3948
        %4784 = vmatprep.subr.bf16.mxu0 0
        %4785 = vmatpush2.bf16.msra.mxu0 %v3993
        %4786 = vmatprep.subr.bf16.mxu0 0
        %4787 = vmatpush2.bf16.msra.mxu0 %v3990
        %4788 = vmatprep.subr.bf16.mxu0 0
        %4789 = vmatpush2.bf16.msra.mxu0 %v3987
        %4790 = vmatprep.subr.bf16.mxu0 0
        %4791 = vmatpush2.bf16.msra.mxu0 %v3984
        %4792 = vmatprep.subr.bf16.mxu0 0
        %4793 = vmatpush2.bf16.msra.mxu0 %v3981
        %4794 = vmatprep.subr.bf16.mxu0 0
        %4795 = vmatpush2.bf16.msra.mxu0 %v3978
        %4796 = vmatprep.subr.bf16.mxu0 0
        %4797 = vmatpush2.bf16.msra.mxu0 %v3975
        %4798 = vmatprep.subr.bf16.mxu0 0
        %4799 = vmatpush2.bf16.msra.mxu0 %v3972
        %4800 = vmatprep.mubr.bf16.mxu0 %v2574
        %4801 = vmatmul.mubr.bf16.gmra.mxu0 %v2573
        %v4802 = vpop.f32.mrf.mxu0
        %v4803 = vadd.f32 %v2982, %v4802
        %v4804 = vpop.f32.mrf.mxu0
        %v4805 = vpop.f32.mrf.mxu0
        %v4806 = vpop.f32.mrf.mxu0
        %4807 = vdwg.mxu0
        %4808 = vmatprep.subr.bf16.mxu0 0
        %4809 = vmatpush1.bf16.msra.mxu0 %v4017
        %4810 = vmatprep.subr.bf16.mxu0 0
        %4811 = vmatpush1.bf16.msra.mxu0 %v4014
        %4812 = vmatprep.subr.bf16.mxu0 0
        %4813 = vmatpush1.bf16.msra.mxu0 %v4011
        %4814 = vmatprep.subr.bf16.mxu0 0
        %4815 = vmatpush1.bf16.msra.mxu0 %v4008
        %4816 = vmatprep.subr.bf16.mxu0 0
        %4817 = vmatpush1.bf16.msra.mxu0 %v4005
        %4818 = vmatprep.subr.bf16.mxu0 0
        %4819 = vmatpush1.bf16.msra.mxu0 %v4002
        %4820 = vmatprep.subr.bf16.mxu0 0
        %4821 = vmatpush1.bf16.msra.mxu0 %v3999
        %4822 = vmatprep.subr.bf16.mxu0 0
        %4823 = vmatpush1.bf16.msra.mxu0 %v3996
        %4824 = vmatprep.subr.bf16.mxu0 0
        %4825 = vmatpush2.bf16.msra.mxu0 %v4041
        %4826 = vmatprep.subr.bf16.mxu0 0
        %4827 = vmatpush2.bf16.msra.mxu0 %v4038
        %4828 = vmatprep.subr.bf16.mxu0 0
        %4829 = vmatpush2.bf16.msra.mxu0 %v4035
        %4830 = vmatprep.subr.bf16.mxu0 0
        %4831 = vmatpush2.bf16.msra.mxu0 %v4032
        %4832 = vmatprep.subr.bf16.mxu0 0
        %4833 = vmatpush2.bf16.msra.mxu0 %v4029
        %4834 = vmatprep.subr.bf16.mxu0 0
        %4835 = vmatpush2.bf16.msra.mxu0 %v4026
        %4836 = vmatprep.subr.bf16.mxu0 0
        %4837 = vmatpush2.bf16.msra.mxu0 %v4023
        %4838 = vmatprep.subr.bf16.mxu0 0
        %4839 = vmatpush2.bf16.msra.mxu0 %v4020
        %4840 = vmatprep.mubr.bf16.mxu0 %v2576
        %4841 = vmatmul.mubr.bf16.gmra.mxu0 %v2575
        %v4842 = vpop.f32.mrf.mxu0
        %v4843 = vadd.f32 %v4803, %v4842
        %v4844 = vpop.f32.mrf.mxu0
        %v4845 = vpop.f32.mrf.mxu0
        %v4846 = vpop.f32.mrf.mxu0
        %4847 = vdwg.mxu0
        %4848 = vmatprep.subr.bf16.mxu0 0
        %4849 = vmatpush1.bf16.msra.mxu0 %v4065
        %4850 = vmatprep.subr.bf16.mxu0 0
        %4851 = vmatpush1.bf16.msra.mxu0 %v4062
        %4852 = vmatprep.subr.bf16.mxu0 0
        %4853 = vmatpush1.bf16.msra.mxu0 %v4059
        %4854 = vmatprep.subr.bf16.mxu0 0
        %4855 = vmatpush1.bf16.msra.mxu0 %v4056
        %4856 = vmatprep.subr.bf16.mxu0 0
        %4857 = vmatpush1.bf16.msra.mxu0 %v4053
        %4858 = vmatprep.subr.bf16.mxu0 0
        %4859 = vmatpush1.bf16.msra.mxu0 %v4050
        %4860 = vmatprep.subr.bf16.mxu0 0
        %4861 = vmatpush1.bf16.msra.mxu0 %v4047
        %4862 = vmatprep.subr.bf16.mxu0 0
        %4863 = vmatpush1.bf16.msra.mxu0 %v4044
        %4864 = vmatprep.subr.bf16.mxu0 0
        %4865 = vmatpush2.bf16.msra.mxu0 %v4089
        %4866 = vmatprep.subr.bf16.mxu0 0
        %4867 = vmatpush2.bf16.msra.mxu0 %v4086
        %4868 = vmatprep.subr.bf16.mxu0 0
        %4869 = vmatpush2.bf16.msra.mxu0 %v4083
        %4870 = vmatprep.subr.bf16.mxu0 0
        %4871 = vmatpush2.bf16.msra.mxu0 %v4080
        %4872 = vmatprep.subr.bf16.mxu0 0
        %4873 = vmatpush2.bf16.msra.mxu0 %v4077
        %4874 = vmatprep.subr.bf16.mxu0 0
        %4875 = vmatpush2.bf16.msra.mxu0 %v4074
        %4876 = vmatprep.subr.bf16.mxu0 0
        %4877 = vmatpush2.bf16.msra.mxu0 %v4071
        %4878 = vmatprep.subr.bf16.mxu0 0
        %4879 = vmatpush2.bf16.msra.mxu0 %v4068
        %4880 = vmatprep.mubr.bf16.mxu0 %v2578
        %4881 = vmatmul.mubr.bf16.gmra.mxu0 %v2577
        %v4882 = vpop.f32.mrf.mxu0
        %v4883 = vadd.f32 %v4843, %v4882
        %v4884 = vpop.f32.mrf.mxu0
        %v4885 = vpop.f32.mrf.mxu0
        %v4886 = vpop.f32.mrf.mxu0
        %4887 = vdwg.mxu0
        %4888 = vmatprep.subr.bf16.mxu0 0
        %4889 = vmatpush1.bf16.msra.mxu0 %v4113
        %4890 = vmatprep.subr.bf16.mxu0 0
        %4891 = vmatpush1.bf16.msra.mxu0 %v4110
        %4892 = vmatprep.subr.bf16.mxu0 0
        %4893 = vmatpush1.bf16.msra.mxu0 %v4107
        %4894 = vmatprep.subr.bf16.mxu0 0
        %4895 = vmatpush1.bf16.msra.mxu0 %v4104
        %4896 = vmatprep.subr.bf16.mxu0 0
        %4897 = vmatpush1.bf16.msra.mxu0 %v4101
        %4898 = vmatprep.subr.bf16.mxu0 0
        %4899 = vmatpush1.bf16.msra.mxu0 %v4098
        %4900 = vmatprep.subr.bf16.mxu0 0
        %4901 = vmatpush1.bf16.msra.mxu0 %v4095
        %4902 = vmatprep.subr.bf16.mxu0 0
        %4903 = vmatpush1.bf16.msra.mxu0 %v4092
        %4904 = vmatprep.subr.bf16.mxu0 0
        %4905 = vmatpush2.bf16.msra.mxu0 %v4137
        %4906 = vmatprep.subr.bf16.mxu0 0
        %4907 = vmatpush2.bf16.msra.mxu0 %v4134
        %4908 = vmatprep.subr.bf16.mxu0 0
        %4909 = vmatpush2.bf16.msra.mxu0 %v4131
        %4910 = vmatprep.subr.bf16.mxu0 0
        %4911 = vmatpush2.bf16.msra.mxu0 %v4128
        %4912 = vmatprep.subr.bf16.mxu0 0
        %4913 = vmatpush2.bf16.msra.mxu0 %v4125
        %4914 = vmatprep.subr.bf16.mxu0 0
        %4915 = vmatpush2.bf16.msra.mxu0 %v4122
        %4916 = vmatprep.subr.bf16.mxu0 0
        %4917 = vmatpush2.bf16.msra.mxu0 %v4119
        %4918 = vmatprep.subr.bf16.mxu0 0
        %4919 = vmatpush2.bf16.msra.mxu0 %v4116
        %4920 = vmatprep.mubr.bf16.mxu0 %v2580
        %4921 = vmatmul.mubr.bf16.gmra.mxu0 %v2579
        %v4922 = vpop.f32.mrf.mxu0
        %v4923 = vadd.f32 %v4883, %v4922
        %v4924 = vpop.f32.mrf.mxu0
        %v4925 = vpop.f32.mrf.mxu0
        %v4926 = vpop.f32.mrf.mxu0
        %4927 = vdwg.mxu0
        %4928 = vmatprep.subr.bf16.mxu0 0
        %4929 = vmatpush1.bf16.msra.mxu0 %v4161
        %4930 = vmatprep.subr.bf16.mxu0 0
        %4931 = vmatpush1.bf16.msra.mxu0 %v4158
        %4932 = vmatprep.subr.bf16.mxu0 0
        %4933 = vmatpush1.bf16.msra.mxu0 %v4155
        %4934 = vmatprep.subr.bf16.mxu0 0
        %4935 = vmatpush1.bf16.msra.mxu0 %v4152
        %4936 = vmatprep.subr.bf16.mxu0 0
        %4937 = vmatpush1.bf16.msra.mxu0 %v4149
        %4938 = vmatprep.subr.bf16.mxu0 0
        %4939 = vmatpush1.bf16.msra.mxu0 %v4146
        %4940 = vmatprep.subr.bf16.mxu0 0
        %4941 = vmatpush1.bf16.msra.mxu0 %v4143
        %4942 = vmatprep.subr.bf16.mxu0 0
        %4943 = vmatpush1.bf16.msra.mxu0 %v4140
        %4944 = vmatprep.subr.bf16.mxu0 0
        %4945 = vmatpush2.bf16.msra.mxu0 %v4185
        %4946 = vmatprep.subr.bf16.mxu0 0
        %4947 = vmatpush2.bf16.msra.mxu0 %v4182
        %4948 = vmatprep.subr.bf16.mxu0 0
        %4949 = vmatpush2.bf16.msra.mxu0 %v4179
        %4950 = vmatprep.subr.bf16.mxu0 0
        %4951 = vmatpush2.bf16.msra.mxu0 %v4176
        %4952 = vmatprep.subr.bf16.mxu0 0
        %4953 = vmatpush2.bf16.msra.mxu0 %v4173
        %4954 = vmatprep.subr.bf16.mxu0 0
        %4955 = vmatpush2.bf16.msra.mxu0 %v4170
        %4956 = vmatprep.subr.bf16.mxu0 0
        %4957 = vmatpush2.bf16.msra.mxu0 %v4167
        %4958 = vmatprep.subr.bf16.mxu0 0
        %4959 = vmatpush2.bf16.msra.mxu0 %v4164
        %4960 = vmatprep.mubr.bf16.mxu0 %v2582
        %4961 = vmatmul.mubr.bf16.gmra.mxu0 %v2581
        %v4962 = vpop.f32.mrf.mxu0
        %v4963 = vadd.f32 %v4923, %v4962
        %v4964 = vpop.f32.mrf.mxu0
        %v4965 = vpop.f32.mrf.mxu0
        %v4966 = vpop.f32.mrf.mxu0
        %4967 = vdwg.mxu0
        %4968 = vmatprep.subr.bf16.mxu0 0
        %4969 = vmatpush1.bf16.msra.mxu0 %v4209
        %4970 = vmatprep.subr.bf16.mxu0 0
        %4971 = vmatpush1.bf16.msra.mxu0 %v4206
        %4972 = vmatprep.subr.bf16.mxu0 0
        %4973 = vmatpush1.bf16.msra.mxu0 %v4203
        %4974 = vmatprep.subr.bf16.mxu0 0
        %4975 = vmatpush1.bf16.msra.mxu0 %v4200
        %4976 = vmatprep.subr.bf16.mxu0 0
        %4977 = vmatpush1.bf16.msra.mxu0 %v4197
        %4978 = vmatprep.subr.bf16.mxu0 0
        %4979 = vmatpush1.bf16.msra.mxu0 %v4194
        %4980 = vmatprep.subr.bf16.mxu0 0
        %4981 = vmatpush1.bf16.msra.mxu0 %v4191
        %4982 = vmatprep.subr.bf16.mxu0 0
        %4983 = vmatpush1.bf16.msra.mxu0 %v4188
        %4984 = vmatprep.subr.bf16.mxu0 0
        %4985 = vmatpush2.bf16.msra.mxu0 %v4233
        %4986 = vmatprep.subr.bf16.mxu0 0
        %4987 = vmatpush2.bf16.msra.mxu0 %v4230
        %4988 = vmatprep.subr.bf16.mxu0 0
        %4989 = vmatpush2.bf16.msra.mxu0 %v4227
        %4990 = vmatprep.subr.bf16.mxu0 0
        %4991 = vmatpush2.bf16.msra.mxu0 %v4224
        %4992 = vmatprep.subr.bf16.mxu0 0
        %4993 = vmatpush2.bf16.msra.mxu0 %v4221
        %4994 = vmatprep.subr.bf16.mxu0 0
        %4995 = vmatpush2.bf16.msra.mxu0 %v4218
        %4996 = vmatprep.subr.bf16.mxu0 0
        %4997 = vmatpush2.bf16.msra.mxu0 %v4215
        %4998 = vmatprep.subr.bf16.mxu0 0
        %4999 = vmatpush2.bf16.msra.mxu0 %v4212
        %5000 = vmatprep.mubr.bf16.mxu0 %v2584
        %5001 = vmatmul.mubr.bf16.gmra.mxu0 %v2583
        %v5002 = vpop.f32.mrf.mxu0
        %v5003 = vadd.f32 %v4963, %v5002
        %v5004 = vpop.f32.mrf.mxu0
        %v5005 = vpop.f32.mrf.mxu0
        %v5006 = vpop.f32.mrf.mxu0
        %5007 = vdwg.mxu0
        %5008 = vst [vmem:[%s269] sm:$0xff] %v4762
        %5009 = vst [vmem:[%s269 + $0x8] sm:$0xff] %v4764
        %5010 = vst [vmem:[%s269 + $0x10] sm:$0xff] %v5003
        %s5011 = sand.u32 %s141, 1
        %s5012 = scalar_lea.sflag [#allocation4], %s5011
        %s5013 = sand.u32 %s141, 1
        %s5014 = smul.addr %s5013, 24
        %s5015 = scalar_lea.vmem [#allocation8], %s5014
        // Predicated region
        $region53: #{_feed_forward_impl.1} parent=39 // pred_check
          %p5016 = pneg %p151
        $region54: #{_feed_forward_impl.1} parent=39 // pred_check_branch
          %5018 = sbr.rel (%p5016) target = $region56
        $region55: #{_feed_forward_impl.1} parent=39 // pred_region
          %s5020 = ssub.s32 384, 384
          %5021 = vsyncadd %s5012, %s5020
          %s5022 = smul.addr %s23, 3
          %s5023 = smul.addr %s5022, 128
          %s5024 = scalar_lea.hbm %s5, %s5023
          %s5026 = sshll.u32 %s5015, 4
          %s5027 = int_to_ptr.vmem [resolvable:$true] %s5026
          %5029 = dma.vmem_to_hbm [thread:$0]  %s5027, 384, %s5024, %s5012
        $region56: #{_feed_forward_impl.1} parent=39 // pred_fallthru
          _
      $region40: #{_feed_forward_impl.1} parent=5 // pred_fallthru
        _
      %p5030 = scmp.le.s32.totalorder 2, %s18
      // Predicated region
      $region57: #{_feed_forward_impl.1} parent=5 // pred_check
        %p5031 = pneg %p5030
      $region58: #{_feed_forward_impl.1} parent=5 // pred_check_branch
        %5033 = sbr.rel (%p5031) target = $region60
      $region59: #{_feed_forward_impl.1} parent=5 // pred_region
        %s5034 = ssub.s32 %s18, 2
        // Predicated region
        $region61: #{_feed_forward_impl.1} parent=59 // pred_check
          %p5035 = pneg %p157
        $region62: #{_feed_forward_impl.1} parent=59 // pred_check_branch
          %5037 = sbr.rel (%p5035) target = $region64
        $region63: #{_feed_forward_impl.1} parent=59 // pred_region
          %s5038 = sand.u32 %s142, 1
          %s5039 = scalar_lea.sflag [#allocation4], %s5038
          %s5040 = sand.u32 %s142, 1
          %s5041 = smul.addr %s5040, 24
          %s5042 = scalar_lea.vmem [#allocation8], %s5041
          %5043 = dma.done %s5039, 384
        $region64: #{_feed_forward_impl.1} parent=59 // pred_fallthru
          _
      $region60: #{_feed_forward_impl.1} parent=5 // pred_fallthru
        _
    $region6: #{_feed_forward_impl.1} parent=1 // loop_footer
      %s22 = sadd.s32 1, %s18
    $region7: #{_feed_forward_impl.1} parent=1 // loop_footer_branch
      %17 = sbr.rel target = $region3
    $region8: #{_feed_forward_impl.1} parent=1 // loop_exit
      _
    %5044 = vsyncpa [#allocation3], 1
    %s5045 = scalar_lea.sflag [#allocation3], 1
    %5046 = vsyncpa %s5045, 1
    %5047 = vsyncpa [#allocation6], 1
    %5048 = vsyncpa [#allocation4], 1
    %s5049 = scalar_lea.sflag [#allocation4], 1
    %5050 = vsyncpa %s5049, 1

</llo_original>
